<compile_context>
chip_gen: v7x
topology: tpu7x:2x2x1
jax: 0.10.0
libtpu: 0.0.40
codegen_flags: <defaults>
</compile_context>

<pallas_src>
import jax
import jax.numpy as jnp
from jax.experimental import pallas as pl
from jax.experimental.pallas import tpu as pltpu


# ----------------------------- in-kernel helpers -----------------------------

def _softmax(x, axis):
    m = jnp.max(x, axis=axis, keepdims=True)
    e = jnp.exp(x - m)
    # EUP approximate reciprocal for the denominator (free slot).
    return e * pl.reciprocal(jnp.sum(e, axis=axis, keepdims=True), approx=True)


def _dot_bf16(a, b):
    # MXU matmul: bf16 operands, f32 accumulation.
    return jnp.dot(a.astype(jnp.bfloat16), b, preferred_element_type=jnp.float32)


def _mm3(x3, w):
    # (B, L, F) @ (F, O) -> (B, L, O), bf16 operands, f32 accum.
    B, L, F = x3.shape
    y = _dot_bf16(x3.reshape(B * L, F), w)
    return y.reshape(B, L, w.shape[1])


# ----------------------------------- kernel ----------------------------------

def glar_kernel(q_embs_ref, rel_embs_ref, x_flat_ref,
                w_shfold_ref, b_shfold_ref, w_osh_ref,
                q_wx_ref, q_b_ref, q_whf_ref, q_whb_ref,
                r_wx_ref, r_b_ref, r_whf_ref, r_whb_ref,
                w_co_ref, w_m1_ref, w_m2_ref, w_m3_ref,
                out_ref,
                qf_scr, qb_scr, rf_scr, rb_scr):
    f32 = jnp.float32
    bf16 = jnp.bfloat16

    q_embs = q_embs_ref[...]          # (Bt, Lq, E) bf16
    rel_embs = rel_embs_ref[...]      # (Bt, Lr, E) bf16

    # -------- shallow path: fused conv(k=2)+flatten+shallow_linear (1 matmul)
    x_flat = x_flat_ref[...][:, 0, :]                               # (Bt, (Lq-1)*2*Lr) bf16
    lm_feat = _dot_bf16(x_flat, w_shfold_ref[...]) + b_shfold_ref[...]   # (Bt, 2M) f32
    shallow_logit = jnp.sum(lm_feat * w_osh_ref[...], axis=-1, keepdims=True)  # o_liner_shallow
    shallow_prob = jax.nn.sigmoid(shallow_logit)                    # (Bt, 1) f32

    # -------- deep path: BiRNN encoders --------------------------------------
    # TODO(synk): layers.StackedBRNN (SRU) approximated by a 1-layer
    # bidirectional tanh Elman RNN (output dim = 2*hidden, concat_layers=False).
    def birnn(x, wx_cat, b_cat, wh_f, wh_b, f_scr, b_scr):
        B_, L_, E_ = x.shape
        Hh = wh_f.shape[0]
        # Hoisted input projection: one (B*L, E) @ (E, 2H) matmul.
        xp = (_dot_bf16(x.reshape(B_ * L_, E_), wx_cat) + b_cat).reshape(B_, L_, 2 * Hh)
        xf = xp[:, :, :Hh]
        xb = xp[:, :, Hh:]
        hf = jnp.zeros((B_, Hh), f32)
        hb = jnp.zeros((B_, Hh), f32)
        # Interleaved fwd/bwd recurrence; static unroll (L is small here).
        # TODO(synk): switch to lax.fori_loop over time-major scratch for large L.
        for t in range(L_):
            tb = L_ - 1 - t
            hf = jnp.tanh(xf[:, t, :] + _dot_bf16(hf, wh_f))
            hb = jnp.tanh(xb[:, tb, :] + _dot_bf16(hb, wh_b))
            f_scr[:, t, :] = hf
            b_scr[:, tb, :] = hb
        return jnp.concatenate([f_scr[...], b_scr[...]], axis=-1)   # (B, L, 2H) f32

    q_out = birnn(q_embs, q_wx_ref[...], q_b_ref[...],
                  q_whf_ref[...], q_whb_ref[...], qf_scr, qb_scr)   # (Bt, Lq, 2H)
    rel_out = birnn(rel_embs, r_wx_ref[...], r_b_ref[...],
                    r_whf_ref[...], r_whb_ref[...], rf_scr, rb_scr) # (Bt, Lr, 2H)

    # -------- co-attention -----------------------------------------------------
    # TODO(synk): layers.Coattn approximated as bilinear co-attention.
    q_bf = q_out.astype(bf16)
    rel_bf = rel_out.astype(bf16)
    q_proj = _mm3(q_out, w_co_ref[...])                             # (Bt, Lq, 2H) f32
    scores = jnp.einsum('bqh,brh->bqr', q_proj.astype(bf16), rel_bf,
                        preferred_element_type=f32)                 # (Bt, Lq, Lr)
    alpha = _softmax(scores, axis=2)
    rel_match = jnp.einsum('bqr,brh->bqh', alpha.astype(bf16), rel_bf,
                           preferred_element_type=f32)              # (Bt, Lq, 2H)
    beta = _softmax(scores, axis=1)
    rel_pred_match = jnp.einsum('bqr,bqh->brh', beta.astype(bf16), q_bf,
                                preferred_element_type=f32)         # (Bt, Lr, 2H), no transpose

    # -------- merge MLPs + max-pool + cosine ----------------------------------
    merge_in = jnp.concatenate([rel_match, q_out, rel_match * q_out], axis=-1)
    m1 = jnp.maximum(_mm3(merge_in, w_m1_ref[...]), 0.0)            # relu, (Bt, Lq, 3H)
    merge_in2 = jnp.concatenate([m1, rel_match, q_out], axis=-1)
    merge_res = _mm3(merge_in2, w_m2_ref[...])                      # (Bt, Lq, 2M)
    predicate = _mm3(rel_pred_match, w_m3_ref[...])                 # (Bt, Lr, 2M)

    fts_q = jnp.max(merge_res, axis=1)                              # (Bt, 2M)
    fts_p = jnp.max(predicate, axis=1)                              # (Bt, 2M)

    # cosine similarity with per-norm eps clamp (matches F.cosine_similarity).
    eps = 1e-6
    dotp = jnp.sum(fts_q * fts_p, axis=-1, keepdims=True)
    nq = jnp.maximum(jnp.sqrt(jnp.sum(fts_q * fts_q, axis=-1, keepdims=True)), eps)
    npv = jnp.maximum(jnp.sqrt(jnp.sum(fts_p * fts_p, axis=-1, keepdims=True)), eps)
    cos = dotp / (nq * npv)                                         # (Bt, 1)

    # Lane-dense padded output slab: lane 0 = cosine, lane 1 = sigmoid(shallow).
    lane = jax.lax.broadcasted_iota(jnp.int32, out_ref.shape, 2)
    out_ref[...] = jnp.where(lane == 0, cos[:, :, None],
                             jnp.where(lane == 1, shallow_prob[:, :, None], 0.0))


# ----------------------------------- wrapper ---------------------------------

def glar_forward(q_embs, rel_embs, lm_xor, params, *, block_b=None):
    B, Lq, E = q_embs.shape
    Lr = rel_embs.shape[1]
    H = params["q_wh_f"].shape[0]
    H2 = 2 * H
    M2 = params["w_m3"].shape[1]
    if block_b is None:
        block_b = B if B <= 2 else 2
    assert B % block_b == 0
    n_blocks = B // block_b

    # bf16 for MXU operands (accumulation stays f32 inside the kernel).
    q_bf = q_embs.astype(jnp.bfloat16)
    r_bf = rel_embs.astype(jnp.bfloat16)
    # Flatten the k=2 conv windows of the xor indicator here (layout plumbing).
    x_flat = jnp.concatenate([lm_xor[:, :Lq - 1, :], lm_xor[:, 1:, :]], axis=-1)
    x_flat = x_flat.reshape(B, 1, (Lq - 1) * 2 * Lr).astype(jnp.bfloat16)

    args = (q_bf, r_bf, x_flat,
            params["w_shfold"], params["b_shfold"], params["w_osh"],
            params["q_wx_cat"], params["q_b_cat"], params["q_wh_f"], params["q_wh_b"],
            params["r_wx_cat"], params["r_b_cat"], params["r_wh_f"], params["r_wh_b"],
            params["w_co"], params["w_m1"], params["w_m2"], params["w_m3"])

    def batch_spec(a):
        return pl.BlockSpec((block_b,) + tuple(a.shape[1:]), lambda b: (b, 0, 0))

    def rep_spec(a):
        zeros = (0,) * a.ndim
        return pl.BlockSpec(tuple(a.shape), lambda b: zeros)

    in_specs = [batch_spec(q_bf), batch_spec(r_bf), batch_spec(x_flat)]
    in_specs += [rep_spec(a) for a in args[3:]]
    out_spec = pl.BlockSpec((block_b, 1, 128), lambda b: (b, 0, 0))

    flops = 2 * B * (
        Lq * E * H2 + Lr * E * H2                  # hoisted RNN input projections
        + 2 * Lq * H * H + 2 * Lr * H * H          # fwd+bwd recurrences
        + (Lq - 1) * (2 * Lr) * M2                 # fused shallow-path matmul
        + Lq * H2 * H2                             # co-attn projection
        + 3 * Lq * Lr * H2                         # scores + 2 attention sums
        + Lq * (3 * H2) * (3 * H)                  # merge_liner
        + Lq * (3 * H + 2 * H2) * M2               # merge_liner2
        + Lr * H2 * M2                             # merge_liner3
    )
    transcendentals = B * (2 * (Lq + Lr) * H + 2 * Lq * Lr + 1)
    bytes_accessed = int(sum(a.size * a.dtype.itemsize for a in args) + B * 128 * 4)
    cost = pl.CostEstimate(flops=int(flops),
                           transcendentals=int(transcendentals),
                           bytes_accessed=bytes_accessed)

    padded = pl.pallas_call(
        glar_kernel,
        out_shape=jax.ShapeDtypeStruct((B, 1, 128), jnp.float32),
        grid_spec=pltpu.PrefetchScalarGridSpec(
            num_scalar_prefetch=0,
            grid=(n_blocks,),
            in_specs=in_specs,
            out_specs=out_spec,
            scratch_shapes=[
                pltpu.VMEM((block_b, Lq, H), jnp.float32),   # q fwd states
                pltpu.VMEM((block_b, Lq, H), jnp.float32),   # q bwd states
                pltpu.VMEM((block_b, Lr, H), jnp.float32),   # rel fwd states
                pltpu.VMEM((block_b, Lr, H), jnp.float32),   # rel bwd states
            ]),
        compiler_params=pltpu.CompilerParams(
            dimension_semantics=("parallel",),
            vmem_limit_bytes=32 * 1024 * 1024),
        cost_estimate=cost,
    )(*args)

    merge_probs = padded[:, 0, :2]                  # (B, 2) = [cosine, sigmoid(shallow)]
    return jnp.dot(merge_probs, params["w_po"])     # prob_out_linear (2 -> 1)


# ----------------------------------- glue ------------------------------------

def xor_match_knn(q_idxs, rel_idxs, q_knn_idxs, rel_knn_idxs):
    # TODO(synk): layers._xor_match_knn approximated as an exact/KNN token
    # overlap indicator matrix (B, Lq, Lr) of {0.0, 1.0}.
    exact = q_idxs[:, :, None] == rel_idxs[:, None, :]
    q_knn_hit = jnp.any(q_knn_idxs[:, :, None, :] == rel_idxs[:, None, :, None], axis=-1)
    rel_knn_hit = jnp.any(rel_knn_idxs[:, None, :, :] == q_idxs[:, :, None, None], axis=-1)
    return (exact | q_knn_hit | rel_knn_hit).astype(jnp.float32)


def init_params(key, *, E, H, Lq, Lr, M):
    """Deterministic synthetic parameters matching the PyTorch module shapes."""
    H2 = 2 * H
    M2 = 2 * M
    bf16 = jnp.bfloat16
    ks = iter(jax.random.split(key, 32))

    def w(shape, scale=0.1):
        return (scale * jax.random.normal(next(ks), shape)).astype(jnp.float32)

    # Shallow path: Conv1d(k=2,out=32) -> dropout(id) -> flatten -> shallow_linear
    # is a composition of linear maps; fold it into one weight/bias at init.
    conv_w = w((32, Lr, 2))                          # Conv1d weight (out, in=h, k)
    conv_b = w((32,))                                # Conv1d bias
    w_shallow = w((M2, 32 * (Lq - 1)))               # shallow_linear (out, in), flat = o*(Lq-1)+t
    w_sh3 = jnp.transpose(w_shallow.reshape(M2, 32, Lq - 1), (2, 1, 0))        # [t, o, m]
    conv_w_cat = jnp.concatenate([conv_w[:, :, 0].T, conv_w[:, :, 1].T], axis=0)  # [c(2Lr), o]
    w_shfold = jnp.einsum('co,tom->tcm', conv_w_cat, w_sh3).reshape((Lq - 1) * 2 * Lr, M2)
    b_shfold = jnp.einsum('o,tom->m', conv_b, w_sh3)[None, :]                  # (1, 2M)

    def rnn(prefix):
        wx_f, wx_b = w((E, H)), w((E, H))
        b_f, b_b = w((1, H)), w((1, H))
        return {
            prefix + "_wx_cat": jnp.concatenate([wx_f, wx_b], axis=1).astype(bf16),  # (E, 2H)
            prefix + "_b_cat": jnp.concatenate([b_f, b_b], axis=1),                  # (1, 2H) f32
            prefix + "_wh_f": w((H, H)).astype(bf16),
            prefix + "_wh_b": w((H, H)).astype(bf16),
        }

    p = dict(
        w_shfold=w_shfold.astype(bf16),
        b_shfold=b_shfold,                           # f32
        w_osh=w((1, M2)),                            # o_liner_shallow (no bias), f32
        w_co=w((H2, H2)).astype(bf16),               # Coattn bilinear weight
        w_m1=w((3 * H, 3 * H2)).T.astype(bf16),      # merge_liner   (in=6H, out=3H)
        w_m2=w((M2, 3 * H + 2 * H2)).T.astype(bf16), # merge_liner2  (in=7H, out=2M)
        w_m3=w((M2, H2)).T.astype(bf16),             # merge_liner3  (in=2H, out=2M)
        w_po=w((1, 2)).T,                            # prob_out_linear (2,1), f32, applied in wrapper
        # NOTE: type_emb_trans_liner and o_liner exist in __init__ but are
        # never used in forward(), so they are not materialized here.
    )
    p.update(rnn("q"))
    p.update(rnn("r"))
    return p


if __name__ == "__main__":
    B, Lq, Lr, E, H, M, V, K = 4, 8, 8, 64, 64, 64, 50, 3
    key = jax.random.PRNGKey(0)
    k_emb, k_q, k_r, k_qk, k_rk, k_par = jax.random.split(key, 6)

    emb_table = (0.1 * jax.random.normal(k_emb, (V, E))).astype(jnp.float32)
    emb_table = emb_table.at[0].set(0.0)             # padding_idx = 0

    q_idxs = jax.random.randint(k_q, (B, Lq), 0, V)
    rel_idxs = jax.random.randint(k_r, (B, Lr), 0, V)
    q_knn_idxs = jax.random.randint(k_qk, (B, Lq, K), 0, V)
    rel_knn_idxs = jax.random.randint(k_rk, (B, Lr, K), 0, V)

    # embedding lookup + (eval-mode) dropout = identity  -> glue
    q_embs = emb_table[q_idxs]                       # (B, Lq, E)
    rel_embs = emb_table[rel_idxs]                   # (B, Lr, E)
    lm_xor = xor_match_knn(q_idxs, rel_idxs, q_knn_idxs, rel_knn_idxs)   # (B, Lq, Lr)

    params = init_params(k_par, E=E, H=H, Lq=Lq, Lr=Lr, M=M)
    probs = glar_forward(q_embs, rel_embs, lm_xor, params, block_b=2)
    jax.block_until_ready(probs)
    assert probs.shape == (B, 1) and probs.dtype == jnp.float32
    print("KERNEL_OK")
</pallas_src>

<mosaic_0001>
module attributes {stable_mosaic.version = 11 : i64} {
  func.func @glar_kernel(%arg0: i32, %arg1: memref<2x8x64xbf16, #tpu.memory_space<vmem>>, %arg2: memref<2x8x64xbf16, #tpu.memory_space<vmem>>, %arg3: memref<2x1x112xbf16, #tpu.memory_space<vmem>>, %arg4: memref<112x128xbf16, #tpu.memory_space<vmem>>, %arg5: memref<1x128xf32, #tpu.memory_space<vmem>>, %arg6: memref<1x128xf32, #tpu.memory_space<vmem>>, %arg7: memref<64x128xbf16, #tpu.memory_space<vmem>>, %arg8: memref<1x128xf32, #tpu.memory_space<vmem>>, %arg9: memref<64x64xbf16, #tpu.memory_space<vmem>>, %arg10: memref<64x64xbf16, #tpu.memory_space<vmem>>, %arg11: memref<64x128xbf16, #tpu.memory_space<vmem>>, %arg12: memref<1x128xf32, #tpu.memory_space<vmem>>, %arg13: memref<64x64xbf16, #tpu.memory_space<vmem>>, %arg14: memref<64x64xbf16, #tpu.memory_space<vmem>>, %arg15: memref<128x128xbf16, #tpu.memory_space<vmem>>, %arg16: memref<384x192xbf16, #tpu.memory_space<vmem>>, %arg17: memref<448x128xbf16, #tpu.memory_space<vmem>>, %arg18: memref<128x128xbf16, #tpu.memory_space<vmem>>, %arg19: memref<2x1x128xf32, #tpu.memory_space<vmem>>, %arg20: memref<2x8x64xf32, #tpu.memory_space<vmem>>, %arg21: memref<2x8x64xf32, #tpu.memory_space<vmem>>, %arg22: memref<2x8x64xf32, #tpu.memory_space<vmem>>, %arg23: memref<2x8x64xf32, #tpu.memory_space<vmem>>) attributes {dimension_semantics = [#tpu.dimension_semantics<parallel>], iteration_bounds = array<i64: 2>, scalar_prefetch = 0 : i64, scratch_operands = 4 : i64, tpu.core_type = #tpu.core_type<tc>, window_params = [{transform_indices = @transform_0, window_bounds = array<i64: 2, 8, 64>}, {transform_indices = @transform_1, window_bounds = array<i64: 2, 8, 64>}, {transform_indices = @transform_2, window_bounds = array<i64: 2, 1, 112>}, {pipeline_mode = #tpu.pipeline_mode<synchronous>, transform_indices = @transform_3, window_bounds = array<i64: 112, 128>}, {pipeline_mode = #tpu.pipeline_mode<synchronous>, transform_indices = @transform_4, window_bounds = array<i64: 1, 128>}, {pipeline_mode = #tpu.pipeline_mode<synchronous>, transform_indices = @transform_5, window_bounds = array<i64: 1, 128>}, {pipeline_mode = #tpu.pipeline_mode<synchronous>, transform_indices = @transform_6, window_bounds = array<i64: 64, 128>}, {pipeline_mode = #tpu.pipeline_mode<synchronous>, transform_indices = @transform_7, window_bounds = array<i64: 1, 128>}, {pipeline_mode = #tpu.pipeline_mode<synchronous>, transform_indices = @transform_8, window_bounds = array<i64: 64, 64>}, {pipeline_mode = #tpu.pipeline_mode<synchronous>, transform_indices = @transform_9, window_bounds = array<i64: 64, 64>}, {pipeline_mode = #tpu.pipeline_mode<synchronous>, transform_indices = @transform_10, window_bounds = array<i64: 64, 128>}, {pipeline_mode = #tpu.pipeline_mode<synchronous>, transform_indices = @transform_11, window_bounds = array<i64: 1, 128>}, {pipeline_mode = #tpu.pipeline_mode<synchronous>, transform_indices = @transform_12, window_bounds = array<i64: 64, 64>}, {pipeline_mode = #tpu.pipeline_mode<synchronous>, transform_indices = @transform_13, window_bounds = array<i64: 64, 64>}, {pipeline_mode = #tpu.pipeline_mode<synchronous>, transform_indices = @transform_14, window_bounds = array<i64: 128, 128>}, {pipeline_mode = #tpu.pipeline_mode<synchronous>, transform_indices = @transform_15, window_bounds = array<i64: 384, 192>}, {pipeline_mode = #tpu.pipeline_mode<synchronous>, transform_indices = @transform_16, window_bounds = array<i64: 448, 128>}, {pipeline_mode = #tpu.pipeline_mode<synchronous>, transform_indices = @transform_17, window_bounds = array<i64: 128, 128>}, {transform_indices = @transform_18, window_bounds = array<i64: 2, 1, 128>}]} {
    %c0 = arith.constant 0 : index
    %c0_0 = arith.constant 0 : index
    %c0_1 = arith.constant 0 : index
    %0 = vector.load %arg1[%c0, %c0_0, %c0_1] : memref<2x8x64xbf16, #tpu.memory_space<vmem>>, vector<2x8x64xbf16>
    %c0_2 = arith.constant 0 : index
    %c0_3 = arith.constant 0 : index
    %c0_4 = arith.constant 0 : index
    %1 = vector.load %arg2[%c0_2, %c0_3, %c0_4] : memref<2x8x64xbf16, #tpu.memory_space<vmem>>, vector<2x8x64xbf16>
    %c0_5 = arith.constant 0 : index
    %c0_6 = arith.constant 0 : index
    %c0_7 = arith.constant 0 : index
    %2 = vector.load %arg3[%c0_5, %c0_6, %c0_7] : memref<2x1x112xbf16, #tpu.memory_space<vmem>>, vector<2x1x112xbf16>
    %3 = vector.shape_cast %2 : vector<2x1x112xbf16> to vector<2x112xbf16>
    %c0_8 = arith.constant 0 : index
    %c0_9 = arith.constant 0 : index
    %4 = vector.load %arg4[%c0_8, %c0_9] : memref<112x128xbf16, #tpu.memory_space<vmem>>, vector<112x128xbf16>
    %cst = arith.constant dense<0.000000e+00> : vector<2x128xf32>
    %5 = tpu.matmul %3, %4, %cst {dimension_numbers = #tpu.dot_dimension_numbers<[1], [0], [0], [1], [0, 0, 1, 1], [], []>} : vector<2x112xbf16>, vector<112x128xbf16>, vector<2x128xf32> -> vector<2x128xf32>
    %c0_10 = arith.constant 0 : index
    %c0_11 = arith.constant 0 : index
    %6 = vector.load %arg5[%c0_10, %c0_11] : memref<1x128xf32, #tpu.memory_space<vmem>>, vector<1x128xf32>
    %7 = vector.broadcast %6 : vector<1x128xf32> to vector<2x128xf32>
    %8 = arith.addf %5, %7 : vector<2x128xf32>
    %c0_12 = arith.constant 0 : index
    %c0_13 = arith.constant 0 : index
    %9 = vector.load %arg6[%c0_12, %c0_13] : memref<1x128xf32, #tpu.memory_space<vmem>>, vector<1x128xf32>
    %10 = vector.broadcast %9 : vector<1x128xf32> to vector<2x128xf32>
    %11 = arith.mulf %8, %10 : vector<2x128xf32>
    %cst_14 = arith.constant dense<0.000000e+00> : vector<2xf32>
    %12 = vector.multi_reduction <add>, %11, %cst_14 [1] : vector<2x128xf32> to vector<2xf32>
    %13 = vector.shape_cast %12 : vector<2xf32> to vector<2x1xf32>
    %14 = arith.negf %13 : vector<2x1xf32>
    %15 = math.exp %14 : vector<2x1xf32>
    %cst_15 = arith.constant 1.000000e+00 : f32
    %16 = vector.broadcast %cst_15 : f32 to vector<2x1xf32>
    %17 = arith.addf %16, %15 : vector<2x1xf32>
    %18 = arith.divf %16, %17 : vector<2x1xf32>
    %c0_16 = arith.constant 0 : index
    %c0_17 = arith.constant 0 : index
    %19 = vector.load %arg7[%c0_16, %c0_17] : memref<64x128xbf16, #tpu.memory_space<vmem>>, vector<64x128xbf16>
    %c0_18 = arith.constant 0 : index
    %c0_19 = arith.constant 0 : index
    %20 = vector.load %arg8[%c0_18, %c0_19] : memref<1x128xf32, #tpu.memory_space<vmem>>, vector<1x128xf32>
    %c0_20 = arith.constant 0 : index
    %c0_21 = arith.constant 0 : index
    %21 = vector.load %arg9[%c0_20, %c0_21] : memref<64x64xbf16, #tpu.memory_space<vmem>>, vector<64x64xbf16>
    %c0_22 = arith.constant 0 : index
    %c0_23 = arith.constant 0 : index
    %22 = vector.load %arg10[%c0_22, %c0_23] : memref<64x64xbf16, #tpu.memory_space<vmem>>, vector<64x64xbf16>
    %23 = vector.shape_cast %0 : vector<2x8x64xbf16> to vector<16x64xbf16>
    %cst_24 = arith.constant dense<0.000000e+00> : vector<16x128xf32>
    %24 = tpu.matmul %23, %19, %cst_24 {dimension_numbers = #tpu.dot_dimension_numbers<[1], [0], [0], [1], [0, 0, 1, 1], [], []>} : vector<16x64xbf16>, vector<64x128xbf16>, vector<16x128xf32> -> vector<16x128xf32>
    %25 = vector.broadcast %20 : vector<1x128xf32> to vector<16x128xf32>
    %26 = arith.addf %24, %25 : vector<16x128xf32>
    %27 = vector.shape_cast %26 : vector<16x128xf32> to vector<2x8x128xf32>
    %28 = vector.extract_strided_slice %27 {offsets = [0, 0, 0], sizes = [2, 8, 64], strides = [1, 1, 1]} : vector<2x8x128xf32> to vector<2x8x64xf32>
    %29 = vector.extract_strided_slice %27 {offsets = [0, 0, 64], sizes = [2, 8, 64], strides = [1, 1, 1]} : vector<2x8x128xf32> to vector<2x8x64xf32>
    %cst_25 = arith.constant 0.000000e+00 : f32
    %30 = vector.broadcast %cst_25 : f32 to vector<2x64xf32>
    %cst_26 = arith.constant 0.000000e+00 : f32
    %31 = vector.broadcast %cst_26 : f32 to vector<2x64xf32>
    %32 = vector.extract_strided_slice %28 {offsets = [0, 0, 0], sizes = [2, 1, 64], strides = [1, 1, 1]} : vector<2x8x64xf32> to vector<2x1x64xf32>
    %33 = vector.shape_cast %32 : vector<2x1x64xf32> to vector<2x64xf32>
    %34 = arith.truncf %30 : vector<2x64xf32> to vector<2x64xbf16>
    %cst_27 = arith.constant dense<0.000000e+00> : vector<2x64xf32>
    %35 = tpu.matmul %34, %21, %cst_27 {dimension_numbers = #tpu.dot_dimension_numbers<[1], [0], [0], [1], [0, 0, 1, 1], [], []>} : vector<2x64xbf16>, vector<64x64xbf16>, vector<2x64xf32> -> vector<2x64xf32>
    %36 = arith.addf %33, %35 : vector<2x64xf32>
    %37 = math.tanh %36 : vector<2x64xf32>
    %38 = vector.extract_strided_slice %29 {offsets = [0, 7, 0], sizes = [2, 1, 64], strides = [1, 1, 1]} : vector<2x8x64xf32> to vector<2x1x64xf32>
    %39 = vector.shape_cast %38 : vector<2x1x64xf32> to vector<2x64xf32>
    %40 = arith.truncf %31 : vector<2x64xf32> to vector<2x64xbf16>
    %cst_28 = arith.constant dense<0.000000e+00> : vector<2x64xf32>
    %41 = tpu.matmul %40, %22, %cst_28 {dimension_numbers = #tpu.dot_dimension_numbers<[1], [0], [0], [1], [0, 0, 1, 1], [], []>} : vector<2x64xbf16>, vector<64x64xbf16>, vector<2x64xf32> -> vector<2x64xf32>
    %42 = arith.addf %39, %41 : vector<2x64xf32>
    %43 = math.tanh %42 : vector<2x64xf32>
    %c0_29 = arith.constant 0 : index
    %c0_30 = arith.constant 0 : index
    %c0_31 = arith.constant 0 : index
    %44 = vector.load %arg20[%c0_29, %c0_30, %c0_31] : memref<2x8x64xf32, #tpu.memory_space<vmem>>, vector<2x1x64xf32>
    %45 = vector.shape_cast %44 : vector<2x1x64xf32> to vector<2x64xf32>
    %46 = vector.shape_cast %37 : vector<2x64xf32> to vector<2x1x64xf32>
    tpu.vector_store %arg20[%c0_29, %c0_30, %c0_31], %46 {strides = array<i32>} : memref<2x8x64xf32, #tpu.memory_space<vmem>>, vector<2x1x64xf32>,
    %c0_32 = arith.constant 0 : index
    %c7 = arith.constant 7 : index
    %c0_33 = arith.constant 0 : index
    %47 = vector.load %arg21[%c0_32, %c7, %c0_33] : memref<2x8x64xf32, #tpu.memory_space<vmem>>, vector<2x1x64xf32>
    %48 = vector.shape_cast %47 : vector<2x1x64xf32> to vector<2x64xf32>
    %49 = vector.shape_cast %43 : vector<2x64xf32> to vector<2x1x64xf32>
    tpu.vector_store %arg21[%c0_32, %c7, %c0_33], %49 {strides = array<i32>} : memref<2x8x64xf32, #tpu.memory_space<vmem>>, vector<2x1x64xf32>,
    %50 = vector.extract_strided_slice %28 {offsets = [0, 1, 0], sizes = [2, 1, 64], strides = [1, 1, 1]} : vector<2x8x64xf32> to vector<2x1x64xf32>
    %51 = vector.shape_cast %50 : vector<2x1x64xf32> to vector<2x64xf32>
    %52 = arith.truncf %37 : vector<2x64xf32> to vector<2x64xbf16>
    %cst_34 = arith.constant dense<0.000000e+00> : vector<2x64xf32>
    %53 = tpu.matmul %52, %21, %cst_34 {dimension_numbers = #tpu.dot_dimension_numbers<[1], [0], [0], [1], [0, 0, 1, 1], [], []>} : vector<2x64xbf16>, vector<64x64xbf16>, vector<2x64xf32> -> vector<2x64xf32>
    %54 = arith.addf %51, %53 : vector<2x64xf32>
    %55 = math.tanh %54 : vector<2x64xf32>
    %56 = vector.extract_strided_slice %29 {offsets = [0, 6, 0], sizes = [2, 1, 64], strides = [1, 1, 1]} : vector<2x8x64xf32> to vector<2x1x64xf32>
    %57 = vector.shape_cast %56 : vector<2x1x64xf32> to vector<2x64xf32>
    %58 = arith.truncf %43 : vector<2x64xf32> to vector<2x64xbf16>
    %cst_35 = arith.constant dense<0.000000e+00> : vector<2x64xf32>
    %59 = tpu.matmul %58, %22, %cst_35 {dimension_numbers = #tpu.dot_dimension_numbers<[1], [0], [0], [1], [0, 0, 1, 1], [], []>} : vector<2x64xbf16>, vector<64x64xbf16>, vector<2x64xf32> -> vector<2x64xf32>
    %60 = arith.addf %57, %59 : vector<2x64xf32>
    %61 = math.tanh %60 : vector<2x64xf32>
    %c0_36 = arith.constant 0 : index
    %c1 = arith.constant 1 : index
    %c0_37 = arith.constant 0 : index
    %62 = vector.load %arg20[%c0_36, %c1, %c0_37] : memref<2x8x64xf32, #tpu.memory_space<vmem>>, vector<2x1x64xf32>
    %63 = vector.shape_cast %62 : vector<2x1x64xf32> to vector<2x64xf32>
    %64 = vector.shape_cast %55 : vector<2x64xf32> to vector<2x1x64xf32>
    tpu.vector_store %arg20[%c0_36, %c1, %c0_37], %64 {strides = array<i32>} : memref<2x8x64xf32, #tpu.memory_space<vmem>>, vector<2x1x64xf32>,
    %c0_38 = arith.constant 0 : index
    %c6 = arith.constant 6 : index
    %c0_39 = arith.constant 0 : index
    %65 = vector.load %arg21[%c0_38, %c6, %c0_39] : memref<2x8x64xf32, #tpu.memory_space<vmem>>, vector<2x1x64xf32>
    %66 = vector.shape_cast %65 : vector<2x1x64xf32> to vector<2x64xf32>
    %67 = vector.shape_cast %61 : vector<2x64xf32> to vector<2x1x64xf32>
    tpu.vector_store %arg21[%c0_38, %c6, %c0_39], %67 {strides = array<i32>} : memref<2x8x64xf32, #tpu.memory_space<vmem>>, vector<2x1x64xf32>,
    %68 = vector.extract_strided_slice %28 {offsets = [0, 2, 0], sizes = [2, 1, 64], strides = [1, 1, 1]} : vector<2x8x64xf32> to vector<2x1x64xf32>
    %69 = vector.shape_cast %68 : vector<2x1x64xf32> to vector<2x64xf32>
    %70 = arith.truncf %55 : vector<2x64xf32> to vector<2x64xbf16>
    %cst_40 = arith.constant dense<0.000000e+00> : vector<2x64xf32>
    %71 = tpu.matmul %70, %21, %cst_40 {dimension_numbers = #tpu.dot_dimension_numbers<[1], [0], [0], [1], [0, 0, 1, 1], [], []>} : vector<2x64xbf16>, vector<64x64xbf16>, vector<2x64xf32> -> vector<2x64xf32>
    %72 = arith.addf %69, %71 : vector<2x64xf32>
    %73 = math.tanh %72 : vector<2x64xf32>
    %74 = vector.extract_strided_slice %29 {offsets = [0, 5, 0], sizes = [2, 1, 64], strides = [1, 1, 1]} : vector<2x8x64xf32> to vector<2x1x64xf32>
    %75 = vector.shape_cast %74 : vector<2x1x64xf32> to vector<2x64xf32>
    %76 = arith.truncf %61 : vector<2x64xf32> to vector<2x64xbf16>
    %cst_41 = arith.constant dense<0.000000e+00> : vector<2x64xf32>
    %77 = tpu.matmul %76, %22, %cst_41 {dimension_numbers = #tpu.dot_dimension_numbers<[1], [0], [0], [1], [0, 0, 1, 1], [], []>} : vector<2x64xbf16>, vector<64x64xbf16>, vector<2x64xf32> -> vector<2x64xf32>
    %78 = arith.addf %75, %77 : vector<2x64xf32>
    %79 = math.tanh %78 : vector<2x64xf32>
    %c0_42 = arith.constant 0 : index
    %c2 = arith.constant 2 : index
    %c0_43 = arith.constant 0 : index
    %80 = vector.load %arg20[%c0_42, %c2, %c0_43] : memref<2x8x64xf32, #tpu.memory_space<vmem>>, vector<2x1x64xf32>
    %81 = vector.shape_cast %80 : vector<2x1x64xf32> to vector<2x64xf32>
    %82 = vector.shape_cast %73 : vector<2x64xf32> to vector<2x1x64xf32>
    tpu.vector_store %arg20[%c0_42, %c2, %c0_43], %82 {strides = array<i32>} : memref<2x8x64xf32, #tpu.memory_space<vmem>>, vector<2x1x64xf32>,
    %c0_44 = arith.constant 0 : index
    %c5 = arith.constant 5 : index
    %c0_45 = arith.constant 0 : index
    %83 = vector.load %arg21[%c0_44, %c5, %c0_45] : memref<2x8x64xf32, #tpu.memory_space<vmem>>, vector<2x1x64xf32>
    %84 = vector.shape_cast %83 : vector<2x1x64xf32> to vector<2x64xf32>
    %85 = vector.shape_cast %79 : vector<2x64xf32> to vector<2x1x64xf32>
    tpu.vector_store %arg21[%c0_44, %c5, %c0_45], %85 {strides = array<i32>} : memref<2x8x64xf32, #tpu.memory_space<vmem>>, vector<2x1x64xf32>,
    %86 = vector.extract_strided_slice %28 {offsets = [0, 3, 0], sizes = [2, 1, 64], strides = [1, 1, 1]} : vector<2x8x64xf32> to vector<2x1x64xf32>
    %87 = vector.shape_cast %86 : vector<2x1x64xf32> to vector<2x64xf32>
    %88 = arith.truncf %73 : vector<2x64xf32> to vector<2x64xbf16>
    %cst_46 = arith.constant dense<0.000000e+00> : vector<2x64xf32>
    %89 = tpu.matmul %88, %21, %cst_46 {dimension_numbers = #tpu.dot_dimension_numbers<[1], [0], [0], [1], [0, 0, 1, 1], [], []>} : vector<2x64xbf16>, vector<64x64xbf16>, vector<2x64xf32> -> vector<2x64xf32>
    %90 = arith.addf %87, %89 : vector<2x64xf32>
    %91 = math.tanh %90 : vector<2x64xf32>
    %92 = vector.extract_strided_slice %29 {offsets = [0, 4, 0], sizes = [2, 1, 64], strides = [1, 1, 1]} : vector<2x8x64xf32> to vector<2x1x64xf32>
    %93 = vector.shape_cast %92 : vector<2x1x64xf32> to vector<2x64xf32>
    %94 = arith.truncf %79 : vector<2x64xf32> to vector<2x64xbf16>
    %cst_47 = arith.constant dense<0.000000e+00> : vector<2x64xf32>
    %95 = tpu.matmul %94, %22, %cst_47 {dimension_numbers = #tpu.dot_dimension_numbers<[1], [0], [0], [1], [0, 0, 1, 1], [], []>} : vector<2x64xbf16>, vector<64x64xbf16>, vector<2x64xf32> -> vector<2x64xf32>
    %96 = arith.addf %93, %95 : vector<2x64xf32>
    %97 = math.tanh %96 : vector<2x64xf32>
    %c0_48 = arith.constant 0 : index
    %c3 = arith.constant 3 : index
    %c0_49 = arith.constant 0 : index
    %98 = vector.load %arg20[%c0_48, %c3, %c0_49] : memref<2x8x64xf32, #tpu.memory_space<vmem>>, vector<2x1x64xf32>
    %99 = vector.shape_cast %98 : vector<2x1x64xf32> to vector<2x64xf32>
    %100 = vector.shape_cast %91 : vector<2x64xf32> to vector<2x1x64xf32>
    tpu.vector_store %arg20[%c0_48, %c3, %c0_49], %100 {strides = array<i32>} : memref<2x8x64xf32, #tpu.memory_space<vmem>>, vector<2x1x64xf32>,
    %c0_50 = arith.constant 0 : index
    %c4 = arith.constant 4 : index
    %c0_51 = arith.constant 0 : index
    %101 = vector.load %arg21[%c0_50, %c4, %c0_51] : memref<2x8x64xf32, #tpu.memory_space<vmem>>, vector<2x1x64xf32>
    %102 = vector.shape_cast %101 : vector<2x1x64xf32> to vector<2x64xf32>
    %103 = vector.shape_cast %97 : vector<2x64xf32> to vector<2x1x64xf32>
    tpu.vector_store %arg21[%c0_50, %c4, %c0_51], %103 {strides = array<i32>} : memref<2x8x64xf32, #tpu.memory_space<vmem>>, vector<2x1x64xf32>,
    %104 = vector.extract_strided_slice %28 {offsets = [0, 4, 0], sizes = [2, 1, 64], strides = [1, 1, 1]} : vector<2x8x64xf32> to vector<2x1x64xf32>
    %105 = vector.shape_cast %104 : vector<2x1x64xf32> to vector<2x64xf32>
    %106 = arith.truncf %91 : vector<2x64xf32> to vector<2x64xbf16>
    %cst_52 = arith.constant dense<0.000000e+00> : vector<2x64xf32>
    %107 = tpu.matmul %106, %21, %cst_52 {dimension_numbers = #tpu.dot_dimension_numbers<[1], [0], [0], [1], [0, 0, 1, 1], [], []>} : vector<2x64xbf16>, vector<64x64xbf16>, vector<2x64xf32> -> vector<2x64xf32>
    %108 = arith.addf %105, %107 : vector<2x64xf32>
    %109 = math.tanh %108 : vector<2x64xf32>
    %110 = vector.extract_strided_slice %29 {offsets = [0, 3, 0], sizes = [2, 1, 64], strides = [1, 1, 1]} : vector<2x8x64xf32> to vector<2x1x64xf32>
    %111 = vector.shape_cast %110 : vector<2x1x64xf32> to vector<2x64xf32>
    %112 = arith.truncf %97 : vector<2x64xf32> to vector<2x64xbf16>
    %cst_53 = arith.constant dense<0.000000e+00> : vector<2x64xf32>
    %113 = tpu.matmul %112, %22, %cst_53 {dimension_numbers = #tpu.dot_dimension_numbers<[1], [0], [0], [1], [0, 0, 1, 1], [], []>} : vector<2x64xbf16>, vector<64x64xbf16>, vector<2x64xf32> -> vector<2x64xf32>
    %114 = arith.addf %111, %113 : vector<2x64xf32>
    %115 = math.tanh %114 : vector<2x64xf32>
    %c0_54 = arith.constant 0 : index
    %c4_55 = arith.constant 4 : index
    %c0_56 = arith.constant 0 : index
    %116 = vector.load %arg20[%c0_54, %c4_55, %c0_56] : memref<2x8x64xf32, #tpu.memory_space<vmem>>, vector<2x1x64xf32>
    %117 = vector.shape_cast %116 : vector<2x1x64xf32> to vector<2x64xf32>
    %118 = vector.shape_cast %109 : vector<2x64xf32> to vector<2x1x64xf32>
    tpu.vector_store %arg20[%c0_54, %c4_55, %c0_56], %118 {strides = array<i32>} : memref<2x8x64xf32, #tpu.memory_space<vmem>>, vector<2x1x64xf32>,
    %c0_57 = arith.constant 0 : index
    %c3_58 = arith.constant 3 : index
    %c0_59 = arith.constant 0 : index
    %119 = vector.load %arg21[%c0_57, %c3_58, %c0_59] : memref<2x8x64xf32, #tpu.memory_space<vmem>>, vector<2x1x64xf32>
    %120 = vector.shape_cast %119 : vector<2x1x64xf32> to vector<2x64xf32>
    %121 = vector.shape_cast %115 : vector<2x64xf32> to vector<2x1x64xf32>
    tpu.vector_store %arg21[%c0_57, %c3_58, %c0_59], %121 {strides = array<i32>} : memref<2x8x64xf32, #tpu.memory_space<vmem>>, vector<2x1x64xf32>,
    %122 = vector.extract_strided_slice %28 {offsets = [0, 5, 0], sizes = [2, 1, 64], strides = [1, 1, 1]} : vector<2x8x64xf32> to vector<2x1x64xf32>
    %123 = vector.shape_cast %122 : vector<2x1x64xf32> to vector<2x64xf32>
    %124 = arith.truncf %109 : vector<2x64xf32> to vector<2x64xbf16>
    %cst_60 = arith.constant dense<0.000000e+00> : vector<2x64xf32>
    %125 = tpu.matmul %124, %21, %cst_60 {dimension_numbers = #tpu.dot_dimension_numbers<[1], [0], [0], [1], [0, 0, 1, 1], [], []>} : vector<2x64xbf16>, vector<64x64xbf16>, vector<2x64xf32> -> vector<2x64xf32>
    %126 = arith.addf %123, %125 : vector<2x64xf32>
    %127 = math.tanh %126 : vector<2x64xf32>
    %128 = vector.extract_strided_slice %29 {offsets = [0, 2, 0], sizes = [2, 1, 64], strides = [1, 1, 1]} : vector<2x8x64xf32> to vector<2x1x64xf32>
    %129 = vector.shape_cast %128 : vector<2x1x64xf32> to vector<2x64xf32>
    %130 = arith.truncf %115 : vector<2x64xf32> to vector<2x64xbf16>
    %cst_61 = arith.constant dense<0.000000e+00> : vector<2x64xf32>
    %131 = tpu.matmul %130, %22, %cst_61 {dimension_numbers = #tpu.dot_dimension_numbers<[1], [0], [0], [1], [0, 0, 1, 1], [], []>} : vector<2x64xbf16>, vector<64x64xbf16>, vector<2x64xf32> -> vector<2x64xf32>
    %132 = arith.addf %129, %131 : vector<2x64xf32>
    %133 = math.tanh %132 : vector<2x64xf32>
    %c0_62 = arith.constant 0 : index
    %c5_63 = arith.constant 5 : index
    %c0_64 = arith.constant 0 : index
    %134 = vector.load %arg20[%c0_62, %c5_63, %c0_64] : memref<2x8x64xf32, #tpu.memory_space<vmem>>, vector<2x1x64xf32>
    %135 = vector.shape_cast %134 : vector<2x1x64xf32> to vector<2x64xf32>
    %136 = vector.shape_cast %127 : vector<2x64xf32> to vector<2x1x64xf32>
    tpu.vector_store %arg20[%c0_62, %c5_63, %c0_64], %136 {strides = array<i32>} : memref<2x8x64xf32, #tpu.memory_space<vmem>>, vector<2x1x64xf32>,
    %c0_65 = arith.constant 0 : index
    %c2_66 = arith.constant 2 : index
    %c0_67 = arith.constant 0 : index
    %137 = vector.load %arg21[%c0_65, %c2_66, %c0_67] : memref<2x8x64xf32, #tpu.memory_space<vmem>>, vector<2x1x64xf32>
    %138 = vector.shape_cast %137 : vector<2x1x64xf32> to vector<2x64xf32>
    %139 = vector.shape_cast %133 : vector<2x64xf32> to vector<2x1x64xf32>
    tpu.vector_store %arg21[%c0_65, %c2_66, %c0_67], %139 {strides = array<i32>} : memref<2x8x64xf32, #tpu.memory_space<vmem>>, vector<2x1x64xf32>,
    %140 = vector.extract_strided_slice %28 {offsets = [0, 6, 0], sizes = [2, 1, 64], strides = [1, 1, 1]} : vector<2x8x64xf32> to vector<2x1x64xf32>
    %141 = vector.shape_cast %140 : vector<2x1x64xf32> to vector<2x64xf32>
    %142 = arith.truncf %127 : vector<2x64xf32> to vector<2x64xbf16>
    %cst_68 = arith.constant dense<0.000000e+00> : vector<2x64xf32>
    %143 = tpu.matmul %142, %21, %cst_68 {dimension_numbers = #tpu.dot_dimension_numbers<[1], [0], [0], [1], [0, 0, 1, 1], [], []>} : vector<2x64xbf16>, vector<64x64xbf16>, vector<2x64xf32> -> vector<2x64xf32>
    %144 = arith.addf %141, %143 : vector<2x64xf32>
    %145 = math.tanh %144 : vector<2x64xf32>
    %146 = vector.extract_strided_slice %29 {offsets = [0, 1, 0], sizes = [2, 1, 64], strides = [1, 1, 1]} : vector<2x8x64xf32> to vector<2x1x64xf32>
    %147 = vector.shape_cast %146 : vector<2x1x64xf32> to vector<2x64xf32>
    %148 = arith.truncf %133 : vector<2x64xf32> to vector<2x64xbf16>
    %cst_69 = arith.constant dense<0.000000e+00> : vector<2x64xf32>
    %149 = tpu.matmul %148, %22, %cst_69 {dimension_numbers = #tpu.dot_dimension_numbers<[1], [0], [0], [1], [0, 0, 1, 1], [], []>} : vector<2x64xbf16>, vector<64x64xbf16>, vector<2x64xf32> -> vector<2x64xf32>
    %150 = arith.addf %147, %149 : vector<2x64xf32>
    %151 = math.tanh %150 : vector<2x64xf32>
    %c0_70 = arith.constant 0 : index
    %c6_71 = arith.constant 6 : index
    %c0_72 = arith.constant 0 : index
    %152 = vector.load %arg20[%c0_70, %c6_71, %c0_72] : memref<2x8x64xf32, #tpu.memory_space<vmem>>, vector<2x1x64xf32>
    %153 = vector.shape_cast %152 : vector<2x1x64xf32> to vector<2x64xf32>
    %154 = vector.shape_cast %145 : vector<2x64xf32> to vector<2x1x64xf32>
    tpu.vector_store %arg20[%c0_70, %c6_71, %c0_72], %154 {strides = array<i32>} : memref<2x8x64xf32, #tpu.memory_space<vmem>>, vector<2x1x64xf32>,
    %c0_73 = arith.constant 0 : index
    %c1_74 = arith.constant 1 : index
    %c0_75 = arith.constant 0 : index
    %155 = vector.load %arg21[%c0_73, %c1_74, %c0_75] : memref<2x8x64xf32, #tpu.memory_space<vmem>>, vector<2x1x64xf32>
    %156 = vector.shape_cast %155 : vector<2x1x64xf32> to vector<2x64xf32>
    %157 = vector.shape_cast %151 : vector<2x64xf32> to vector<2x1x64xf32>
    tpu.vector_store %arg21[%c0_73, %c1_74, %c0_75], %157 {strides = array<i32>} : memref<2x8x64xf32, #tpu.memory_space<vmem>>, vector<2x1x64xf32>,
    %158 = vector.extract_strided_slice %28 {offsets = [0, 7, 0], sizes = [2, 1, 64], strides = [1, 1, 1]} : vector<2x8x64xf32> to vector<2x1x64xf32>
    %159 = vector.shape_cast %158 : vector<2x1x64xf32> to vector<2x64xf32>
    %160 = arith.truncf %145 : vector<2x64xf32> to vector<2x64xbf16>
    %cst_76 = arith.constant dense<0.000000e+00> : vector<2x64xf32>
    %161 = tpu.matmul %160, %21, %cst_76 {dimension_numbers = #tpu.dot_dimension_numbers<[1], [0], [0], [1], [0, 0, 1, 1], [], []>} : vector<2x64xbf16>, vector<64x64xbf16>, vector<2x64xf32> -> vector<2x64xf32>
    %162 = arith.addf %159, %161 : vector<2x64xf32>
    %163 = math.tanh %162 : vector<2x64xf32>
    %164 = vector.extract_strided_slice %29 {offsets = [0, 0, 0], sizes = [2, 1, 64], strides = [1, 1, 1]} : vector<2x8x64xf32> to vector<2x1x64xf32>
    %165 = vector.shape_cast %164 : vector<2x1x64xf32> to vector<2x64xf32>
    %166 = arith.truncf %151 : vector<2x64xf32> to vector<2x64xbf16>
    %cst_77 = arith.constant dense<0.000000e+00> : vector<2x64xf32>
    %167 = tpu.matmul %166, %22, %cst_77 {dimension_numbers = #tpu.dot_dimension_numbers<[1], [0], [0], [1], [0, 0, 1, 1], [], []>} : vector<2x64xbf16>, vector<64x64xbf16>, vector<2x64xf32> -> vector<2x64xf32>
    %168 = arith.addf %165, %167 : vector<2x64xf32>
    %169 = math.tanh %168 : vector<2x64xf32>
    %c0_78 = arith.constant 0 : index
    %c7_79 = arith.constant 7 : index
    %c0_80 = arith.constant 0 : index
    %170 = vector.load %arg20[%c0_78, %c7_79, %c0_80] : memref<2x8x64xf32, #tpu.memory_space<vmem>>, vector<2x1x64xf32>
    %171 = vector.shape_cast %170 : vector<2x1x64xf32> to vector<2x64xf32>
    %172 = vector.shape_cast %163 : vector<2x64xf32> to vector<2x1x64xf32>
    tpu.vector_store %arg20[%c0_78, %c7_79, %c0_80], %172 {strides = array<i32>} : memref<2x8x64xf32, #tpu.memory_space<vmem>>, vector<2x1x64xf32>,
    %c0_81 = arith.constant 0 : index
    %c0_82 = arith.constant 0 : index
    %c0_83 = arith.constant 0 : index
    %173 = vector.load %arg21[%c0_81, %c0_82, %c0_83] : memref<2x8x64xf32, #tpu.memory_space<vmem>>, vector<2x1x64xf32>
    %174 = vector.shape_cast %173 : vector<2x1x64xf32> to vector<2x64xf32>
    %175 = vector.shape_cast %169 : vector<2x64xf32> to vector<2x1x64xf32>
    tpu.vector_store %arg21[%c0_81, %c0_82, %c0_83], %175 {strides = array<i32>} : memref<2x8x64xf32, #tpu.memory_space<vmem>>, vector<2x1x64xf32>,
    %c0_84 = arith.constant 0 : index
    %c0_85 = arith.constant 0 : index
    %c0_86 = arith.constant 0 : index
    %176 = vector.load %arg20[%c0_84, %c0_85, %c0_86] : memref<2x8x64xf32, #tpu.memory_space<vmem>>, vector<2x8x64xf32>
    %c0_87 = arith.constant 0 : index
    %c0_88 = arith.constant 0 : index
    %c0_89 = arith.constant 0 : index
    %177 = vector.load %arg21[%c0_87, %c0_88, %c0_89] : memref<2x8x64xf32, #tpu.memory_space<vmem>>, vector<2x8x64xf32>
    %178 = tpu.concatenate %176, %177 in 2 : vector<2x8x64xf32>, vector<2x8x64xf32> -> vector<2x8x128xf32>
    %c0_90 = arith.constant 0 : index
    %c0_91 = arith.constant 0 : index
    %179 = vector.load %arg11[%c0_90, %c0_91] : memref<64x128xbf16, #tpu.memory_space<vmem>>, vector<64x128xbf16>
    %c0_92 = arith.constant 0 : index
    %c0_93 = arith.constant 0 : index
    %180 = vector.load %arg12[%c0_92, %c0_93] : memref<1x128xf32, #tpu.memory_space<vmem>>, vector<1x128xf32>
    %c0_94 = arith.constant 0 : index
    %c0_95 = arith.constant 0 : index
    %181 = vector.load %arg13[%c0_94, %c0_95] : memref<64x64xbf16, #tpu.memory_space<vmem>>, vector<64x64xbf16>
    %c0_96 = arith.constant 0 : index
    %c0_97 = arith.constant 0 : index
    %182 = vector.load %arg14[%c0_96, %c0_97] : memref<64x64xbf16, #tpu.memory_space<vmem>>, vector<64x64xbf16>
    %183 = vector.shape_cast %1 : vector<2x8x64xbf16> to vector<16x64xbf16>
    %cst_98 = arith.constant dense<0.000000e+00> : vector<16x128xf32>
    %184 = tpu.matmul %183, %179, %cst_98 {dimension_numbers = #tpu.dot_dimension_numbers<[1], [0], [0], [1], [0, 0, 1, 1], [], []>} : vector<16x64xbf16>, vector<64x128xbf16>, vector<16x128xf32> -> vector<16x128xf32>
    %185 = vector.broadcast %180 : vector<1x128xf32> to vector<16x128xf32>
    %186 = arith.addf %184, %185 : vector<16x128xf32>
    %187 = vector.shape_cast %186 : vector<16x128xf32> to vector<2x8x128xf32>
    %188 = vector.extract_strided_slice %187 {offsets = [0, 0, 0], sizes = [2, 8, 64], strides = [1, 1, 1]} : vector<2x8x128xf32> to vector<2x8x64xf32>
    %189 = vector.extract_strided_slice %187 {offsets = [0, 0, 64], sizes = [2, 8, 64], strides = [1, 1, 1]} : vector<2x8x128xf32> to vector<2x8x64xf32>
    %cst_99 = arith.constant 0.000000e+00 : f32
    %190 = vector.broadcast %cst_99 : f32 to vector<2x64xf32>
    %cst_100 = arith.constant 0.000000e+00 : f32
    %191 = vector.broadcast %cst_100 : f32 to vector<2x64xf32>
    %192 = vector.extract_strided_slice %188 {offsets = [0, 0, 0], sizes = [2, 1, 64], strides = [1, 1, 1]} : vector<2x8x64xf32> to vector<2x1x64xf32>
    %193 = vector.shape_cast %192 : vector<2x1x64xf32> to vector<2x64xf32>
    %194 = arith.truncf %190 : vector<2x64xf32> to vector<2x64xbf16>
    %cst_101 = arith.constant dense<0.000000e+00> : vector<2x64xf32>
    %195 = tpu.matmul %194, %181, %cst_101 {dimension_numbers = #tpu.dot_dimension_numbers<[1], [0], [0], [1], [0, 0, 1, 1], [], []>} : vector<2x64xbf16>, vector<64x64xbf16>, vector<2x64xf32> -> vector<2x64xf32>
    %196 = arith.addf %193, %195 : vector<2x64xf32>
    %197 = math.tanh %196 : vector<2x64xf32>
    %198 = vector.extract_strided_slice %189 {offsets = [0, 7, 0], sizes = [2, 1, 64], strides = [1, 1, 1]} : vector<2x8x64xf32> to vector<2x1x64xf32>
    %199 = vector.shape_cast %198 : vector<2x1x64xf32> to vector<2x64xf32>
    %200 = arith.truncf %191 : vector<2x64xf32> to vector<2x64xbf16>
    %cst_102 = arith.constant dense<0.000000e+00> : vector<2x64xf32>
    %201 = tpu.matmul %200, %182, %cst_102 {dimension_numbers = #tpu.dot_dimension_numbers<[1], [0], [0], [1], [0, 0, 1, 1], [], []>} : vector<2x64xbf16>, vector<64x64xbf16>, vector<2x64xf32> -> vector<2x64xf32>
    %202 = arith.addf %199, %201 : vector<2x64xf32>
    %203 = math.tanh %202 : vector<2x64xf32>
    %c0_103 = arith.constant 0 : index
    %c0_104 = arith.constant 0 : index
    %c0_105 = arith.constant 0 : index
    %204 = vector.load %arg22[%c0_103, %c0_104, %c0_105] : memref<2x8x64xf32, #tpu.memory_space<vmem>>, vector<2x1x64xf32>
    %205 = vector.shape_cast %204 : vector<2x1x64xf32> to vector<2x64xf32>
    %206 = vector.shape_cast %197 : vector<2x64xf32> to vector<2x1x64xf32>
    tpu.vector_store %arg22[%c0_103, %c0_104, %c0_105], %206 {strides = array<i32>} : memref<2x8x64xf32, #tpu.memory_space<vmem>>, vector<2x1x64xf32>,
    %c0_106 = arith.constant 0 : index
    %c7_107 = arith.constant 7 : index
    %c0_108 = arith.constant 0 : index
    %207 = vector.load %arg23[%c0_106, %c7_107, %c0_108] : memref<2x8x64xf32, #tpu.memory_space<vmem>>, vector<2x1x64xf32>
    %208 = vector.shape_cast %207 : vector<2x1x64xf32> to vector<2x64xf32>
    %209 = vector.shape_cast %203 : vector<2x64xf32> to vector<2x1x64xf32>
    tpu.vector_store %arg23[%c0_106, %c7_107, %c0_108], %209 {strides = array<i32>} : memref<2x8x64xf32, #tpu.memory_space<vmem>>, vector<2x1x64xf32>,
    %210 = vector.extract_strided_slice %188 {offsets = [0, 1, 0], sizes = [2, 1, 64], strides = [1, 1, 1]} : vector<2x8x64xf32> to vector<2x1x64xf32>
    %211 = vector.shape_cast %210 : vector<2x1x64xf32> to vector<2x64xf32>
    %212 = arith.truncf %197 : vector<2x64xf32> to vector<2x64xbf16>
    %cst_109 = arith.constant dense<0.000000e+00> : vector<2x64xf32>
    %213 = tpu.matmul %212, %181, %cst_109 {dimension_numbers = #tpu.dot_dimension_numbers<[1], [0], [0], [1], [0, 0, 1, 1], [], []>} : vector<2x64xbf16>, vector<64x64xbf16>, vector<2x64xf32> -> vector<2x64xf32>
    %214 = arith.addf %211, %213 : vector<2x64xf32>
    %215 = math.tanh %214 : vector<2x64xf32>
    %216 = vector.extract_strided_slice %189 {offsets = [0, 6, 0], sizes = [2, 1, 64], strides = [1, 1, 1]} : vector<2x8x64xf32> to vector<2x1x64xf32>
    %217 = vector.shape_cast %216 : vector<2x1x64xf32> to vector<2x64xf32>
    %218 = arith.truncf %203 : vector<2x64xf32> to vector<2x64xbf16>
    %cst_110 = arith.constant dense<0.000000e+00> : vector<2x64xf32>
    %219 = tpu.matmul %218, %182, %cst_110 {dimension_numbers = #tpu.dot_dimension_numbers<[1], [0], [0], [1], [0, 0, 1, 1], [], []>} : vector<2x64xbf16>, vector<64x64xbf16>, vector<2x64xf32> -> vector<2x64xf32>
    %220 = arith.addf %217, %219 : vector<2x64xf32>
    %221 = math.tanh %220 : vector<2x64xf32>
    %c0_111 = arith.constant 0 : index
    %c1_112 = arith.constant 1 : index
    %c0_113 = arith.constant 0 : index
    %222 = vector.load %arg22[%c0_111, %c1_112, %c0_113] : memref<2x8x64xf32, #tpu.memory_space<vmem>>, vector<2x1x64xf32>
    %223 = vector.shape_cast %222 : vector<2x1x64xf32> to vector<2x64xf32>
    %224 = vector.shape_cast %215 : vector<2x64xf32> to vector<2x1x64xf32>
    tpu.vector_store %arg22[%c0_111, %c1_112, %c0_113], %224 {strides = array<i32>} : memref<2x8x64xf32, #tpu.memory_space<vmem>>, vector<2x1x64xf32>,
    %c0_114 = arith.constant 0 : index
    %c6_115 = arith.constant 6 : index
    %c0_116 = arith.constant 0 : index
    %225 = vector.load %arg23[%c0_114, %c6_115, %c0_116] : memref<2x8x64xf32, #tpu.memory_space<vmem>>, vector<2x1x64xf32>
    %226 = vector.shape_cast %225 : vector<2x1x64xf32> to vector<2x64xf32>
    %227 = vector.shape_cast %221 : vector<2x64xf32> to vector<2x1x64xf32>
    tpu.vector_store %arg23[%c0_114, %c6_115, %c0_116], %227 {strides = array<i32>} : memref<2x8x64xf32, #tpu.memory_space<vmem>>, vector<2x1x64xf32>,
    %228 = vector.extract_strided_slice %188 {offsets = [0, 2, 0], sizes = [2, 1, 64], strides = [1, 1, 1]} : vector<2x8x64xf32> to vector<2x1x64xf32>
    %229 = vector.shape_cast %228 : vector<2x1x64xf32> to vector<2x64xf32>
    %230 = arith.truncf %215 : vector<2x64xf32> to vector<2x64xbf16>
    %cst_117 = arith.constant dense<0.000000e+00> : vector<2x64xf32>
    %231 = tpu.matmul %230, %181, %cst_117 {dimension_numbers = #tpu.dot_dimension_numbers<[1], [0], [0], [1], [0, 0, 1, 1], [], []>} : vector<2x64xbf16>, vector<64x64xbf16>, vector<2x64xf32> -> vector<2x64xf32>
    %232 = arith.addf %229, %231 : vector<2x64xf32>
    %233 = math.tanh %232 : vector<2x64xf32>
    %234 = vector.extract_strided_slice %189 {offsets = [0, 5, 0], sizes = [2, 1, 64], strides = [1, 1, 1]} : vector<2x8x64xf32> to vector<2x1x64xf32>
    %235 = vector.shape_cast %234 : vector<2x1x64xf32> to vector<2x64xf32>
    %236 = arith.truncf %221 : vector<2x64xf32> to vector<2x64xbf16>
    %cst_118 = arith.constant dense<0.000000e+00> : vector<2x64xf32>
    %237 = tpu.matmul %236, %182, %cst_118 {dimension_numbers = #tpu.dot_dimension_numbers<[1], [0], [0], [1], [0, 0, 1, 1], [], []>} : vector<2x64xbf16>, vector<64x64xbf16>, vector<2x64xf32> -> vector<2x64xf32>
    %238 = arith.addf %235, %237 : vector<2x64xf32>
    %239 = math.tanh %238 : vector<2x64xf32>
    %c0_119 = arith.constant 0 : index
    %c2_120 = arith.constant 2 : index
    %c0_121 = arith.constant 0 : index
    %240 = vector.load %arg22[%c0_119, %c2_120, %c0_121] : memref<2x8x64xf32, #tpu.memory_space<vmem>>, vector<2x1x64xf32>
    %241 = vector.shape_cast %240 : vector<2x1x64xf32> to vector<2x64xf32>
    %242 = vector.shape_cast %233 : vector<2x64xf32> to vector<2x1x64xf32>
    tpu.vector_store %arg22[%c0_119, %c2_120, %c0_121], %242 {strides = array<i32>} : memref<2x8x64xf32, #tpu.memory_space<vmem>>, vector<2x1x64xf32>,
    %c0_122 = arith.constant 0 : index
    %c5_123 = arith.constant 5 : index
    %c0_124 = arith.constant 0 : index
    %243 = vector.load %arg23[%c0_122, %c5_123, %c0_124] : memref<2x8x64xf32, #tpu.memory_space<vmem>>, vector<2x1x64xf32>
    %244 = vector.shape_cast %243 : vector<2x1x64xf32> to vector<2x64xf32>
    %245 = vector.shape_cast %239 : vector<2x64xf32> to vector<2x1x64xf32>
    tpu.vector_store %arg23[%c0_122, %c5_123, %c0_124], %245 {strides = array<i32>} : memref<2x8x64xf32, #tpu.memory_space<vmem>>, vector<2x1x64xf32>,
    %246 = vector.extract_strided_slice %188 {offsets = [0, 3, 0], sizes = [2, 1, 64], strides = [1, 1, 1]} : vector<2x8x64xf32> to vector<2x1x64xf32>
    %247 = vector.shape_cast %246 : vector<2x1x64xf32> to vector<2x64xf32>
    %248 = arith.truncf %233 : vector<2x64xf32> to vector<2x64xbf16>
    %cst_125 = arith.constant dense<0.000000e+00> : vector<2x64xf32>
    %249 = tpu.matmul %248, %181, %cst_125 {dimension_numbers = #tpu.dot_dimension_numbers<[1], [0], [0], [1], [0, 0, 1, 1], [], []>} : vector<2x64xbf16>, vector<64x64xbf16>, vector<2x64xf32> -> vector<2x64xf32>
    %250 = arith.addf %247, %249 : vector<2x64xf32>
    %251 = math.tanh %250 : vector<2x64xf32>
    %252 = vector.extract_strided_slice %189 {offsets = [0, 4, 0], sizes = [2, 1, 64], strides = [1, 1, 1]} : vector<2x8x64xf32> to vector<2x1x64xf32>
    %253 = vector.shape_cast %252 : vector<2x1x64xf32> to vector<2x64xf32>
    %254 = arith.truncf %239 : vector<2x64xf32> to vector<2x64xbf16>
    %cst_126 = arith.constant dense<0.000000e+00> : vector<2x64xf32>
    %255 = tpu.matmul %254, %182, %cst_126 {dimension_numbers = #tpu.dot_dimension_numbers<[1], [0], [0], [1], [0, 0, 1, 1], [], []>} : vector<2x64xbf16>, vector<64x64xbf16>, vector<2x64xf32> -> vector<2x64xf32>
    %256 = arith.addf %253, %255 : vector<2x64xf32>
    %257 = math.tanh %256 : vector<2x64xf32>
    %c0_127 = arith.constant 0 : index
    %c3_128 = arith.constant 3 : index
    %c0_129 = arith.constant 0 : index
    %258 = vector.load %arg22[%c0_127, %c3_128, %c0_129] : memref<2x8x64xf32, #tpu.memory_space<vmem>>, vector<2x1x64xf32>
    %259 = vector.shape_cast %258 : vector<2x1x64xf32> to vector<2x64xf32>
    %260 = vector.shape_cast %251 : vector<2x64xf32> to vector<2x1x64xf32>
    tpu.vector_store %arg22[%c0_127, %c3_128, %c0_129], %260 {strides = array<i32>} : memref<2x8x64xf32, #tpu.memory_space<vmem>>, vector<2x1x64xf32>,
    %c0_130 = arith.constant 0 : index
    %c4_131 = arith.constant 4 : index
    %c0_132 = arith.constant 0 : index
    %261 = vector.load %arg23[%c0_130, %c4_131, %c0_132] : memref<2x8x64xf32, #tpu.memory_space<vmem>>, vector<2x1x64xf32>
    %262 = vector.shape_cast %261 : vector<2x1x64xf32> to vector<2x64xf32>
    %263 = vector.shape_cast %257 : vector<2x64xf32> to vector<2x1x64xf32>
    tpu.vector_store %arg23[%c0_130, %c4_131, %c0_132], %263 {strides = array<i32>} : memref<2x8x64xf32, #tpu.memory_space<vmem>>, vector<2x1x64xf32>,
    %264 = vector.extract_strided_slice %188 {offsets = [0, 4, 0], sizes = [2, 1, 64], strides = [1, 1, 1]} : vector<2x8x64xf32> to vector<2x1x64xf32>
    %265 = vector.shape_cast %264 : vector<2x1x64xf32> to vector<2x64xf32>
    %266 = arith.truncf %251 : vector<2x64xf32> to vector<2x64xbf16>
    %cst_133 = arith.constant dense<0.000000e+00> : vector<2x64xf32>
    %267 = tpu.matmul %266, %181, %cst_133 {dimension_numbers = #tpu.dot_dimension_numbers<[1], [0], [0], [1], [0, 0, 1, 1], [], []>} : vector<2x64xbf16>, vector<64x64xbf16>, vector<2x64xf32> -> vector<2x64xf32>
    %268 = arith.addf %265, %267 : vector<2x64xf32>
    %269 = math.tanh %268 : vector<2x64xf32>
    %270 = vector.extract_strided_slice %189 {offsets = [0, 3, 0], sizes = [2, 1, 64], strides = [1, 1, 1]} : vector<2x8x64xf32> to vector<2x1x64xf32>
    %271 = vector.shape_cast %270 : vector<2x1x64xf32> to vector<2x64xf32>
    %272 = arith.truncf %257 : vector<2x64xf32> to vector<2x64xbf16>
    %cst_134 = arith.constant dense<0.000000e+00> : vector<2x64xf32>
    %273 = tpu.matmul %272, %182, %cst_134 {dimension_numbers = #tpu.dot_dimension_numbers<[1], [0], [0], [1], [0, 0, 1, 1], [], []>} : vector<2x64xbf16>, vector<64x64xbf16>, vector<2x64xf32> -> vector<2x64xf32>
    %274 = arith.addf %271, %273 : vector<2x64xf32>
    %275 = math.tanh %274 : vector<2x64xf32>
    %c0_135 = arith.constant 0 : index
    %c4_136 = arith.constant 4 : index
    %c0_137 = arith.constant 0 : index
    %276 = vector.load %arg22[%c0_135, %c4_136, %c0_137] : memref<2x8x64xf32, #tpu.memory_space<vmem>>, vector<2x1x64xf32>
    %277 = vector.shape_cast %276 : vector<2x1x64xf32> to vector<2x64xf32>
    %278 = vector.shape_cast %269 : vector<2x64xf32> to vector<2x1x64xf32>
    tpu.vector_store %arg22[%c0_135, %c4_136, %c0_137], %278 {strides = array<i32>} : memref<2x8x64xf32, #tpu.memory_space<vmem>>, vector<2x1x64xf32>,
    %c0_138 = arith.constant 0 : index
    %c3_139 = arith.constant 3 : index
    %c0_140 = arith.constant 0 : index
    %279 = vector.load %arg23[%c0_138, %c3_139, %c0_140] : memref<2x8x64xf32, #tpu.memory_space<vmem>>, vector<2x1x64xf32>
    %280 = vector.shape_cast %279 : vector<2x1x64xf32> to vector<2x64xf32>
    %281 = vector.shape_cast %275 : vector<2x64xf32> to vector<2x1x64xf32>
    tpu.vector_store %arg23[%c0_138, %c3_139, %c0_140], %281 {strides = array<i32>} : memref<2x8x64xf32, #tpu.memory_space<vmem>>, vector<2x1x64xf32>,
    %282 = vector.extract_strided_slice %188 {offsets = [0, 5, 0], sizes = [2, 1, 64], strides = [1, 1, 1]} : vector<2x8x64xf32> to vector<2x1x64xf32>
    %283 = vector.shape_cast %282 : vector<2x1x64xf32> to vector<2x64xf32>
    %284 = arith.truncf %269 : vector<2x64xf32> to vector<2x64xbf16>
    %cst_141 = arith.constant dense<0.000000e+00> : vector<2x64xf32>
    %285 = tpu.matmul %284, %181, %cst_141 {dimension_numbers = #tpu.dot_dimension_numbers<[1], [0], [0], [1], [0, 0, 1, 1], [], []>} : vector<2x64xbf16>, vector<64x64xbf16>, vector<2x64xf32> -> vector<2x64xf32>
    %286 = arith.addf %283, %285 : vector<2x64xf32>
    %287 = math.tanh %286 : vector<2x64xf32>
    %288 = vector.extract_strided_slice %189 {offsets = [0, 2, 0], sizes = [2, 1, 64], strides = [1, 1, 1]} : vector<2x8x64xf32> to vector<2x1x64xf32>
    %289 = vector.shape_cast %288 : vector<2x1x64xf32> to vector<2x64xf32>
    %290 = arith.truncf %275 : vector<2x64xf32> to vector<2x64xbf16>
    %cst_142 = arith.constant dense<0.000000e+00> : vector<2x64xf32>
    %291 = tpu.matmul %290, %182, %cst_142 {dimension_numbers = #tpu.dot_dimension_numbers<[1], [0], [0], [1], [0, 0, 1, 1], [], []>} : vector<2x64xbf16>, vector<64x64xbf16>, vector<2x64xf32> -> vector<2x64xf32>
    %292 = arith.addf %289, %291 : vector<2x64xf32>
    %293 = math.tanh %292 : vector<2x64xf32>
    %c0_143 = arith.constant 0 : index
    %c5_144 = arith.constant 5 : index
    %c0_145 = arith.constant 0 : index
    %294 = vector.load %arg22[%c0_143, %c5_144, %c0_145] : memref<2x8x64xf32, #tpu.memory_space<vmem>>, vector<2x1x64xf32>
    %295 = vector.shape_cast %294 : vector<2x1x64xf32> to vector<2x64xf32>
    %296 = vector.shape_cast %287 : vector<2x64xf32> to vector<2x1x64xf32>
    tpu.vector_store %arg22[%c0_143, %c5_144, %c0_145], %296 {strides = array<i32>} : memref<2x8x64xf32, #tpu.memory_space<vmem>>, vector<2x1x64xf32>,
    %c0_146 = arith.constant 0 : index
    %c2_147 = arith.constant 2 : index
    %c0_148 = arith.constant 0 : index
    %297 = vector.load %arg23[%c0_146, %c2_147, %c0_148] : memref<2x8x64xf32, #tpu.memory_space<vmem>>, vector<2x1x64xf32>
    %298 = vector.shape_cast %297 : vector<2x1x64xf32> to vector<2x64xf32>
    %299 = vector.shape_cast %293 : vector<2x64xf32> to vector<2x1x64xf32>
    tpu.vector_store %arg23[%c0_146, %c2_147, %c0_148], %299 {strides = array<i32>} : memref<2x8x64xf32, #tpu.memory_space<vmem>>, vector<2x1x64xf32>,
    %300 = vector.extract_strided_slice %188 {offsets = [0, 6, 0], sizes = [2, 1, 64], strides = [1, 1, 1]} : vector<2x8x64xf32> to vector<2x1x64xf32>
    %301 = vector.shape_cast %300 : vector<2x1x64xf32> to vector<2x64xf32>
    %302 = arith.truncf %287 : vector<2x64xf32> to vector<2x64xbf16>
    %cst_149 = arith.constant dense<0.000000e+00> : vector<2x64xf32>
    %303 = tpu.matmul %302, %181, %cst_149 {dimension_numbers = #tpu.dot_dimension_numbers<[1], [0], [0], [1], [0, 0, 1, 1], [], []>} : vector<2x64xbf16>, vector<64x64xbf16>, vector<2x64xf32> -> vector<2x64xf32>
    %304 = arith.addf %301, %303 : vector<2x64xf32>
    %305 = math.tanh %304 : vector<2x64xf32>
    %306 = vector.extract_strided_slice %189 {offsets = [0, 1, 0], sizes = [2, 1, 64], strides = [1, 1, 1]} : vector<2x8x64xf32> to vector<2x1x64xf32>
    %307 = vector.shape_cast %306 : vector<2x1x64xf32> to vector<2x64xf32>
    %308 = arith.truncf %293 : vector<2x64xf32> to vector<2x64xbf16>
    %cst_150 = arith.constant dense<0.000000e+00> : vector<2x64xf32>
    %309 = tpu.matmul %308, %182, %cst_150 {dimension_numbers = #tpu.dot_dimension_numbers<[1], [0], [0], [1], [0, 0, 1, 1], [], []>} : vector<2x64xbf16>, vector<64x64xbf16>, vector<2x64xf32> -> vector<2x64xf32>
    %310 = arith.addf %307, %309 : vector<2x64xf32>
    %311 = math.tanh %310 : vector<2x64xf32>
    %c0_151 = arith.constant 0 : index
    %c6_152 = arith.constant 6 : index
    %c0_153 = arith.constant 0 : index
    %312 = vector.load %arg22[%c0_151, %c6_152, %c0_153] : memref<2x8x64xf32, #tpu.memory_space<vmem>>, vector<2x1x64xf32>
    %313 = vector.shape_cast %312 : vector<2x1x64xf32> to vector<2x64xf32>
    %314 = vector.shape_cast %305 : vector<2x64xf32> to vector<2x1x64xf32>
    tpu.vector_store %arg22[%c0_151, %c6_152, %c0_153], %314 {strides = array<i32>} : memref<2x8x64xf32, #tpu.memory_space<vmem>>, vector<2x1x64xf32>,
    %c0_154 = arith.constant 0 : index
    %c1_155 = arith.constant 1 : index
    %c0_156 = arith.constant 0 : index
    %315 = vector.load %arg23[%c0_154, %c1_155, %c0_156] : memref<2x8x64xf32, #tpu.memory_space<vmem>>, vector<2x1x64xf32>
    %316 = vector.shape_cast %315 : vector<2x1x64xf32> to vector<2x64xf32>
    %317 = vector.shape_cast %311 : vector<2x64xf32> to vector<2x1x64xf32>
    tpu.vector_store %arg23[%c0_154, %c1_155, %c0_156], %317 {strides = array<i32>} : memref<2x8x64xf32, #tpu.memory_space<vmem>>, vector<2x1x64xf32>,
    %318 = vector.extract_strided_slice %188 {offsets = [0, 7, 0], sizes = [2, 1, 64], strides = [1, 1, 1]} : vector<2x8x64xf32> to vector<2x1x64xf32>
    %319 = vector.shape_cast %318 : vector<2x1x64xf32> to vector<2x64xf32>
    %320 = arith.truncf %305 : vector<2x64xf32> to vector<2x64xbf16>
    %cst_157 = arith.constant dense<0.000000e+00> : vector<2x64xf32>
    %321 = tpu.matmul %320, %181, %cst_157 {dimension_numbers = #tpu.dot_dimension_numbers<[1], [0], [0], [1], [0, 0, 1, 1], [], []>} : vector<2x64xbf16>, vector<64x64xbf16>, vector<2x64xf32> -> vector<2x64xf32>
    %322 = arith.addf %319, %321 : vector<2x64xf32>
    %323 = math.tanh %322 : vector<2x64xf32>
    %324 = vector.extract_strided_slice %189 {offsets = [0, 0, 0], sizes = [2, 1, 64], strides = [1, 1, 1]} : vector<2x8x64xf32> to vector<2x1x64xf32>
    %325 = vector.shape_cast %324 : vector<2x1x64xf32> to vector<2x64xf32>
    %326 = arith.truncf %311 : vector<2x64xf32> to vector<2x64xbf16>
    %cst_158 = arith.constant dense<0.000000e+00> : vector<2x64xf32>
    %327 = tpu.matmul %326, %182, %cst_158 {dimension_numbers = #tpu.dot_dimension_numbers<[1], [0], [0], [1], [0, 0, 1, 1], [], []>} : vector<2x64xbf16>, vector<64x64xbf16>, vector<2x64xf32> -> vector<2x64xf32>
    %328 = arith.addf %325, %327 : vector<2x64xf32>
    %329 = math.tanh %328 : vector<2x64xf32>
    %c0_159 = arith.constant 0 : index
    %c7_160 = arith.constant 7 : index
    %c0_161 = arith.constant 0 : index
    %330 = vector.load %arg22[%c0_159, %c7_160, %c0_161] : memref<2x8x64xf32, #tpu.memory_space<vmem>>, vector<2x1x64xf32>
    %331 = vector.shape_cast %330 : vector<2x1x64xf32> to vector<2x64xf32>
    %332 = vector.shape_cast %323 : vector<2x64xf32> to vector<2x1x64xf32>
    tpu.vector_store %arg22[%c0_159, %c7_160, %c0_161], %332 {strides = array<i32>} : memref<2x8x64xf32, #tpu.memory_space<vmem>>, vector<2x1x64xf32>,
    %c0_162 = arith.constant 0 : index
    %c0_163 = arith.constant 0 : index
    %c0_164 = arith.constant 0 : index
    %333 = vector.load %arg23[%c0_162, %c0_163, %c0_164] : memref<2x8x64xf32, #tpu.memory_space<vmem>>, vector<2x1x64xf32>
    %334 = vector.shape_cast %333 : vector<2x1x64xf32> to vector<2x64xf32>
    %335 = vector.shape_cast %329 : vector<2x64xf32> to vector<2x1x64xf32>
    tpu.vector_store %arg23[%c0_162, %c0_163, %c0_164], %335 {strides = array<i32>} : memref<2x8x64xf32, #tpu.memory_space<vmem>>, vector<2x1x64xf32>,
    %c0_165 = arith.constant 0 : index
    %c0_166 = arith.constant 0 : index
    %c0_167 = arith.constant 0 : index
    %336 = vector.load %arg22[%c0_165, %c0_166, %c0_167] : memref<2x8x64xf32, #tpu.memory_space<vmem>>, vector<2x8x64xf32>
    %c0_168 = arith.constant 0 : index
    %c0_169 = arith.constant 0 : index
    %c0_170 = arith.constant 0 : index
    %337 = vector.load %arg23[%c0_168, %c0_169, %c0_170] : memref<2x8x64xf32, #tpu.memory_space<vmem>>, vector<2x8x64xf32>
    %338 = tpu.concatenate %336, %337 in 2 : vector<2x8x64xf32>, vector<2x8x64xf32> -> vector<2x8x128xf32>
    %339 = arith.truncf %178 : vector<2x8x128xf32> to vector<2x8x128xbf16>
    %340 = arith.truncf %338 : vector<2x8x128xf32> to vector<2x8x128xbf16>
    %c0_171 = arith.constant 0 : index
    %c0_172 = arith.constant 0 : index
    %341 = vector.load %arg15[%c0_171, %c0_172] : memref<128x128xbf16, #tpu.memory_space<vmem>>, vector<128x128xbf16>
    %342 = vector.shape_cast %178 : vector<2x8x128xf32> to vector<16x128xf32>
    %343 = arith.truncf %342 : vector<16x128xf32> to vector<16x128xbf16>
    %cst_173 = arith.constant dense<0.000000e+00> : vector<16x128xf32>
    %344 = tpu.matmul %343, %341, %cst_173 {dimension_numbers = #tpu.dot_dimension_numbers<[1], [0], [0], [1], [0, 0, 1, 1], [], []>} : vector<16x128xbf16>, vector<128x128xbf16>, vector<16x128xf32> -> vector<16x128xf32>
    %345 = vector.shape_cast %344 : vector<16x128xf32> to vector<2x8x128xf32>
    %346 = arith.truncf %345 : vector<2x8x128xf32> to vector<2x8x128xbf16>
    "tpu.trace_start"() <{level = 10 : i32, message = "bqh,brh->bqr"}> : () -> ()
    %cst_174 = arith.constant dense<0.000000e+00> : vector<2x8x8xf32>
    %347 = tpu.matmul %346, %340, %cst_174 {dimension_numbers = #tpu.dot_dimension_numbers<[2], [2], [1], [1], [0, 0, 0, 1, 1, 1], [0], [0]>} : vector<2x8x128xbf16>, vector<2x8x128xbf16>, vector<2x8x8xf32> -> vector<2x8x8xf32>
    "tpu.trace_stop"() : () -> ()
    %cst_175 = arith.constant dense<0xFF800000> : vector<2x8xf32>
    %348 = vector.multi_reduction <maximumf>, %347, %cst_175 [2] : vector<2x8x8xf32> to vector<2x8xf32>
    %349 = vector.shape_cast %348 : vector<2x8xf32> to vector<2x8x1xf32>
    %350 = vector.broadcast %349 : vector<2x8x1xf32> to vector<2x8x8xf32>
    %351 = arith.subf %347, %350 : vector<2x8x8xf32>
    %352 = math.exp %351 : vector<2x8x8xf32>
    %cst_176 = arith.constant dense<0.000000e+00> : vector<2x8xf32>
    %353 = vector.multi_reduction <add>, %352, %cst_176 [2] : vector<2x8x8xf32> to vector<2x8xf32>
    %354 = vector.shape_cast %353 : vector<2x8xf32> to vector<2x8x1xf32>
    %355 = tpu.reciprocal %354 {approx = true} : vector<2x8x1xf32> -> vector<2x8x1xf32>
    %356 = vector.broadcast %355 : vector<2x8x1xf32> to vector<2x8x8xf32>
    %357 = arith.mulf %352, %356 : vector<2x8x8xf32>
    %358 = arith.truncf %357 : vector<2x8x8xf32> to vector<2x8x8xbf16>
    "tpu.trace_start"() <{level = 10 : i32, message = "bqr,brh->bqh"}> : () -> ()
    %cst_177 = arith.constant dense<0.000000e+00> : vector<2x8x128xf32>
    %359 = tpu.matmul %358, %340, %cst_177 {dimension_numbers = #tpu.dot_dimension_numbers<[2], [1], [1], [2], [0, 0, 0, 1, 1, 2], [0], [0]>} : vector<2x8x8xbf16>, vector<2x8x128xbf16>, vector<2x8x128xf32> -> vector<2x8x128xf32>
    "tpu.trace_stop"() : () -> ()
    %cst_178 = arith.constant dense<0xFF800000> : vector<2x8xf32>
    %360 = vector.multi_reduction <maximumf>, %347, %cst_178 [1] : vector<2x8x8xf32> to vector<2x8xf32>
    %361 = vector.shape_cast %360 : vector<2x8xf32> to vector<2x1x8xf32>
    %362 = vector.broadcast %361 : vector<2x1x8xf32> to vector<2x8x8xf32>
    %363 = arith.subf %347, %362 : vector<2x8x8xf32>
    %364 = math.exp %363 : vector<2x8x8xf32>
    %cst_179 = arith.constant dense<0.000000e+00> : vector<2x8xf32>
    %365 = vector.multi_reduction <add>, %364, %cst_179 [1] : vector<2x8x8xf32> to vector<2x8xf32>
    %366 = vector.shape_cast %365 : vector<2x8xf32> to vector<2x1x8xf32>
    %367 = tpu.reciprocal %366 {approx = true} : vector<2x1x8xf32> -> vector<2x1x8xf32>
    %368 = vector.broadcast %367 : vector<2x1x8xf32> to vector<2x8x8xf32>
    %369 = arith.mulf %364, %368 : vector<2x8x8xf32>
    %370 = arith.truncf %369 : vector<2x8x8xf32> to vector<2x8x8xbf16>
    "tpu.trace_start"() <{level = 10 : i32, message = "bqr,bqh->brh"}> : () -> ()
    %cst_180 = arith.constant dense<0.000000e+00> : vector<2x8x128xf32>
    %371 = tpu.matmul %370, %339, %cst_180 {dimension_numbers = #tpu.dot_dimension_numbers<[1], [1], [2], [2], [0, 0, 0, 2, 1, 2], [0], [0]>} : vector<2x8x8xbf16>, vector<2x8x128xbf16>, vector<2x8x128xf32> -> vector<2x8x128xf32>
    "tpu.trace_stop"() : () -> ()
    %372 = arith.mulf %359, %178 : vector<2x8x128xf32>
    %373 = tpu.concatenate %359, %178, %372 in 2 : vector<2x8x128xf32>, vector<2x8x128xf32>, vector<2x8x128xf32> -> vector<2x8x384xf32>
    %c0_181 = arith.constant 0 : index
    %c0_182 = arith.constant 0 : index
    %374 = vector.load %arg16[%c0_181, %c0_182] : memref<384x192xbf16, #tpu.memory_space<vmem>>, vector<384x192xbf16>
    %375 = vector.shape_cast %373 : vector<2x8x384xf32> to vector<16x384xf32>
    %376 = arith.truncf %375 : vector<16x384xf32> to vector<16x384xbf16>
    %cst_183 = arith.constant dense<0.000000e+00> : vector<16x192xf32>
    %377 = tpu.matmul %376, %374, %cst_183 {dimension_numbers = #tpu.dot_dimension_numbers<[1], [0], [0], [1], [0, 0, 1, 1], [], []>} : vector<16x384xbf16>, vector<384x192xbf16>, vector<16x192xf32> -> vector<16x192xf32>
    %378 = vector.shape_cast %377 : vector<16x192xf32> to vector<2x8x192xf32>
    %cst_184 = arith.constant 0.000000e+00 : f32
    %379 = vector.broadcast %cst_184 : f32 to vector<2x8x192xf32>
    %380 = arith.maximumf %378, %379 : vector<2x8x192xf32>
    %381 = tpu.concatenate %380, %359, %178 in 2 : vector<2x8x192xf32>, vector<2x8x128xf32>, vector<2x8x128xf32> -> vector<2x8x448xf32>
    %c0_185 = arith.constant 0 : index
    %c0_186 = arith.constant 0 : index
    %382 = vector.load %arg17[%c0_185, %c0_186] : memref<448x128xbf16, #tpu.memory_space<vmem>>, vector<448x128xbf16>
    %383 = vector.shape_cast %381 : vector<2x8x448xf32> to vector<16x448xf32>
    %384 = arith.truncf %383 : vector<16x448xf32> to vector<16x448xbf16>
    %cst_187 = arith.constant dense<0.000000e+00> : vector<16x128xf32>
    %385 = tpu.matmul %384, %382, %cst_187 {dimension_numbers = #tpu.dot_dimension_numbers<[1], [0], [0], [1], [0, 0, 1, 1], [], []>} : vector<16x448xbf16>, vector<448x128xbf16>, vector<16x128xf32> -> vector<16x128xf32>
    %386 = vector.shape_cast %385 : vector<16x128xf32> to vector<2x8x128xf32>
    %c0_188 = arith.constant 0 : index
    %c0_189 = arith.constant 0 : index
    %387 = vector.load %arg18[%c0_188, %c0_189] : memref<128x128xbf16, #tpu.memory_space<vmem>>, vector<128x128xbf16>
    %388 = vector.shape_cast %371 : vector<2x8x128xf32> to vector<16x128xf32>
    %389 = arith.truncf %388 : vector<16x128xf32> to vector<16x128xbf16>
    %cst_190 = arith.constant dense<0.000000e+00> : vector<16x128xf32>
    %390 = tpu.matmul %389, %387, %cst_190 {dimension_numbers = #tpu.dot_dimension_numbers<[1], [0], [0], [1], [0, 0, 1, 1], [], []>} : vector<16x128xbf16>, vector<128x128xbf16>, vector<16x128xf32> -> vector<16x128xf32>
    %391 = vector.shape_cast %390 : vector<16x128xf32> to vector<2x8x128xf32>
    %cst_191 = arith.constant dense<0xFF800000> : vector<2x128xf32>
    %392 = vector.multi_reduction <maximumf>, %386, %cst_191 [1] : vector<2x8x128xf32> to vector<2x128xf32>
    %cst_192 = arith.constant dense<0xFF800000> : vector<2x128xf32>
    %393 = vector.multi_reduction <maximumf>, %391, %cst_192 [1] : vector<2x8x128xf32> to vector<2x128xf32>
    %394 = arith.mulf %392, %393 : vector<2x128xf32>
    %cst_193 = arith.constant dense<0.000000e+00> : vector<2xf32>
    %395 = vector.multi_reduction <add>, %394, %cst_193 [1] : vector<2x128xf32> to vector<2xf32>
    %396 = vector.shape_cast %395 : vector<2xf32> to vector<2x1xf32>
    %397 = arith.mulf %392, %392 : vector<2x128xf32>
    %cst_194 = arith.constant dense<0.000000e+00> : vector<2xf32>
    %398 = vector.multi_reduction <add>, %397, %cst_194 [1] : vector<2x128xf32> to vector<2xf32>
    %399 = vector.shape_cast %398 : vector<2xf32> to vector<2x1xf32>
    %400 = math.sqrt %399 : vector<2x1xf32>
    %cst_195 = arith.constant 9.99999997E-7 : f32
    %401 = vector.broadcast %cst_195 : f32 to vector<2x1xf32>
    %402 = arith.maximumf %400, %401 : vector<2x1xf32>
    %403 = arith.mulf %393, %393 : vector<2x128xf32>
    %cst_196 = arith.constant dense<0.000000e+00> : vector<2xf32>
    %404 = vector.multi_reduction <add>, %403, %cst_196 [1] : vector<2x128xf32> to vector<2xf32>
    %405 = vector.shape_cast %404 : vector<2xf32> to vector<2x1xf32>
    %406 = math.sqrt %405 : vector<2x1xf32>
    %cst_197 = arith.constant 9.99999997E-7 : f32
    %407 = vector.broadcast %cst_197 : f32 to vector<2x1xf32>
    %408 = arith.maximumf %406, %407 : vector<2x1xf32>
    %409 = arith.mulf %402, %408 : vector<2x1xf32>
    %410 = arith.divf %396, %409 : vector<2x1xf32>
    %411 = tpu.iota {dimensions = array<i32: 2>} : vector<2x1x128xi32>
    %c0_i32 = arith.constant 0 : i32
    %412 = vector.broadcast %c0_i32 : i32 to vector<2x1x128xi32>
    %413 = arith.cmpi eq, %411, %412 : vector<2x1x128xi32>
    %414 = vector.shape_cast %410 : vector<2x1xf32> to vector<2x1x1xf32>
    %c1_i32 = arith.constant 1 : i32
    %415 = vector.broadcast %c1_i32 : i32 to vector<2x1x128xi32>
    %416 = arith.cmpi eq, %411, %415 : vector<2x1x128xi32>
    %417 = vector.shape_cast %18 : vector<2x1xf32> to vector<2x1x1xf32>
    %cst_198 = arith.constant 0.000000e+00 : f32
    %418 = vector.shape_cast %417 : vector<2x1x1xf32> to vector<2x1x1xf32>
    %419 = vector.broadcast %418 : vector<2x1x1xf32> to vector<2x1x128xf32>
    %420 = vector.broadcast %cst_198 : f32 to vector<2x1x128xf32>
    %421 = arith.select %416, %419, %420 : vector<2x1x128xi1>, vector<2x1x128xf32>
    %422 = vector.shape_cast %414 : vector<2x1x1xf32> to vector<2x1x1xf32>
    %423 = vector.broadcast %422 : vector<2x1x1xf32> to vector<2x1x128xf32>
    %424 = arith.select %413, %423, %421 : vector<2x1x128xi1>, vector<2x1x128xf32>
    %c0_199 = arith.constant 0 : index
    %c0_200 = arith.constant 0 : index
    %c0_201 = arith.constant 0 : index
    %425 = vector.load %arg19[%c0_199, %c0_200, %c0_201] : memref<2x1x128xf32, #tpu.memory_space<vmem>>, vector<2x1x128xf32>
    tpu.vector_store %arg19[%c0_199, %c0_200, %c0_201], %424 {strides = array<i32>} : memref<2x1x128xf32, #tpu.memory_space<vmem>>, vector<2x1x128xf32>,
    return
  }
  func.func @transform_0(%arg0: i32) -> (i32, i32, i32) {
    %c0_i32 = arith.constant 0 : i32
    %c0_i32_0 = arith.constant 0 : i32
    %c0_i32_1 = arith.constant 0 : i32
    return %arg0, %c0_i32, %c0_i32_0 : i32, i32, i32
  }
  func.func @transform_1(%arg0: i32) -> (i32, i32, i32) {
    %c0_i32 = arith.constant 0 : i32
    %c0_i32_0 = arith.constant 0 : i32
    %c0_i32_1 = arith.constant 0 : i32
    return %arg0, %c0_i32, %c0_i32_0 : i32, i32, i32
  }
  func.func @transform_2(%arg0: i32) -> (i32, i32, i32) {
    %c0_i32 = arith.constant 0 : i32
    %c0_i32_0 = arith.constant 0 : i32
    %c0_i32_1 = arith.constant 0 : i32
    return %arg0, %c0_i32, %c0_i32_0 : i32, i32, i32
  }
  func.func @transform_3(%arg0: i32) -> (i32, i32) {
    %c0_i32 = arith.constant 0 : i32
    %c0_i32_0 = arith.constant 0 : i32
    %c0_i32_1 = arith.constant 0 : i32
    return %c0_i32, %c0_i32_0 : i32, i32
  }
  func.func @transform_4(%arg0: i32) -> (i32, i32) {
    %c0_i32 = arith.constant 0 : i32
    %c0_i32_0 = arith.constant 0 : i32
    %c0_i32_1 = arith.constant 0 : i32
    return %c0_i32, %c0_i32_0 : i32, i32
  }
  func.func @transform_5(%arg0: i32) -> (i32, i32) {
    %c0_i32 = arith.constant 0 : i32
    %c0_i32_0 = arith.constant 0 : i32
    %c0_i32_1 = arith.constant 0 : i32
    return %c0_i32, %c0_i32_0 : i32, i32
  }
  func.func @transform_6(%arg0: i32) -> (i32, i32) {
    %c0_i32 = arith.constant 0 : i32
    %c0_i32_0 = arith.constant 0 : i32
    %c0_i32_1 = arith.constant 0 : i32
    return %c0_i32, %c0_i32_0 : i32, i32
  }
  func.func @transform_7(%arg0: i32) -> (i32, i32) {
    %c0_i32 = arith.constant 0 : i32
    %c0_i32_0 = arith.constant 0 : i32
    %c0_i32_1 = arith.constant 0 : i32
    return %c0_i32, %c0_i32_0 : i32, i32
  }
  func.func @transform_8(%arg0: i32) -> (i32, i32) {
    %c0_i32 = arith.constant 0 : i32
    %c0_i32_0 = arith.constant 0 : i32
    %c0_i32_1 = arith.constant 0 : i32
    return %c0_i32, %c0_i32_0 : i32, i32
  }
  func.func @transform_9(%arg0: i32) -> (i32, i32) {
    %c0_i32 = arith.constant 0 : i32
    %c0_i32_0 = arith.constant 0 : i32
    %c0_i32_1 = arith.constant 0 : i32
    return %c0_i32, %c0_i32_0 : i32, i32
  }
  func.func @transform_10(%arg0: i32) -> (i32, i32) {
    %c0_i32 = arith.constant 0 : i32
    %c0_i32_0 = arith.constant 0 : i32
    %c0_i32_1 = arith.constant 0 : i32
    return %c0_i32, %c0_i32_0 : i32, i32
  }
  func.func @transform_11(%arg0: i32) -> (i32, i32) {
    %c0_i32 = arith.constant 0 : i32
    %c0_i32_0 = arith.constant 0 : i32
    %c0_i32_1 = arith.constant 0 : i32
    return %c0_i32, %c0_i32_0 : i32, i32
  }
  func.func @transform_12(%arg0: i32) -> (i32, i32) {
    %c0_i32 = arith.constant 0 : i32
    %c0_i32_0 = arith.constant 0 : i32
    %c0_i32_1 = arith.constant 0 : i32
    return %c0_i32, %c0_i32_0 : i32, i32
  }
  func.func @transform_13(%arg0: i32) -> (i32, i32) {
    %c0_i32 = arith.constant 0 : i32
    %c0_i32_0 = arith.constant 0 : i32
    %c0_i32_1 = arith.constant 0 : i32
    return %c0_i32, %c0_i32_0 : i32, i32
  }
  func.func @transform_14(%arg0: i32) -> (i32, i32) {
    %c0_i32 = arith.constant 0 : i32
    %c0_i32_0 = arith.constant 0 : i32
    %c0_i32_1 = arith.constant 0 : i32
    return %c0_i32, %c0_i32_0 : i32, i32
  }
  func.func @transform_15(%arg0: i32) -> (i32, i32) {
    %c0_i32 = arith.constant 0 : i32
    %c0_i32_0 = arith.constant 0 : i32
    %c0_i32_1 = arith.constant 0 : i32
    return %c0_i32, %c0_i32_0 : i32, i32
  }
  func.func @transform_16(%arg0: i32) -> (i32, i32) {
    %c0_i32 = arith.constant 0 : i32
    %c0_i32_0 = arith.constant 0 : i32
    %c0_i32_1 = arith.constant 0 : i32
    return %c0_i32, %c0_i32_0 : i32, i32
  }
  func.func @transform_17(%arg0: i32) -> (i32, i32) {
    %c0_i32 = arith.constant 0 : i32
    %c0_i32_0 = arith.constant 0 : i32
    %c0_i32_1 = arith.constant 0 : i32
    return %c0_i32, %c0_i32_0 : i32, i32
  }
  func.func @transform_18(%arg0: i32) -> (i32, i32, i32) {
    %c0_i32 = arith.constant 0 : i32
    %c0_i32_0 = arith.constant 0 : i32
    %c0_i32_1 = arith.constant 0 : i32
    return %arg0, %c0_i32, %c0_i32_0 : i32, i32, i32
  }
}

</mosaic_0001>

<llo_original>
// kernel: tpu_custom_call.1
$region0: #{tpu_custom_call.1}
  #allocation0 [shape = 'u32[]', space=smem, size = 0x4, offset = 0x4, fixed_abs, tag = 'smem constant byte address 0x4 - core index']
  #allocation1 [shape = 'u32[144,128]{1,0:T(1,128)}', space=vmem, size = 0x12000, scoped, tag = 'internal scratch']
  #allocation2 [shape = 'f32[2,8,64]{2,1,0:T(8,128)}', space=vmem, size = 0x2000, scoped, tag = 'scratch operand']
  #allocation3 [shape = 'f32[2,8,64]{2,1,0:T(8,128)}', space=vmem, size = 0x2000, scoped, tag = 'scratch operand']
  #allocation4 [shape = 'f32[2,8,64]{2,1,0:T(8,128)}', space=vmem, size = 0x2000, scoped, tag = 'scratch operand']
  #allocation5 [shape = 'f32[2,8,64]{2,1,0:T(8,128)}', space=vmem, size = 0x2000, scoped, tag = 'scratch operand']
  %s0 = inlined_call_operand.vmem [shape: bf16[4,8,64], index: 0, kind: input, shape index: {}]
  %s1 = inlined_call_operand.vmem [shape: bf16[4,8,64], index: 1, kind: input, shape index: {}]
  %s2 = inlined_call_operand.vmem [shape: bf16[4,1,112], index: 2, kind: input, shape index: {}]
  %s3 = inlined_call_operand.vmem [shape: bf16[112,128], index: 3, kind: input, shape index: {}]
  %s4 = inlined_call_operand.vmem [shape: f32[1,128], index: 4, kind: input, shape index: {}]
  %s5 = inlined_call_operand.vmem [shape: f32[1,128], index: 5, kind: input, shape index: {}]
  %s6 = inlined_call_operand.vmem [shape: bf16[64,128], index: 6, kind: input, shape index: {}]
  %s7 = inlined_call_operand.vmem [shape: f32[1,128], index: 7, kind: input, shape index: {}]
  %s8 = inlined_call_operand.vmem [shape: bf16[64,64], index: 8, kind: input, shape index: {}]
  %s9 = inlined_call_operand.vmem [shape: bf16[64,64], index: 9, kind: input, shape index: {}]
  %s10 = inlined_call_operand.vmem [shape: bf16[64,128], index: 10, kind: input, shape index: {}]
  %s11 = inlined_call_operand.vmem [shape: f32[1,128], index: 11, kind: input, shape index: {}]
  %s12 = inlined_call_operand.vmem [shape: bf16[64,64], index: 12, kind: input, shape index: {}]
  %s13 = inlined_call_operand.vmem [shape: bf16[64,64], index: 13, kind: input, shape index: {}]
  %s14 = inlined_call_operand.vmem [shape: bf16[128,128], index: 14, kind: input, shape index: {}]
  %s15 = inlined_call_operand.vmem [shape: bf16[384,192], index: 15, kind: input, shape index: {}]
  %s16 = inlined_call_operand.vmem [shape: bf16[448,128], index: 16, kind: input, shape index: {}]
  %s17 = inlined_call_operand.vmem [shape: bf16[128,128], index: 17, kind: input, shape index: {}]
  %s18 = inlined_call_operand.hbm [shape: f32[4,1,128], index: 18, kind: output, shape index: {}]
  %s19 = sld [smem:[#allocation0]]
  $region105: #{tpu_custom_call.1} parent=0
    _
  %s21 = ssub.s32 1, %s19
  %s22 = scalar_select 0, %s21, %s19
  $region1: #{tpu_custom_call.1} parent=0
    #allocation6 [shape = 'u8[2048]{0}', space=vmem, size = 0x800, scoped, tag = 'output window, operand 0']
    #allocation7 [shape = 's32[2]{0}', space=sflag, size = 0x8, scoped, tag = 'scoped memory for tpu_custom_call.1']
    %23 = vsyncpa [#allocation7], 0
    %s24 = scalar_lea.sflag [#allocation7], 1
    %25 = vsyncpa %s24, 0
    loop: start=0, step=1, limit=4
    $region2: #{tpu_custom_call.1} parent=1 // loop_pre_header
      _
    $region3: #{tpu_custom_call.1} parent=1 // loop_header
      %s27 = sphi 0, %s31
      %p28 = scmp.ge.s32.totalorder %s27, 4
      %s37 = sphi 0, %s39
      %s40 = sphi 0, %s37
      %s41 = sphi 0, %s40
      %s57 = sphi 0, %s41
      %s63 = sphi 0, %s65
      %s66 = sphi 0, %s63
      %s67 = sphi 0, %s66
      %s83 = sphi 0, %s67
      %s89 = sphi 0, %s91
      %s92 = sphi 0, %s89
      %s93 = sphi 0, %s92
      %s109 = sphi 0, %s93
      %s113 = sphi 0, %s113
      %s115 = sphi 0, %s113
      %s116 = sphi 0, %s115
      %s130 = sphi 0, %s116
      %s134 = sphi 0, %s134
      %s136 = sphi 0, %s134
      %s137 = sphi 0, %s136
      %s151 = sphi 0, %s137
      %s155 = sphi 0, %s155
      %s157 = sphi 0, %s155
      %s158 = sphi 0, %s157
      %s172 = sphi 0, %s158
      %s176 = sphi 0, %s176
      %s178 = sphi 0, %s176
      %s179 = sphi 0, %s178
      %s193 = sphi 0, %s179
      %s197 = sphi 0, %s197
      %s199 = sphi 0, %s197
      %s200 = sphi 0, %s199
      %s214 = sphi 0, %s200
      %s218 = sphi 0, %s218
      %s220 = sphi 0, %s218
      %s221 = sphi 0, %s220
      %s235 = sphi 0, %s221
      %s239 = sphi 0, %s239
      %s241 = sphi 0, %s239
      %s242 = sphi 0, %s241
      %s256 = sphi 0, %s242
      %s260 = sphi 0, %s260
      %s262 = sphi 0, %s260
      %s263 = sphi 0, %s262
      %s277 = sphi 0, %s263
      %s281 = sphi 0, %s281
      %s283 = sphi 0, %s281
      %s284 = sphi 0, %s283
      %s298 = sphi 0, %s284
      %s302 = sphi 0, %s302
      %s304 = sphi 0, %s302
      %s305 = sphi 0, %s304
      %s319 = sphi 0, %s305
      %s323 = sphi 0, %s323
      %s325 = sphi 0, %s323
      %s326 = sphi 0, %s325
      %s340 = sphi 0, %s326
      %s344 = sphi 0, %s344
      %s346 = sphi 0, %s344
      %s347 = sphi 0, %s346
      %s361 = sphi 0, %s347
      %s365 = sphi 0, %s365
      %s367 = sphi 0, %s365
      %s368 = sphi 0, %s367
      %s382 = sphi 0, %s368
      %s386 = sphi 0, %s386
      %s388 = sphi 0, %s386
      %s389 = sphi 0, %s388
      %s403 = sphi 0, %s389
      %s407 = sphi 0, %s407
      %s409 = sphi 0, %s407
      %s410 = sphi 0, %s409
      %s424 = sphi 0, %s410
      %s430 = sphi 0, %s432
      %s433 = sphi 0, %s430
      %s434 = sphi 0, %s433
      %s450 = sphi 0, %s434
    $region4: #{tpu_custom_call.1} parent=1 // loop_header_branch
      %30 = sbr.rel (%p28) target = $region8
    $region5: #{tpu_custom_call.1} parent=1 // loop_body
      %s32 = ssub.s32 %s27, 1
      %s33 = ssub.s32 %s27, 2
      %s34 = sadd.s32 %s27, 1
      %s35 = ssub.s32 %s27, %s34
      %p36 = scmp.eq.s32.totalorder %s35, 0
      %s38 = sadd.s32 %s37, 1
      %s39 = scalar_select %p36, %s37, %s38
      %p42 = pneg %p36
      %p43 = scmp.eq.s32.totalorder %s27, 1
      %p44 = por %p42, %p43
      %p45 = scmp.ne.s32.totalorder %s37, %s40
      %p46 = scmp.eq.s32.totalorder %s27, 0
      %p47 = por %p45, %p46
      %p48 = scmp.ne.s32.totalorder %s37, %s40
      %p49 = scmp.eq.s32.totalorder %s32, 1
      %p50 = por %p48, %p49
      %p51 = scmp.ne.s32.totalorder %s40, %s41
      %p52 = scmp.eq.s32.totalorder %s32, 0
      %p53 = por %p51, %p52
      %p54 = scmp.ne.s32.totalorder %s40, %s41
      %p55 = scmp.eq.s32.totalorder %s33, 1
      %p56 = por %p54, %p55
      %p58 = scmp.ne.s32.totalorder %s41, %s57
      %p59 = scmp.eq.s32.totalorder %s33, 0
      %p60 = por %p58, %p59
      %s61 = ssub.s32 %s27, %s34
      %p62 = scmp.eq.s32.totalorder %s61, 0
      %s64 = sadd.s32 %s63, 1
      %s65 = scalar_select %p62, %s63, %s64
      %p68 = pneg %p62
      %p69 = scmp.eq.s32.totalorder %s27, 1
      %p70 = por %p68, %p69
      %p71 = scmp.ne.s32.totalorder %s63, %s66
      %p72 = scmp.eq.s32.totalorder %s27, 0
      %p73 = por %p71, %p72
      %p74 = scmp.ne.s32.totalorder %s63, %s66
      %p75 = scmp.eq.s32.totalorder %s32, 1
      %p76 = por %p74, %p75
      %p77 = scmp.ne.s32.totalorder %s66, %s67
      %p78 = scmp.eq.s32.totalorder %s32, 0
      %p79 = por %p77, %p78
      %p80 = scmp.ne.s32.totalorder %s66, %s67
      %p81 = scmp.eq.s32.totalorder %s33, 1
      %p82 = por %p80, %p81
      %p84 = scmp.ne.s32.totalorder %s67, %s83
      %p85 = scmp.eq.s32.totalorder %s33, 0
      %p86 = por %p84, %p85
      %s87 = ssub.s32 %s27, %s34
      %p88 = scmp.eq.s32.totalorder %s87, 0
      %s90 = sadd.s32 %s89, 1
      %s91 = scalar_select %p88, %s89, %s90
      %p94 = pneg %p88
      %p95 = scmp.eq.s32.totalorder %s27, 1
      %p96 = por %p94, %p95
      %p97 = scmp.ne.s32.totalorder %s89, %s92
      %p98 = scmp.eq.s32.totalorder %s27, 0
      %p99 = por %p97, %p98
      %p100 = scmp.ne.s32.totalorder %s89, %s92
      %p101 = scmp.eq.s32.totalorder %s32, 1
      %p102 = por %p100, %p101
      %p103 = scmp.ne.s32.totalorder %s92, %s93
      %p104 = scmp.eq.s32.totalorder %s32, 0
      %p105 = por %p103, %p104
      %p106 = scmp.ne.s32.totalorder %s92, %s93
      %p107 = scmp.eq.s32.totalorder %s33, 1
      %p108 = por %p106, %p107
      %p110 = scmp.ne.s32.totalorder %s93, %s109
      %p111 = scmp.eq.s32.totalorder %s33, 0
      %p112 = por %p110, %p111
      %s114 = sadd.s32 %s113, 1
      %p117 = scmp.eq.s32.totalorder %s27, 1
      %p118 = scmp.ne.s32.totalorder %s113, %s115
      %p119 = scmp.eq.s32.totalorder %s27, 0
      %p120 = por %p118, %p119
      %p121 = scmp.ne.s32.totalorder %s113, %s115
      %p122 = scmp.eq.s32.totalorder %s32, 1
      %p123 = por %p121, %p122
      %p124 = scmp.ne.s32.totalorder %s115, %s116
      %p125 = scmp.eq.s32.totalorder %s32, 0
      %p126 = por %p124, %p125
      %p127 = scmp.ne.s32.totalorder %s115, %s116
      %p128 = scmp.eq.s32.totalorder %s33, 1
      %p129 = por %p127, %p128
      %p131 = scmp.ne.s32.totalorder %s116, %s130
      %p132 = scmp.eq.s32.totalorder %s33, 0
      %p133 = por %p131, %p132
      %s135 = sadd.s32 %s134, 1
      %p138 = scmp.eq.s32.totalorder %s27, 1
      %p139 = scmp.ne.s32.totalorder %s134, %s136
      %p140 = scmp.eq.s32.totalorder %s27, 0
      %p141 = por %p139, %p140
      %p142 = scmp.ne.s32.totalorder %s134, %s136
      %p143 = scmp.eq.s32.totalorder %s32, 1
      %p144 = por %p142, %p143
      %p145 = scmp.ne.s32.totalorder %s136, %s137
      %p146 = scmp.eq.s32.totalorder %s32, 0
      %p147 = por %p145, %p146
      %p148 = scmp.ne.s32.totalorder %s136, %s137
      %p149 = scmp.eq.s32.totalorder %s33, 1
      %p150 = por %p148, %p149
      %p152 = scmp.ne.s32.totalorder %s137, %s151
      %p153 = scmp.eq.s32.totalorder %s33, 0
      %p154 = por %p152, %p153
      %s156 = sadd.s32 %s155, 1
      %p159 = scmp.eq.s32.totalorder %s27, 1
      %p160 = scmp.ne.s32.totalorder %s155, %s157
      %p161 = scmp.eq.s32.totalorder %s27, 0
      %p162 = por %p160, %p161
      %p163 = scmp.ne.s32.totalorder %s155, %s157
      %p164 = scmp.eq.s32.totalorder %s32, 1
      %p165 = por %p163, %p164
      %p166 = scmp.ne.s32.totalorder %s157, %s158
      %p167 = scmp.eq.s32.totalorder %s32, 0
      %p168 = por %p166, %p167
      %p169 = scmp.ne.s32.totalorder %s157, %s158
      %p170 = scmp.eq.s32.totalorder %s33, 1
      %p171 = por %p169, %p170
      %p173 = scmp.ne.s32.totalorder %s158, %s172
      %p174 = scmp.eq.s32.totalorder %s33, 0
      %p175 = por %p173, %p174
      %s177 = sadd.s32 %s176, 1
      %p180 = scmp.eq.s32.totalorder %s27, 1
      %p181 = scmp.ne.s32.totalorder %s176, %s178
      %p182 = scmp.eq.s32.totalorder %s27, 0
      %p183 = por %p181, %p182
      %p184 = scmp.ne.s32.totalorder %s176, %s178
      %p185 = scmp.eq.s32.totalorder %s32, 1
      %p186 = por %p184, %p185
      %p187 = scmp.ne.s32.totalorder %s178, %s179
      %p188 = scmp.eq.s32.totalorder %s32, 0
      %p189 = por %p187, %p188
      %p190 = scmp.ne.s32.totalorder %s178, %s179
      %p191 = scmp.eq.s32.totalorder %s33, 1
      %p192 = por %p190, %p191
      %p194 = scmp.ne.s32.totalorder %s179, %s193
      %p195 = scmp.eq.s32.totalorder %s33, 0
      %p196 = por %p194, %p195
      %s198 = sadd.s32 %s197, 1
      %p201 = scmp.eq.s32.totalorder %s27, 1
      %p202 = scmp.ne.s32.totalorder %s197, %s199
      %p203 = scmp.eq.s32.totalorder %s27, 0
      %p204 = por %p202, %p203
      %p205 = scmp.ne.s32.totalorder %s197, %s199
      %p206 = scmp.eq.s32.totalorder %s32, 1
      %p207 = por %p205, %p206
      %p208 = scmp.ne.s32.totalorder %s199, %s200
      %p209 = scmp.eq.s32.totalorder %s32, 0
      %p210 = por %p208, %p209
      %p211 = scmp.ne.s32.totalorder %s199, %s200
      %p212 = scmp.eq.s32.totalorder %s33, 1
      %p213 = por %p211, %p212
      %p215 = scmp.ne.s32.totalorder %s200, %s214
      %p216 = scmp.eq.s32.totalorder %s33, 0
      %p217 = por %p215, %p216
      %s219 = sadd.s32 %s218, 1
      %p222 = scmp.eq.s32.totalorder %s27, 1
      %p223 = scmp.ne.s32.totalorder %s218, %s220
      %p224 = scmp.eq.s32.totalorder %s27, 0
      %p225 = por %p223, %p224
      %p226 = scmp.ne.s32.totalorder %s218, %s220
      %p227 = scmp.eq.s32.totalorder %s32, 1
      %p228 = por %p226, %p227
      %p229 = scmp.ne.s32.totalorder %s220, %s221
      %p230 = scmp.eq.s32.totalorder %s32, 0
      %p231 = por %p229, %p230
      %p232 = scmp.ne.s32.totalorder %s220, %s221
      %p233 = scmp.eq.s32.totalorder %s33, 1
      %p234 = por %p232, %p233
      %p236 = scmp.ne.s32.totalorder %s221, %s235
      %p237 = scmp.eq.s32.totalorder %s33, 0
      %p238 = por %p236, %p237
      %s240 = sadd.s32 %s239, 1
      %p243 = scmp.eq.s32.totalorder %s27, 1
      %p244 = scmp.ne.s32.totalorder %s239, %s241
      %p245 = scmp.eq.s32.totalorder %s27, 0
      %p246 = por %p244, %p245
      %p247 = scmp.ne.s32.totalorder %s239, %s241
      %p248 = scmp.eq.s32.totalorder %s32, 1
      %p249 = por %p247, %p248
      %p250 = scmp.ne.s32.totalorder %s241, %s242
      %p251 = scmp.eq.s32.totalorder %s32, 0
      %p252 = por %p250, %p251
      %p253 = scmp.ne.s32.totalorder %s241, %s242
      %p254 = scmp.eq.s32.totalorder %s33, 1
      %p255 = por %p253, %p254
      %p257 = scmp.ne.s32.totalorder %s242, %s256
      %p258 = scmp.eq.s32.totalorder %s33, 0
      %p259 = por %p257, %p258
      %s261 = sadd.s32 %s260, 1
      %p264 = scmp.eq.s32.totalorder %s27, 1
      %p265 = scmp.ne.s32.totalorder %s260, %s262
      %p266 = scmp.eq.s32.totalorder %s27, 0
      %p267 = por %p265, %p266
      %p268 = scmp.ne.s32.totalorder %s260, %s262
      %p269 = scmp.eq.s32.totalorder %s32, 1
      %p270 = por %p268, %p269
      %p271 = scmp.ne.s32.totalorder %s262, %s263
      %p272 = scmp.eq.s32.totalorder %s32, 0
      %p273 = por %p271, %p272
      %p274 = scmp.ne.s32.totalorder %s262, %s263
      %p275 = scmp.eq.s32.totalorder %s33, 1
      %p276 = por %p274, %p275
      %p278 = scmp.ne.s32.totalorder %s263, %s277
      %p279 = scmp.eq.s32.totalorder %s33, 0
      %p280 = por %p278, %p279
      %s282 = sadd.s32 %s281, 1
      %p285 = scmp.eq.s32.totalorder %s27, 1
      %p286 = scmp.ne.s32.totalorder %s281, %s283
      %p287 = scmp.eq.s32.totalorder %s27, 0
      %p288 = por %p286, %p287
      %p289 = scmp.ne.s32.totalorder %s281, %s283
      %p290 = scmp.eq.s32.totalorder %s32, 1
      %p291 = por %p289, %p290
      %p292 = scmp.ne.s32.totalorder %s283, %s284
      %p293 = scmp.eq.s32.totalorder %s32, 0
      %p294 = por %p292, %p293
      %p295 = scmp.ne.s32.totalorder %s283, %s284
      %p296 = scmp.eq.s32.totalorder %s33, 1
      %p297 = por %p295, %p296
      %p299 = scmp.ne.s32.totalorder %s284, %s298
      %p300 = scmp.eq.s32.totalorder %s33, 0
      %p301 = por %p299, %p300
      %s303 = sadd.s32 %s302, 1
      %p306 = scmp.eq.s32.totalorder %s27, 1
      %p307 = scmp.ne.s32.totalorder %s302, %s304
      %p308 = scmp.eq.s32.totalorder %s27, 0
      %p309 = por %p307, %p308
      %p310 = scmp.ne.s32.totalorder %s302, %s304
      %p311 = scmp.eq.s32.totalorder %s32, 1
      %p312 = por %p310, %p311
      %p313 = scmp.ne.s32.totalorder %s304, %s305
      %p314 = scmp.eq.s32.totalorder %s32, 0
      %p315 = por %p313, %p314
      %p316 = scmp.ne.s32.totalorder %s304, %s305
      %p317 = scmp.eq.s32.totalorder %s33, 1
      %p318 = por %p316, %p317
      %p320 = scmp.ne.s32.totalorder %s305, %s319
      %p321 = scmp.eq.s32.totalorder %s33, 0
      %p322 = por %p320, %p321
      %s324 = sadd.s32 %s323, 1
      %p327 = scmp.eq.s32.totalorder %s27, 1
      %p328 = scmp.ne.s32.totalorder %s323, %s325
      %p329 = scmp.eq.s32.totalorder %s27, 0
      %p330 = por %p328, %p329
      %p331 = scmp.ne.s32.totalorder %s323, %s325
      %p332 = scmp.eq.s32.totalorder %s32, 1
      %p333 = por %p331, %p332
      %p334 = scmp.ne.s32.totalorder %s325, %s326
      %p335 = scmp.eq.s32.totalorder %s32, 0
      %p336 = por %p334, %p335
      %p337 = scmp.ne.s32.totalorder %s325, %s326
      %p338 = scmp.eq.s32.totalorder %s33, 1
      %p339 = por %p337, %p338
      %p341 = scmp.ne.s32.totalorder %s326, %s340
      %p342 = scmp.eq.s32.totalorder %s33, 0
      %p343 = por %p341, %p342
      %s345 = sadd.s32 %s344, 1
      %p348 = scmp.eq.s32.totalorder %s27, 1
      %p349 = scmp.ne.s32.totalorder %s344, %s346
      %p350 = scmp.eq.s32.totalorder %s27, 0
      %p351 = por %p349, %p350
      %p352 = scmp.ne.s32.totalorder %s344, %s346
      %p353 = scmp.eq.s32.totalorder %s32, 1
      %p354 = por %p352, %p353
      %p355 = scmp.ne.s32.totalorder %s346, %s347
      %p356 = scmp.eq.s32.totalorder %s32, 0
      %p357 = por %p355, %p356
      %p358 = scmp.ne.s32.totalorder %s346, %s347
      %p359 = scmp.eq.s32.totalorder %s33, 1
      %p360 = por %p358, %p359
      %p362 = scmp.ne.s32.totalorder %s347, %s361
      %p363 = scmp.eq.s32.totalorder %s33, 0
      %p364 = por %p362, %p363
      %s366 = sadd.s32 %s365, 1
      %p369 = scmp.eq.s32.totalorder %s27, 1
      %p370 = scmp.ne.s32.totalorder %s365, %s367
      %p371 = scmp.eq.s32.totalorder %s27, 0
      %p372 = por %p370, %p371
      %p373 = scmp.ne.s32.totalorder %s365, %s367
      %p374 = scmp.eq.s32.totalorder %s32, 1
      %p375 = por %p373, %p374
      %p376 = scmp.ne.s32.totalorder %s367, %s368
      %p377 = scmp.eq.s32.totalorder %s32, 0
      %p378 = por %p376, %p377
      %p379 = scmp.ne.s32.totalorder %s367, %s368
      %p380 = scmp.eq.s32.totalorder %s33, 1
      %p381 = por %p379, %p380
      %p383 = scmp.ne.s32.totalorder %s368, %s382
      %p384 = scmp.eq.s32.totalorder %s33, 0
      %p385 = por %p383, %p384
      %s387 = sadd.s32 %s386, 1
      %p390 = scmp.eq.s32.totalorder %s27, 1
      %p391 = scmp.ne.s32.totalorder %s386, %s388
      %p392 = scmp.eq.s32.totalorder %s27, 0
      %p393 = por %p391, %p392
      %p394 = scmp.ne.s32.totalorder %s386, %s388
      %p395 = scmp.eq.s32.totalorder %s32, 1
      %p396 = por %p394, %p395
      %p397 = scmp.ne.s32.totalorder %s388, %s389
      %p398 = scmp.eq.s32.totalorder %s32, 0
      %p399 = por %p397, %p398
      %p400 = scmp.ne.s32.totalorder %s388, %s389
      %p401 = scmp.eq.s32.totalorder %s33, 1
      %p402 = por %p400, %p401
      %p404 = scmp.ne.s32.totalorder %s389, %s403
      %p405 = scmp.eq.s32.totalorder %s33, 0
      %p406 = por %p404, %p405
      %s408 = sadd.s32 %s407, 1
      %p411 = scmp.eq.s32.totalorder %s27, 1
      %p412 = scmp.ne.s32.totalorder %s407, %s409
      %p413 = scmp.eq.s32.totalorder %s27, 0
      %p414 = por %p412, %p413
      %p415 = scmp.ne.s32.totalorder %s407, %s409
      %p416 = scmp.eq.s32.totalorder %s32, 1
      %p417 = por %p415, %p416
      %p418 = scmp.ne.s32.totalorder %s409, %s410
      %p419 = scmp.eq.s32.totalorder %s32, 0
      %p420 = por %p418, %p419
      %p421 = scmp.ne.s32.totalorder %s409, %s410
      %p422 = scmp.eq.s32.totalorder %s33, 1
      %p423 = por %p421, %p422
      %p425 = scmp.ne.s32.totalorder %s410, %s424
      %p426 = scmp.eq.s32.totalorder %s33, 0
      %p427 = por %p425, %p426
      %s428 = ssub.s32 %s27, %s34
      %p429 = scmp.eq.s32.totalorder %s428, 0
      %s431 = sadd.s32 %s430, 1
      %s432 = scalar_select %p429, %s430, %s431
      %p435 = pneg %p429
      %p436 = scmp.eq.s32.totalorder %s27, 1
      %p437 = por %p435, %p436
      %p438 = scmp.ne.s32.totalorder %s430, %s433
      %p439 = scmp.eq.s32.totalorder %s27, 0
      %p440 = por %p438, %p439
      %p441 = scmp.ne.s32.totalorder %s430, %s433
      %p442 = scmp.eq.s32.totalorder %s32, 1
      %p443 = por %p441, %p442
      %p444 = scmp.ne.s32.totalorder %s433, %s434
      %p445 = scmp.eq.s32.totalorder %s32, 0
      %p446 = por %p444, %p445
      %p447 = scmp.ne.s32.totalorder %s433, %s434
      %p448 = scmp.eq.s32.totalorder %s33, 1
      %p449 = por %p447, %p448
      %p451 = scmp.ne.s32.totalorder %s434, %s450
      %p452 = scmp.eq.s32.totalorder %s33, 0
      %p453 = por %p451, %p452
      %p454 = scmp.le.s32.totalorder 1, %s27
      %p455 = scmp.lt.s32.totalorder %s27, 3
      %p456 = pnand %p454, %p455
      %p457 = pneg %p456
      // Predicated region
      $region9: #{tpu_custom_call.1} parent=5 // pred_check
        _
      $region10: #{tpu_custom_call.1} parent=5 // pred_check_branch
        %459 = sbr.rel (%p456) target = $region12
      $region11: #{tpu_custom_call.1} parent=5 // pred_region
        %s460 = ssub.s32 %s27, 1
        // Predicated region
        $region13: #{tpu_custom_call.1} parent=11 // pred_check
          %p461 = pneg %p126
        $region14: #{tpu_custom_call.1} parent=11 // pred_check_branch
          %463 = sbr.rel (%p461) target = $region16
        $region15: #{tpu_custom_call.1} parent=11 // pred_region
          _
        $region16: #{tpu_custom_call.1} parent=11 // pred_fallthru
          _
        // Predicated region
        $region17: #{tpu_custom_call.1} parent=11 // pred_check
          %p464 = pneg %p147
        $region18: #{tpu_custom_call.1} parent=11 // pred_check_branch
          %466 = sbr.rel (%p464) target = $region20
        $region19: #{tpu_custom_call.1} parent=11 // pred_region
          _
        $region20: #{tpu_custom_call.1} parent=11 // pred_fallthru
          _
        // Predicated region
        $region21: #{tpu_custom_call.1} parent=11 // pred_check
          %p467 = pneg %p168
        $region22: #{tpu_custom_call.1} parent=11 // pred_check_branch
          %469 = sbr.rel (%p467) target = $region24
        $region23: #{tpu_custom_call.1} parent=11 // pred_region
          _
        $region24: #{tpu_custom_call.1} parent=11 // pred_fallthru
          _
        // Predicated region
        $region25: #{tpu_custom_call.1} parent=11 // pred_check
          %p470 = pneg %p189
        $region26: #{tpu_custom_call.1} parent=11 // pred_check_branch
          %472 = sbr.rel (%p470) target = $region28
        $region27: #{tpu_custom_call.1} parent=11 // pred_region
          _
        $region28: #{tpu_custom_call.1} parent=11 // pred_fallthru
          _
        // Predicated region
        $region29: #{tpu_custom_call.1} parent=11 // pred_check
          %p473 = pneg %p210
        $region30: #{tpu_custom_call.1} parent=11 // pred_check_branch
          %475 = sbr.rel (%p473) target = $region32
        $region31: #{tpu_custom_call.1} parent=11 // pred_region
          _
        $region32: #{tpu_custom_call.1} parent=11 // pred_fallthru
          _
        // Predicated region
        $region33: #{tpu_custom_call.1} parent=11 // pred_check
          %p476 = pneg %p231
        $region34: #{tpu_custom_call.1} parent=11 // pred_check_branch
          %478 = sbr.rel (%p476) target = $region36
        $region35: #{tpu_custom_call.1} parent=11 // pred_region
          _
        $region36: #{tpu_custom_call.1} parent=11 // pred_fallthru
          _
        // Predicated region
        $region37: #{tpu_custom_call.1} parent=11 // pred_check
          %p479 = pneg %p252
        $region38: #{tpu_custom_call.1} parent=11 // pred_check_branch
          %481 = sbr.rel (%p479) target = $region40
        $region39: #{tpu_custom_call.1} parent=11 // pred_region
          _
        $region40: #{tpu_custom_call.1} parent=11 // pred_fallthru
          _
        // Predicated region
        $region41: #{tpu_custom_call.1} parent=11 // pred_check
          %p482 = pneg %p273
        $region42: #{tpu_custom_call.1} parent=11 // pred_check_branch
          %484 = sbr.rel (%p482) target = $region44
        $region43: #{tpu_custom_call.1} parent=11 // pred_region
          _
        $region44: #{tpu_custom_call.1} parent=11 // pred_fallthru
          _
        // Predicated region
        $region45: #{tpu_custom_call.1} parent=11 // pred_check
          %p485 = pneg %p294
        $region46: #{tpu_custom_call.1} parent=11 // pred_check_branch
          %487 = sbr.rel (%p485) target = $region48
        $region47: #{tpu_custom_call.1} parent=11 // pred_region
          _
        $region48: #{tpu_custom_call.1} parent=11 // pred_fallthru
          _
        // Predicated region
        $region49: #{tpu_custom_call.1} parent=11 // pred_check
          %p488 = pneg %p315
        $region50: #{tpu_custom_call.1} parent=11 // pred_check_branch
          %490 = sbr.rel (%p488) target = $region52
        $region51: #{tpu_custom_call.1} parent=11 // pred_region
          _
        $region52: #{tpu_custom_call.1} parent=11 // pred_fallthru
          _
        // Predicated region
        $region53: #{tpu_custom_call.1} parent=11 // pred_check
          %p491 = pneg %p336
        $region54: #{tpu_custom_call.1} parent=11 // pred_check_branch
          %493 = sbr.rel (%p491) target = $region56
        $region55: #{tpu_custom_call.1} parent=11 // pred_region
          _
        $region56: #{tpu_custom_call.1} parent=11 // pred_fallthru
          _
        // Predicated region
        $region57: #{tpu_custom_call.1} parent=11 // pred_check
          %p494 = pneg %p357
        $region58: #{tpu_custom_call.1} parent=11 // pred_check_branch
          %496 = sbr.rel (%p494) target = $region60
        $region59: #{tpu_custom_call.1} parent=11 // pred_region
          _
        $region60: #{tpu_custom_call.1} parent=11 // pred_fallthru
          _
        // Predicated region
        $region61: #{tpu_custom_call.1} parent=11 // pred_check
          %p497 = pneg %p378
        $region62: #{tpu_custom_call.1} parent=11 // pred_check_branch
          %499 = sbr.rel (%p497) target = $region64
        $region63: #{tpu_custom_call.1} parent=11 // pred_region
          _
        $region64: #{tpu_custom_call.1} parent=11 // pred_fallthru
          _
        // Predicated region
        $region65: #{tpu_custom_call.1} parent=11 // pred_check
          %p500 = pneg %p399
        $region66: #{tpu_custom_call.1} parent=11 // pred_check_branch
          %502 = sbr.rel (%p500) target = $region68
        $region67: #{tpu_custom_call.1} parent=11 // pred_region
          _
        $region68: #{tpu_custom_call.1} parent=11 // pred_fallthru
          _
        // Predicated region
        $region69: #{tpu_custom_call.1} parent=11 // pred_check
          %p503 = pneg %p420
        $region70: #{tpu_custom_call.1} parent=11 // pred_check_branch
          %505 = sbr.rel (%p503) target = $region72
        $region71: #{tpu_custom_call.1} parent=11 // pred_region
          _
        $region72: #{tpu_custom_call.1} parent=11 // pred_fallthru
          _
      $region12: #{tpu_custom_call.1} parent=5 // pred_fallthru
        _
      %p506 = scmp.lt.s32.totalorder %s27, 2
      // Predicated region
      $region73: #{tpu_custom_call.1} parent=5 // pred_check
        %p507 = pneg %p506
      $region74: #{tpu_custom_call.1} parent=5 // pred_check_branch
        %509 = sbr.rel (%p507) target = $region76
      $region75: #{tpu_custom_call.1} parent=5 // pred_region
        // Predicated region
        $region77: #{tpu_custom_call.1} parent=75 // pred_check
          %p510 = pneg %p47
        $region78: #{tpu_custom_call.1} parent=75 // pred_check_branch
          %512 = sbr.rel (%p510) target = $region80
        $region79: #{tpu_custom_call.1} parent=75 // pred_region
          %s513 = smul.u32 2, %s27
          %p514 = scmp.lt.s32.totalorder %s513, 3
          %s515 = scalar_select %p514, %s513, 3
          %s516 = smul.addr %s515, 4
          %s517 = scalar_lea.vmem %s0, %s516
          %s518 = smul.u32 2, %s27
        $region80: #{tpu_custom_call.1} parent=75 // pred_fallthru
          _
        // Predicated region
        $region81: #{tpu_custom_call.1} parent=75 // pred_check
          %p519 = pneg %p73
        $region82: #{tpu_custom_call.1} parent=75 // pred_check_branch
          %521 = sbr.rel (%p519) target = $region84
        $region83: #{tpu_custom_call.1} parent=75 // pred_region
          %s522 = smul.u32 2, %s27
          %p523 = scmp.lt.s32.totalorder %s522, 3
          %s524 = scalar_select %p523, %s522, 3
          %s525 = smul.addr %s524, 4
          %s526 = scalar_lea.vmem %s1, %s525
          %s527 = smul.u32 2, %s27
        $region84: #{tpu_custom_call.1} parent=75 // pred_fallthru
          _
        // Predicated region
        $region85: #{tpu_custom_call.1} parent=75 // pred_check
          %p528 = pneg %p99
        $region86: #{tpu_custom_call.1} parent=75 // pred_check_branch
          %530 = sbr.rel (%p528) target = $region88
        $region87: #{tpu_custom_call.1} parent=75 // pred_region
          %s531 = smul.u32 2, %s27
          %p532 = scmp.lt.s32.totalorder %s531, 3
          %s533 = scalar_select %p532, %s531, 3
          %s534 = scalar_lea.vmem %s2, %s533
          %s535 = smul.u32 2, %s27
        $region88: #{tpu_custom_call.1} parent=75 // pred_fallthru
          _
      $region76: #{tpu_custom_call.1} parent=5 // pred_fallthru
        _
      %p536 = scmp.le.s32.totalorder 1, %s27
      %p537 = scmp.lt.s32.totalorder %s27, 3
      %p538 = pnand %p536, %p537
      %p539 = pneg %p538
      // Predicated region
      $region89: #{tpu_custom_call.1} parent=5 // pred_check
        _
      $region90: #{tpu_custom_call.1} parent=5 // pred_check_branch
        %541 = sbr.rel (%p538) target = $region92
      $region91: #{tpu_custom_call.1} parent=5 // pred_region
        %s542 = ssub.s32 %s27, 1
        %s543 = smul.u32 2, %s32
        %p544 = scmp.lt.s32.totalorder %s543, 3
        %s545 = scalar_select %p544, %s543, 3
        %s546 = smul.addr %s545, 4
        %s547 = scalar_lea.vmem %s0, %s546
        %p548 = pneg %p53
        %p549 = pneg %p50
        %s550 = smul.u32 2, %s32
        %p551 = scmp.lt.s32.totalorder %s550, 3
        %s552 = scalar_select %p551, %s550, 3
        %s553 = smul.addr %s552, 4
        %s554 = scalar_lea.vmem %s1, %s553
        %p555 = pneg %p79
        %p556 = pneg %p76
        %s557 = smul.u32 2, %s32
        %p558 = scmp.lt.s32.totalorder %s557, 3
        %s559 = scalar_select %p558, %s557, 3
        %s560 = scalar_lea.vmem %s2, %s559
        %p561 = pneg %p105
        %p562 = pneg %p102
        %p563 = pneg %p126
        %p564 = pneg %p123
        %p565 = pneg %p147
        %p566 = pneg %p144
        %p567 = pneg %p168
        %p568 = pneg %p165
        %p569 = pneg %p189
        %p570 = pneg %p186
        %p571 = pneg %p210
        %p572 = pneg %p207
        %p573 = pneg %p231
        %p574 = pneg %p228
        %p575 = pneg %p252
        %p576 = pneg %p249
        %p577 = pneg %p273
        %p578 = pneg %p270
        %p579 = pneg %p294
        %p580 = pneg %p291
        %p581 = pneg %p315
        %p582 = pneg %p312
        %p583 = pneg %p336
        %p584 = pneg %p333
        %p585 = pneg %p357
        %p586 = pneg %p354
        %p587 = pneg %p378
        %p588 = pneg %p375
        %p589 = pneg %p399
        %p590 = pneg %p396
        %p591 = pneg %p420
        %p592 = pneg %p417
        %p593 = pneg %p446
        %p594 = pneg %p443
        %s595 = sand.u32 %s433, 1
        %s596 = scalar_lea.sflag [#allocation7], %s595
        %s597 = sand.u32 %s433, 1
        %s598 = smul.addr %s597, 2
        %s599 = scalar_lea.vmem [#allocation6], %s598
        %s600 = smul.u32 2, %s32
        %p601 = scmp.lt.s32.totalorder %s600, 3
        %s602 = scalar_select %p601, %s600, 3
        %s603 = smul.addr %s602, 4
        %s604 = scalar_lea.vmem %s0, %s603
        %s605 = smul.u32 2, %s32
        %s606 = smul.u32 2, %s32
        %p607 = scmp.lt.s32.totalorder %s606, 3
        %s608 = scalar_select %p607, %s606, 3
        %s609 = smul.addr %s608, 4
        %s610 = scalar_lea.vmem %s1, %s609
        %s611 = smul.u32 2, %s32
        %s612 = smul.u32 2, %s32
        %p613 = scmp.lt.s32.totalorder %s612, 3
        %s614 = scalar_select %p613, %s612, 3
        %s615 = scalar_lea.vmem %s2, %s614
        %s616 = smul.u32 2, %s32
        %s617 = smul.u32 2, %s32
        %v619 = vld [vmem:[%s604] sm:$0xf]
        %v620 = vld [vmem:[%s604 + $0x4] sm:$0xf]
        %v621 = vld [vmem:[%s610] sm:$0xf]
        %v622 = vld [vmem:[%s610 + $0x4] sm:$0xf]
        %v623 = vld [vmem:[%s615] sm:$0x1]
        %v624 = vld [vmem:[%s615 + $0x1] sm:$0x1]
        %v625 = vld [vmem:[%s3] sm:$0xf]
        %v626 = vld [vmem:[%s3 + $0x4] sm:$0xf]
        %v627 = vld [vmem:[%s3 + $0x8] sm:$0xf]
        %v628 = vld [vmem:[%s3 + $0xc] sm:$0xf]
        %v629 = vld [vmem:[%s3 + $0x10] sm:$0xf]
        %v630 = vld [vmem:[%s3 + $0x14] sm:$0xf]
        %v631 = vld [vmem:[%s3 + $0x18] sm:$0xf]
        %v632 = vld [vmem:[%s3 + $0x1c] sm:$0xf]
        %v633 = vld [vmem:[%s3 + $0x20] sm:$0xf]
        %v634 = vld [vmem:[%s3 + $0x24] sm:$0xf]
        %v635 = vld [vmem:[%s3 + $0x28] sm:$0xf]
        %v636 = vld [vmem:[%s3 + $0x2c] sm:$0xf]
        %v637 = vld [vmem:[%s3 + $0x30] sm:$0xf]
        %v638 = vld [vmem:[%s3 + $0x34] sm:$0xf]
        %v639 = vld [vmem:[%s4] sm:$0x1]
        %v641 = vlaneseq
        %v642 = vshrl.u32 %v641, 7
        %v643 = vsub.s32 0, %v642
        %v644 = vrot.slane %v639, %v643
        %v649 = vunpack.c.l.s4 1966171168
        %v650 = vunpack.c.0.s8 %v649
        %v651 = vlaneseq
        %v652 = vshrl.u32 %v651, 7
        %v653 = vsub.s32 %v650, %v652
        %v654 = vrot.slane %v623, %v653
        %v656 = vunpack.c.l.s4 1966171168
        %v657 = vunpack.c.0.s8 %v656
        %v658 = vlaneseq
        %v659 = vshrl.u32 %v658, 7
        %v660 = vsub.s32 %v657, %v659
        %v661 = vrot.slane %v654, %v660
        %v663 = vunpack.c.l.s4 1966171168
        %v664 = vunpack.c.0.s8 %v663
        %v665 = vlaneseq
        %v666 = vshrl.u32 %v665, 7
        %v667 = vsub.s32 %v664, %v666
        %v668 = vrot.slane %v624, %v667
        %v670 = vunpack.c.l.s4 1966171168
        %v671 = vunpack.c.0.s8 %v670
        %v672 = vlaneseq
        %v673 = vshrl.u32 %v672, 7
        %v674 = vsub.s32 %v671, %v673
        %v675 = vrot.slane %v668, %v674
        %v676 = vunpack.c.l.b16 %v661
        %v677 = vunpack.c.l.b16 %v675
        %v678 = vrot.slane %v677, 7
        %vm679 = vcmask 1041409
        %v680 = vsel %vm679, %v678, %v676
        %v681 = vpack.c.b16 %v680, %v680
        %v696 = vunpack.c.l.b16 %v625
        %v697 = vunpack.c.l.b16 %v626
        %v698 = vunpack.c.l.b16 %v627
        %v699 = vunpack.c.l.b16 %v628
        %v700 = vunpack.c.l.b16 %v629
        %v701 = vunpack.c.l.b16 %v630
        %v702 = vunpack.c.l.b16 %v631
        %v703 = vunpack.c.l.b16 %v632
        %v704 = vunpack.c.l.b16 %v633
        %v705 = vunpack.c.l.b16 %v634
        %v706 = vunpack.c.l.b16 %v635
        %v707 = vunpack.c.l.b16 %v636
        %v708 = vunpack.c.l.b16 %v637
        %v709 = vunpack.c.l.b16 %v638
        %v710 = vpack.c.b16 %v697, %v696
        %v711 = vpack.c.b16 %v699, %v698
        %v712 = vpack.c.b16 %v701, %v700
        %v713 = vpack.c.b16 %v703, %v702
        %v714 = vpack.c.b16 %v705, %v704
        %v715 = vpack.c.b16 %v707, %v706
        %v716 = vpack.c.b16 %v709, %v708
        %vm724 = vcmask 916480
        %v726 = vsel %vm724, %v681, 0
        %728 = vmatprep.subr.bf16.mxu0 0
        %729 = vmatpush1.bf16.msra.mxu0 %v710
        %730 = vmatprep.subr.bf16.mxu0 0
        %731 = vmatpush1.bf16.msra.mxu0 %v711
        %732 = vmatprep.subr.bf16.mxu0 0
        %733 = vmatpush1.bf16.msra.mxu0 %v712
        %734 = vmatprep.subr.bf16.mxu0 0
        %735 = vmatpush1.bf16.msra.mxu0 %v713
        %736 = vmatprep.subr.bf16.mxu0 0
        %737 = vmatpush1.bf16.msra.mxu0 %v714
        %738 = vmatprep.subr.bf16.mxu0 0
        %739 = vmatpush1.bf16.msra.mxu0 %v715
        %740 = vmatprep.subr.bf16.mxu0 0
        %741 = vmatpush1.bf16.msra.mxu0 %v716
        %742 = vmatprep.subr.bf16.mxu0 0
        %743 = vmatpush1.bf16.msra.mxu0 0
        %744 = vmatprep.subr.bf16.mxu0 0
        %745 = vmatpush1.bf16.msra.mxu0 0
        %746 = vmatprep.subr.bf16.mxu0 0
        %747 = vmatpush1.bf16.msra.mxu0 0
        %748 = vmatprep.subr.bf16.mxu0 0
        %749 = vmatpush1.bf16.msra.mxu0 0
        %750 = vmatprep.subr.bf16.mxu0 0
        %751 = vmatpush1.bf16.msra.mxu0 0
        %752 = vmatprep.subr.bf16.mxu0 0
        %753 = vmatpush1.bf16.msra.mxu0 0
        %754 = vmatprep.subr.bf16.mxu0 0
        %755 = vmatpush1.bf16.msra.mxu0 0
        %756 = vmatprep.subr.bf16.mxu0 0
        %757 = vmatpush1.bf16.msra.mxu0 0
        %758 = vmatprep.subr.bf16.mxu0 0
        %759 = vmatpush1.bf16.msra.mxu0 0
        %760 = vmatprep.mubr.bf16.mxu0 0
        %761 = vmatmul.mubr.bf16.gmra.mrb[0].mxu0 %v726
        %v762 = vpop.f32.mrb[0].mxu0
        %v763 = vadd.f32 %v644, %v762
        %v764 = vpop.f32.mrb[0].mxu0
        %v765 = vpop.f32.mrb[0].mxu0
        %v766 = vpop.f32.mrb[0].mxu0
        %767 = vdwg.mxu0
        %v768 = vld [vmem:[%s5] sm:$0x1]
        %v770 = vlaneseq
        %v771 = vshrl.u32 %v770, 7
        %v772 = vsub.s32 0, %v771
        %v773 = vrot.slane %v768, %v772
        %v775 = vmul.f32 %v763, %v773
        %vm776 = vcmask 1041408
        %v777 = vsel %vm776, %v775, 0.0
        %778 = vadd.xlane.f32.xlu0 %v777
        %v779 = vpop.xlane.xlu0 %778
        %v780 = vxor.u32 %v779, 2147483648
        %v781 = vmul.f32 %v780, 1.442695
        %v782 = vpow.pop %v781
        %v783 = vadd.f32 %v782, 1.0
        %v784 = vrcp.pop %v783
        %v785 = vmul.f32 1.0, %v784
        %v786 = vld [vmem:[%s6] sm:$0xf]
        %v787 = vld [vmem:[%s6 + $0x4] sm:$0xf]
        %v788 = vld [vmem:[%s6 + $0x8] sm:$0xf]
        %v789 = vld [vmem:[%s6 + $0xc] sm:$0xf]
        %v790 = vld [vmem:[%s6 + $0x10] sm:$0xf]
        %v791 = vld [vmem:[%s6 + $0x14] sm:$0xf]
        %v792 = vld [vmem:[%s6 + $0x18] sm:$0xf]
        %v793 = vld [vmem:[%s6 + $0x1c] sm:$0xf]
        %v794 = vld [vmem:[%s7] sm:$0x1]
        %v795 = vld [vmem:[%s8] sm:$0xf]
        %v796 = vld [vmem:[%s8 + $0x4] sm:$0xf]
        %v797 = vld [vmem:[%s8 + $0x8] sm:$0xf]
        %v798 = vld [vmem:[%s8 + $0xc] sm:$0xf]
        %v799 = vld [vmem:[%s8 + $0x10] sm:$0xf]
        %v800 = vld [vmem:[%s8 + $0x14] sm:$0xf]
        %v801 = vld [vmem:[%s8 + $0x18] sm:$0xf]
        %v802 = vld [vmem:[%s8 + $0x1c] sm:$0xf]
        %v803 = vld [vmem:[%s9] sm:$0xf]
        %v804 = vld [vmem:[%s9 + $0x4] sm:$0xf]
        %v805 = vld [vmem:[%s9 + $0x8] sm:$0xf]
        %v806 = vld [vmem:[%s9 + $0xc] sm:$0xf]
        %v807 = vld [vmem:[%s9 + $0x10] sm:$0xf]
        %v808 = vld [vmem:[%s9 + $0x14] sm:$0xf]
        %v809 = vld [vmem:[%s9 + $0x18] sm:$0xf]
        %v810 = vld [vmem:[%s9 + $0x1c] sm:$0xf]
        %v812 = vlaneseq
        %v813 = vshrl.u32 %v812, 7
        %v814 = vsub.s32 0, %v813
        %v815 = vrot.slane %v794, %v814
        %v819 = vunpack.c.l.b16 %v619
        %v820 = vunpack.c.l.b16 %v620
        %v821 = vpack.c.b16 %v820, %v819
        %v830 = vunpack.c.l.b16 %v786
        %v831 = vunpack.c.l.b16 %v787
        %v832 = vunpack.c.l.b16 %v788
        %v833 = vunpack.c.l.b16 %v789
        %v834 = vunpack.c.l.b16 %v790
        %v835 = vunpack.c.l.b16 %v791
        %v836 = vunpack.c.l.b16 %v792
        %v837 = vunpack.c.l.b16 %v793
        %v838 = vpack.c.b16 %v831, %v830
        %v839 = vpack.c.b16 %v833, %v832
        %v840 = vpack.c.b16 %v835, %v834
        %v841 = vpack.c.b16 %v837, %v836
        %vm846 = vcmask 523264
        %v848 = vsel %vm846, %v821, 0
        %850 = vmatprep.subr.bf16.mxu0 0
        %851 = vmatpush1.bf16.msra.mxu0 %v838
        %852 = vmatprep.subr.bf16.mxu0 0
        %853 = vmatpush1.bf16.msra.mxu0 %v839
        %854 = vmatprep.subr.bf16.mxu0 0
        %855 = vmatpush1.bf16.msra.mxu0 %v840
        %856 = vmatprep.subr.bf16.mxu0 0
        %857 = vmatpush1.bf16.msra.mxu0 %v841
        %858 = vmatprep.subr.bf16.mxu0 0
        %859 = vmatpush1.bf16.msra.mxu0 0
        %860 = vmatprep.subr.bf16.mxu0 0
        %861 = vmatpush1.bf16.msra.mxu0 0
        %862 = vmatprep.subr.bf16.mxu0 0
        %863 = vmatpush1.bf16.msra.mxu0 0
        %864 = vmatprep.subr.bf16.mxu0 0
        %865 = vmatpush1.bf16.msra.mxu0 0
        %866 = vmatprep.subr.bf16.mxu0 0
        %867 = vmatpush1.bf16.msra.mxu0 0
        %868 = vmatprep.subr.bf16.mxu0 0
        %869 = vmatpush1.bf16.msra.mxu0 0
        %870 = vmatprep.subr.bf16.mxu0 0
        %871 = vmatpush1.bf16.msra.mxu0 0
        %872 = vmatprep.subr.bf16.mxu0 0
        %873 = vmatpush1.bf16.msra.mxu0 0
        %874 = vmatprep.subr.bf16.mxu0 0
        %875 = vmatpush1.bf16.msra.mxu0 0
        %876 = vmatprep.subr.bf16.mxu0 0
        %877 = vmatpush1.bf16.msra.mxu0 0
        %878 = vmatprep.subr.bf16.mxu0 0
        %879 = vmatpush1.bf16.msra.mxu0 0
        %880 = vmatprep.subr.bf16.mxu0 0
        %881 = vmatpush1.bf16.msra.mxu0 0
        %882 = vmatprep.mubr.bf16.mxu0 0
        %883 = vmatmul.mubr.bf16.gmra.mrb[0].mxu0 %v848
        %v884 = vpop.f32.mrb[0].mxu0
        %v885 = vadd.f32 %v815, %v884
        %v886 = vpop.f32.mrb[0].mxu0
        %v887 = vpop.f32.mrb[0].mxu0
        %v888 = vadd.f32 %v815, %v887
        %v889 = vpop.f32.mrb[0].mxu0
        %890 = vdwg.mxu0
        %v899 = vunpack.c.l.b16 %v795
        %v900 = vunpack.c.l.b16 %v796
        %v901 = vunpack.c.l.b16 %v797
        %v902 = vunpack.c.l.b16 %v798
        %v903 = vunpack.c.l.b16 %v799
        %v904 = vunpack.c.l.b16 %v800
        %v905 = vunpack.c.l.b16 %v801
        %v906 = vunpack.c.l.b16 %v802
        %v907 = vpack.c.b16 %v900, %v899
        %v908 = vpack.c.b16 %v902, %v901
        %v909 = vpack.c.b16 %v904, %v903
        %v910 = vpack.c.b16 %v906, %v905
        %v916 = vsel %vm846, 0, 0
        %918 = vmatprep.subr.bf16.mxu0 0
        %919 = vmatpush1.bf16.msra.mxu0 %v907
        %920 = vmatprep.subr.bf16.mxu0 0
        %921 = vmatpush1.bf16.msra.mxu0 %v908
        %922 = vmatprep.subr.bf16.mxu0 0
        %923 = vmatpush1.bf16.msra.mxu0 %v909
        %924 = vmatprep.subr.bf16.mxu0 0
        %925 = vmatpush1.bf16.msra.mxu0 %v910
        %926 = vmatprep.subr.bf16.mxu0 0
        %927 = vmatpush1.bf16.msra.mxu0 0
        %928 = vmatprep.subr.bf16.mxu0 0
        %929 = vmatpush1.bf16.msra.mxu0 0
        %930 = vmatprep.subr.bf16.mxu0 0
        %931 = vmatpush1.bf16.msra.mxu0 0
        %932 = vmatprep.subr.bf16.mxu0 0
        %933 = vmatpush1.bf16.msra.mxu0 0
        %934 = vmatprep.subr.bf16.mxu0 0
        %935 = vmatpush1.bf16.msra.mxu0 0
        %936 = vmatprep.subr.bf16.mxu0 0
        %937 = vmatpush1.bf16.msra.mxu0 0
        %938 = vmatprep.subr.bf16.mxu0 0
        %939 = vmatpush1.bf16.msra.mxu0 0
        %940 = vmatprep.subr.bf16.mxu0 0
        %941 = vmatpush1.bf16.msra.mxu0 0
        %942 = vmatprep.subr.bf16.mxu0 0
        %943 = vmatpush1.bf16.msra.mxu0 0
        %944 = vmatprep.subr.bf16.mxu0 0
        %945 = vmatpush1.bf16.msra.mxu0 0
        %946 = vmatprep.subr.bf16.mxu0 0
        %947 = vmatpush1.bf16.msra.mxu0 0
        %948 = vmatprep.subr.bf16.mxu0 0
        %949 = vmatpush1.bf16.msra.mxu0 0
        %950 = vmatprep.mubr.bf16.mxu0 0
        %951 = vmatmul.mubr.bf16.gmra.mrb[0].mxu0 %v916
        %v952 = vpop.f32.mrb[0].mxu0
        %v953 = vadd.f32 0.0, %v952
        %v954 = vpop.f32.mrb[0].mxu0
        %v955 = vpop.f32.mrb[0].mxu0
        %v956 = vpop.f32.mrb[0].mxu0
        %957 = vdwg.mxu0
        %v959 = vrot.slane %v953, 1
        %v962 = vadd.f32 %v885, %v953
        %v963 = vadd.f32 %v888, %v959
        %v964 = vtanh.pop %v962
        %v965 = vtanh.pop %v963
        %v974 = vunpack.c.l.b16 %v803
        %v975 = vunpack.c.l.b16 %v804
        %v976 = vunpack.c.l.b16 %v805
        %v977 = vunpack.c.l.b16 %v806
        %v978 = vunpack.c.l.b16 %v807
        %v979 = vunpack.c.l.b16 %v808
        %v980 = vunpack.c.l.b16 %v809
        %v981 = vunpack.c.l.b16 %v810
        %v982 = vpack.c.b16 %v975, %v974
        %v983 = vpack.c.b16 %v977, %v976
        %v984 = vpack.c.b16 %v979, %v978
        %v985 = vpack.c.b16 %v981, %v980
        %990 = vmatprep.subr.bf16.mxu0 0
        %991 = vmatpush1.bf16.msra.mxu0 %v982
        %992 = vmatprep.subr.bf16.mxu0 0
        %993 = vmatpush1.bf16.msra.mxu0 %v983
        %994 = vmatprep.subr.bf16.mxu0 0
        %995 = vmatpush1.bf16.msra.mxu0 %v984
        %996 = vmatprep.subr.bf16.mxu0 0
        %997 = vmatpush1.bf16.msra.mxu0 %v985
        %998 = vmatprep.subr.bf16.mxu0 0
        %999 = vmatpush1.bf16.msra.mxu0 0
        %1000 = vmatprep.subr.bf16.mxu0 0
        %1001 = vmatpush1.bf16.msra.mxu0 0
        %1002 = vmatprep.subr.bf16.mxu0 0
        %1003 = vmatpush1.bf16.msra.mxu0 0
        %1004 = vmatprep.subr.bf16.mxu0 0
        %1005 = vmatpush1.bf16.msra.mxu0 0
        %1006 = vmatprep.subr.bf16.mxu0 0
        %1007 = vmatpush1.bf16.msra.mxu0 0
        %1008 = vmatprep.subr.bf16.mxu0 0
        %1009 = vmatpush1.bf16.msra.mxu0 0
        %1010 = vmatprep.subr.bf16.mxu0 0
        %1011 = vmatpush1.bf16.msra.mxu0 0
        %1012 = vmatprep.subr.bf16.mxu0 0
        %1013 = vmatpush1.bf16.msra.mxu0 0
        %1014 = vmatprep.subr.bf16.mxu0 0
        %1015 = vmatpush1.bf16.msra.mxu0 0
        %1016 = vmatprep.subr.bf16.mxu0 0
        %1017 = vmatpush1.bf16.msra.mxu0 0
        %1018 = vmatprep.subr.bf16.mxu0 0
        %1019 = vmatpush1.bf16.msra.mxu0 0
        %1020 = vmatprep.subr.bf16.mxu0 0
        %1021 = vmatpush1.bf16.msra.mxu0 0
        %1022 = vmatprep.mubr.bf16.mxu0 0
        %1023 = vmatmul.mubr.bf16.gmra.mrb[0].mxu0 %v916
        %v1024 = vpop.f32.mrb[0].mxu0
        %v1025 = vadd.f32 0.0, %v1024
        %v1026 = vpop.f32.mrb[0].mxu0
        %v1027 = vpop.f32.mrb[0].mxu0
        %v1028 = vpop.f32.mrb[0].mxu0
        %1029 = vdwg.mxu0
        %v1031 = vrot.slane %v1025, 1
        %v1032 = vrot.slane %v1025, 2
        %1033 = vrot.lane.b32.xlu0 %v1031, 64
        %v1034 = vpop.permute.xlu0 %1033
        %1035 = vrot.lane.b32.xlu0 %v1032, 64
        %v1036 = vpop.permute.xlu0 %1035
        %v1039 = vadd.f32 %v885, %v1034
        %v1040 = vadd.f32 %v888, %v1036
        %v1041 = vtanh.pop %v1039
        %v1042 = vtanh.pop %v1040
        %vm1043 = vcmask 516096
        %1044 = vst.msk [vmem:[#allocation2] sm:$0x1] %vm1043, %v964
        %1045 = vst.msk [vmem:[#allocation2 + $0x8] sm:$0x1] %vm1043, %v965
        %1048 = vrot.lane.b32.xlu0 %v1041, 64
        %v1049 = vpop.permute.xlu0 %1048
        %1050 = vrot.lane.b32.xlu0 %v1042, 64
        %v1051 = vpop.permute.xlu0 %1050
        %vm1054 = vcmask 523271
        %1055 = vst.msk [vmem:[#allocation3] sm:$0x80] %vm1054, %v1049
        %1056 = vst.msk [vmem:[#allocation3 + $0x8] sm:$0x80] %vm1054, %v1051
        %v1057 = vpack.c.bf16 %v964, %v964
        %v1058 = vpack.c.bf16 %v965, %v965
        %v1061 = vunpack.c.l.b16 %v1057
        %v1062 = vunpack.c.l.b16 %v1058
        %v1063 = vrot.slane %v1062, 7
        %v1064 = vsel %vm679, %v1063, %v1061
        %v1065 = vpack.c.b16 %v1064, %v1064
        %v1067 = vsel %vm846, %v1065, 0
        %1069 = vmatprep.subr.bf16.mxu0 0
        %1070 = vmatpush1.bf16.msra.mxu0 %v907
        %1071 = vmatprep.subr.bf16.mxu0 0
        %1072 = vmatpush1.bf16.msra.mxu0 %v908
        %1073 = vmatprep.subr.bf16.mxu0 0
        %1074 = vmatpush1.bf16.msra.mxu0 %v909
        %1075 = vmatprep.subr.bf16.mxu0 0
        %1076 = vmatpush1.bf16.msra.mxu0 %v910
        %1077 = vmatprep.subr.bf16.mxu0 0
        %1078 = vmatpush1.bf16.msra.mxu0 0
        %1079 = vmatprep.subr.bf16.mxu0 0
        %1080 = vmatpush1.bf16.msra.mxu0 0
        %1081 = vmatprep.subr.bf16.mxu0 0
        %1082 = vmatpush1.bf16.msra.mxu0 0
        %1083 = vmatprep.subr.bf16.mxu0 0
        %1084 = vmatpush1.bf16.msra.mxu0 0
        %1085 = vmatprep.subr.bf16.mxu0 0
        %1086 = vmatpush1.bf16.msra.mxu0 0
        %1087 = vmatprep.subr.bf16.mxu0 0
        %1088 = vmatpush1.bf16.msra.mxu0 0
        %1089 = vmatprep.subr.bf16.mxu0 0
        %1090 = vmatpush1.bf16.msra.mxu0 0
        %1091 = vmatprep.subr.bf16.mxu0 0
        %1092 = vmatpush1.bf16.msra.mxu0 0
        %1093 = vmatprep.subr.bf16.mxu0 0
        %1094 = vmatpush1.bf16.msra.mxu0 0
        %1095 = vmatprep.subr.bf16.mxu0 0
        %1096 = vmatpush1.bf16.msra.mxu0 0
        %1097 = vmatprep.subr.bf16.mxu0 0
        %1098 = vmatpush1.bf16.msra.mxu0 0
        %1099 = vmatprep.subr.bf16.mxu0 0
        %1100 = vmatpush1.bf16.msra.mxu0 0
        %1101 = vmatprep.mubr.bf16.mxu0 0
        %1102 = vmatmul.mubr.bf16.gmra.mrb[0].mxu0 %v1067
        %v1103 = vpop.f32.mrb[0].mxu0
        %v1104 = vadd.f32 0.0, %v1103
        %v1105 = vpop.f32.mrb[0].mxu0
        %v1106 = vpop.f32.mrb[0].mxu0
        %v1107 = vpop.f32.mrb[0].mxu0
        %1108 = vdwg.mxu0
        %v1110 = vrot.slane %v1104, 7
        %v1113 = vadd.f32 %v885, %v1110
        %v1114 = vadd.f32 %v888, %v1104
        %v1115 = vtanh.pop %v1113
        %v1116 = vtanh.pop %v1114
        %v1117 = vpack.c.bf16 %v1041, %v1041
        %v1118 = vpack.c.bf16 %v1042, %v1042
        %v1121 = vunpack.c.l.b16 %v1117
        %v1122 = vunpack.c.l.b16 %v1118
        %v1123 = vrot.slane %v1121, 7
        %v1124 = vrot.slane %v1122, 6
        %v1125 = vsel %vm679, %v1124, %v1123
        %v1126 = vpack.c.b16 %v1125, %v1125
        %1127 = vrot.lane.b32.xlu0 %v1126, 64
        %v1128 = vpop.permute.xlu0 %1127
        %v1130 = vsel %vm846, %v1128, 0
        %1132 = vmatprep.subr.bf16.mxu0 0
        %1133 = vmatpush1.bf16.msra.mxu0 %v982
        %1134 = vmatprep.subr.bf16.mxu0 0
        %1135 = vmatpush1.bf16.msra.mxu0 %v983
        %1136 = vmatprep.subr.bf16.mxu0 0
        %1137 = vmatpush1.bf16.msra.mxu0 %v984
        %1138 = vmatprep.subr.bf16.mxu0 0
        %1139 = vmatpush1.bf16.msra.mxu0 %v985
        %1140 = vmatprep.subr.bf16.mxu0 0
        %1141 = vmatpush1.bf16.msra.mxu0 0
        %1142 = vmatprep.subr.bf16.mxu0 0
        %1143 = vmatpush1.bf16.msra.mxu0 0
        %1144 = vmatprep.subr.bf16.mxu0 0
        %1145 = vmatpush1.bf16.msra.mxu0 0
        %1146 = vmatprep.subr.bf16.mxu0 0
        %1147 = vmatpush1.bf16.msra.mxu0 0
        %1148 = vmatprep.subr.bf16.mxu0 0
        %1149 = vmatpush1.bf16.msra.mxu0 0
        %1150 = vmatprep.subr.bf16.mxu0 0
        %1151 = vmatpush1.bf16.msra.mxu0 0
        %1152 = vmatprep.subr.bf16.mxu0 0
        %1153 = vmatpush1.bf16.msra.mxu0 0
        %1154 = vmatprep.subr.bf16.mxu0 0
        %1155 = vmatpush1.bf16.msra.mxu0 0
        %1156 = vmatprep.subr.bf16.mxu0 0
        %1157 = vmatpush1.bf16.msra.mxu0 0
        %1158 = vmatprep.subr.bf16.mxu0 0
        %1159 = vmatpush1.bf16.msra.mxu0 0
        %1160 = vmatprep.subr.bf16.mxu0 0
        %1161 = vmatpush1.bf16.msra.mxu0 0
        %1162 = vmatprep.subr.bf16.mxu0 0
        %1163 = vmatpush1.bf16.msra.mxu0 0
        %1164 = vmatprep.mubr.bf16.mxu0 0
        %1165 = vmatmul.mubr.bf16.gmra.mrb[0].mxu0 %v1130
        %v1166 = vpop.f32.mrb[0].mxu0
        %v1167 = vadd.f32 0.0, %v1166
        %v1168 = vpop.f32.mrb[0].mxu0
        %v1169 = vpop.f32.mrb[0].mxu0
        %v1170 = vpop.f32.mrb[0].mxu0
        %1171 = vdwg.mxu0
        %v1173 = vrot.slane %v1167, 2
        %v1174 = vrot.slane %v1167, 3
        %1175 = vrot.lane.b32.xlu0 %v1173, 64
        %v1176 = vpop.permute.xlu0 %1175
        %1177 = vrot.lane.b32.xlu0 %v1174, 64
        %v1178 = vpop.permute.xlu0 %1177
        %v1181 = vadd.f32 %v885, %v1176
        %v1182 = vadd.f32 %v888, %v1178
        %v1183 = vtanh.pop %v1181
        %v1184 = vtanh.pop %v1182
        %vm1185 = vcmask 517121
        %1186 = vst.msk [vmem:[#allocation2] sm:$0x2] %vm1185, %v1115
        %1187 = vst.msk [vmem:[#allocation2 + $0x8] sm:$0x2] %vm1185, %v1116
        %1190 = vrot.lane.b32.xlu0 %v1183, 64
        %v1191 = vpop.permute.xlu0 %1190
        %1192 = vrot.lane.b32.xlu0 %v1184, 64
        %v1193 = vpop.permute.xlu0 %1192
        %vm1196 = vcmask 522246
        %1197 = vst.msk [vmem:[#allocation3] sm:$0x40] %vm1196, %v1191
        %1198 = vst.msk [vmem:[#allocation3 + $0x8] sm:$0x40] %vm1196, %v1193
        %v1199 = vpack.c.bf16 %v1115, %v1115
        %v1200 = vpack.c.bf16 %v1116, %v1116
        %v1203 = vunpack.c.l.b16 %v1199
        %v1204 = vunpack.c.l.b16 %v1200
        %v1205 = vrot.slane %v1203, 1
        %v1206 = vsel %vm679, %v1204, %v1205
        %v1207 = vpack.c.b16 %v1206, %v1206
        %v1209 = vsel %vm846, %v1207, 0
        %1211 = vmatprep.subr.bf16.mxu0 0
        %1212 = vmatpush1.bf16.msra.mxu0 %v907
        %1213 = vmatprep.subr.bf16.mxu0 0
        %1214 = vmatpush1.bf16.msra.mxu0 %v908
        %1215 = vmatprep.subr.bf16.mxu0 0
        %1216 = vmatpush1.bf16.msra.mxu0 %v909
        %1217 = vmatprep.subr.bf16.mxu0 0
        %1218 = vmatpush1.bf16.msra.mxu0 %v910
        %1219 = vmatprep.subr.bf16.mxu0 0
        %1220 = vmatpush1.bf16.msra.mxu0 0
        %1221 = vmatprep.subr.bf16.mxu0 0
        %1222 = vmatpush1.bf16.msra.mxu0 0
        %1223 = vmatprep.subr.bf16.mxu0 0
        %1224 = vmatpush1.bf16.msra.mxu0 0
        %1225 = vmatprep.subr.bf16.mxu0 0
        %1226 = vmatpush1.bf16.msra.mxu0 0
        %1227 = vmatprep.subr.bf16.mxu0 0
        %1228 = vmatpush1.bf16.msra.mxu0 0
        %1229 = vmatprep.subr.bf16.mxu0 0
        %1230 = vmatpush1.bf16.msra.mxu0 0
        %1231 = vmatprep.subr.bf16.mxu0 0
        %1232 = vmatpush1.bf16.msra.mxu0 0
        %1233 = vmatprep.subr.bf16.mxu0 0
        %1234 = vmatpush1.bf16.msra.mxu0 0
        %1235 = vmatprep.subr.bf16.mxu0 0
        %1236 = vmatpush1.bf16.msra.mxu0 0
        %1237 = vmatprep.subr.bf16.mxu0 0
        %1238 = vmatpush1.bf16.msra.mxu0 0
        %1239 = vmatprep.subr.bf16.mxu0 0
        %1240 = vmatpush1.bf16.msra.mxu0 0
        %1241 = vmatprep.subr.bf16.mxu0 0
        %1242 = vmatpush1.bf16.msra.mxu0 0
        %1243 = vmatprep.mubr.bf16.mxu0 0
        %1244 = vmatmul.mubr.bf16.gmra.mrb[0].mxu0 %v1209
        %v1245 = vpop.f32.mrb[0].mxu0
        %v1246 = vadd.f32 0.0, %v1245
        %v1247 = vpop.f32.mrb[0].mxu0
        %v1248 = vpop.f32.mrb[0].mxu0
        %v1249 = vpop.f32.mrb[0].mxu0
        %1250 = vdwg.mxu0
        %v1252 = vrot.slane %v1246, 6
        %v1253 = vrot.slane %v1246, 7
        %v1256 = vadd.f32 %v885, %v1252
        %v1257 = vadd.f32 %v888, %v1253
        %v1258 = vtanh.pop %v1256
        %v1259 = vtanh.pop %v1257
        %v1260 = vpack.c.bf16 %v1183, %v1183
        %v1261 = vpack.c.bf16 %v1184, %v1184
        %v1264 = vunpack.c.l.b16 %v1260
        %v1265 = vunpack.c.l.b16 %v1261
        %v1266 = vrot.slane %v1264, 6
        %v1267 = vrot.slane %v1265, 5
        %v1268 = vsel %vm679, %v1267, %v1266
        %v1269 = vpack.c.b16 %v1268, %v1268
        %1270 = vrot.lane.b32.xlu0 %v1269, 64
        %v1271 = vpop.permute.xlu0 %1270
        %v1273 = vsel %vm846, %v1271, 0
        %1275 = vmatprep.subr.bf16.mxu0 0
        %1276 = vmatpush1.bf16.msra.mxu0 %v982
        %1277 = vmatprep.subr.bf16.mxu0 0
        %1278 = vmatpush1.bf16.msra.mxu0 %v983
        %1279 = vmatprep.subr.bf16.mxu0 0
        %1280 = vmatpush1.bf16.msra.mxu0 %v984
        %1281 = vmatprep.subr.bf16.mxu0 0
        %1282 = vmatpush1.bf16.msra.mxu0 %v985
        %1283 = vmatprep.subr.bf16.mxu0 0
        %1284 = vmatpush1.bf16.msra.mxu0 0
        %1285 = vmatprep.subr.bf16.mxu0 0
        %1286 = vmatpush1.bf16.msra.mxu0 0
        %1287 = vmatprep.subr.bf16.mxu0 0
        %1288 = vmatpush1.bf16.msra.mxu0 0
        %1289 = vmatprep.subr.bf16.mxu0 0
        %1290 = vmatpush1.bf16.msra.mxu0 0
        %1291 = vmatprep.subr.bf16.mxu0 0
        %1292 = vmatpush1.bf16.msra.mxu0 0
        %1293 = vmatprep.subr.bf16.mxu0 0
        %1294 = vmatpush1.bf16.msra.mxu0 0
        %1295 = vmatprep.subr.bf16.mxu0 0
        %1296 = vmatpush1.bf16.msra.mxu0 0
        %1297 = vmatprep.subr.bf16.mxu0 0
        %1298 = vmatpush1.bf16.msra.mxu0 0
        %1299 = vmatprep.subr.bf16.mxu0 0
        %1300 = vmatpush1.bf16.msra.mxu0 0
        %1301 = vmatprep.subr.bf16.mxu0 0
        %1302 = vmatpush1.bf16.msra.mxu0 0
        %1303 = vmatprep.subr.bf16.mxu0 0
        %1304 = vmatpush1.bf16.msra.mxu0 0
        %1305 = vmatprep.subr.bf16.mxu0 0
        %1306 = vmatpush1.bf16.msra.mxu0 0
        %1307 = vmatprep.mubr.bf16.mxu0 0
        %1308 = vmatmul.mubr.bf16.gmra.mrb[0].mxu0 %v1273
        %v1309 = vpop.f32.mrb[0].mxu0
        %v1310 = vadd.f32 0.0, %v1309
        %v1311 = vpop.f32.mrb[0].mxu0
        %v1312 = vpop.f32.mrb[0].mxu0
        %v1313 = vpop.f32.mrb[0].mxu0
        %1314 = vdwg.mxu0
        %v1316 = vrot.slane %v1310, 3
        %v1317 = vrot.slane %v1310, 4
        %1318 = vrot.lane.b32.xlu0 %v1316, 64
        %v1319 = vpop.permute.xlu0 %1318
        %1320 = vrot.lane.b32.xlu0 %v1317, 64
        %v1321 = vpop.permute.xlu0 %1320
        %v1324 = vadd.f32 %v885, %v1319
        %v1325 = vadd.f32 %v888, %v1321
        %v1326 = vtanh.pop %v1324
        %v1327 = vtanh.pop %v1325
        %vm1328 = vcmask 518146
        %1329 = vst.msk [vmem:[#allocation2] sm:$0x4] %vm1328, %v1258
        %1330 = vst.msk [vmem:[#allocation2 + $0x8] sm:$0x4] %vm1328, %v1259
        %1333 = vrot.lane.b32.xlu0 %v1326, 64
        %v1334 = vpop.permute.xlu0 %1333
        %1335 = vrot.lane.b32.xlu0 %v1327, 64
        %v1336 = vpop.permute.xlu0 %1335
        %vm1339 = vcmask 521221
        %1340 = vst.msk [vmem:[#allocation3] sm:$0x20] %vm1339, %v1334
        %1341 = vst.msk [vmem:[#allocation3 + $0x8] sm:$0x20] %vm1339, %v1336
        %v1342 = vpack.c.bf16 %v1258, %v1258
        %v1343 = vpack.c.bf16 %v1259, %v1259
        %v1346 = vunpack.c.l.b16 %v1342
        %v1347 = vunpack.c.l.b16 %v1343
        %v1348 = vrot.slane %v1346, 2
        %v1349 = vrot.slane %v1347, 1
        %v1350 = vsel %vm679, %v1349, %v1348
        %v1351 = vpack.c.b16 %v1350, %v1350
        %v1353 = vsel %vm846, %v1351, 0
        %1355 = vmatprep.subr.bf16.mxu0 0
        %1356 = vmatpush1.bf16.msra.mxu0 %v907
        %1357 = vmatprep.subr.bf16.mxu0 0
        %1358 = vmatpush1.bf16.msra.mxu0 %v908
        %1359 = vmatprep.subr.bf16.mxu0 0
        %1360 = vmatpush1.bf16.msra.mxu0 %v909
        %1361 = vmatprep.subr.bf16.mxu0 0
        %1362 = vmatpush1.bf16.msra.mxu0 %v910
        %1363 = vmatprep.subr.bf16.mxu0 0
        %1364 = vmatpush1.bf16.msra.mxu0 0
        %1365 = vmatprep.subr.bf16.mxu0 0
        %1366 = vmatpush1.bf16.msra.mxu0 0
        %1367 = vmatprep.subr.bf16.mxu0 0
        %1368 = vmatpush1.bf16.msra.mxu0 0
        %1369 = vmatprep.subr.bf16.mxu0 0
        %1370 = vmatpush1.bf16.msra.mxu0 0
        %1371 = vmatprep.subr.bf16.mxu0 0
        %1372 = vmatpush1.bf16.msra.mxu0 0
        %1373 = vmatprep.subr.bf16.mxu0 0
        %1374 = vmatpush1.bf16.msra.mxu0 0
        %1375 = vmatprep.subr.bf16.mxu0 0
        %1376 = vmatpush1.bf16.msra.mxu0 0
        %1377 = vmatprep.subr.bf16.mxu0 0
        %1378 = vmatpush1.bf16.msra.mxu0 0
        %1379 = vmatprep.subr.bf16.mxu0 0
        %1380 = vmatpush1.bf16.msra.mxu0 0
        %1381 = vmatprep.subr.bf16.mxu0 0
        %1382 = vmatpush1.bf16.msra.mxu0 0
        %1383 = vmatprep.subr.bf16.mxu0 0
        %1384 = vmatpush1.bf16.msra.mxu0 0
        %1385 = vmatprep.subr.bf16.mxu0 0
        %1386 = vmatpush1.bf16.msra.mxu0 0
        %1387 = vmatprep.mubr.bf16.mxu0 0
        %1388 = vmatmul.mubr.bf16.gmra.mrb[0].mxu0 %v1353
        %v1389 = vpop.f32.mrb[0].mxu0
        %v1390 = vadd.f32 0.0, %v1389
        %v1391 = vpop.f32.mrb[0].mxu0
        %v1392 = vpop.f32.mrb[0].mxu0
        %v1393 = vpop.f32.mrb[0].mxu0
        %1394 = vdwg.mxu0
        %v1396 = vrot.slane %v1390, 5
        %v1397 = vrot.slane %v1390, 6
        %v1400 = vadd.f32 %v885, %v1396
        %v1401 = vadd.f32 %v888, %v1397
        %v1402 = vtanh.pop %v1400
        %v1403 = vtanh.pop %v1401
        %v1404 = vpack.c.bf16 %v1326, %v1326
        %v1405 = vpack.c.bf16 %v1327, %v1327
        %v1408 = vunpack.c.l.b16 %v1404
        %v1409 = vunpack.c.l.b16 %v1405
        %v1410 = vrot.slane %v1408, 5
        %v1411 = vrot.slane %v1409, 4
        %v1412 = vsel %vm679, %v1411, %v1410
        %v1413 = vpack.c.b16 %v1412, %v1412
        %1414 = vrot.lane.b32.xlu0 %v1413, 64
        %v1415 = vpop.permute.xlu0 %1414
        %v1417 = vsel %vm846, %v1415, 0
        %1419 = vmatprep.subr.bf16.mxu0 0
        %1420 = vmatpush1.bf16.msra.mxu0 %v982
        %1421 = vmatprep.subr.bf16.mxu0 0
        %1422 = vmatpush1.bf16.msra.mxu0 %v983
        %1423 = vmatprep.subr.bf16.mxu0 0
        %1424 = vmatpush1.bf16.msra.mxu0 %v984
        %1425 = vmatprep.subr.bf16.mxu0 0
        %1426 = vmatpush1.bf16.msra.mxu0 %v985
        %1427 = vmatprep.subr.bf16.mxu0 0
        %1428 = vmatpush1.bf16.msra.mxu0 0
        %1429 = vmatprep.subr.bf16.mxu0 0
        %1430 = vmatpush1.bf16.msra.mxu0 0
        %1431 = vmatprep.subr.bf16.mxu0 0
        %1432 = vmatpush1.bf16.msra.mxu0 0
        %1433 = vmatprep.subr.bf16.mxu0 0
        %1434 = vmatpush1.bf16.msra.mxu0 0
        %1435 = vmatprep.subr.bf16.mxu0 0
        %1436 = vmatpush1.bf16.msra.mxu0 0
        %1437 = vmatprep.subr.bf16.mxu0 0
        %1438 = vmatpush1.bf16.msra.mxu0 0
        %1439 = vmatprep.subr.bf16.mxu0 0
        %1440 = vmatpush1.bf16.msra.mxu0 0
        %1441 = vmatprep.subr.bf16.mxu0 0
        %1442 = vmatpush1.bf16.msra.mxu0 0
        %1443 = vmatprep.subr.bf16.mxu0 0
        %1444 = vmatpush1.bf16.msra.mxu0 0
        %1445 = vmatprep.subr.bf16.mxu0 0
        %1446 = vmatpush1.bf16.msra.mxu0 0
        %1447 = vmatprep.subr.bf16.mxu0 0
        %1448 = vmatpush1.bf16.msra.mxu0 0
        %1449 = vmatprep.subr.bf16.mxu0 0
        %1450 = vmatpush1.bf16.msra.mxu0 0
        %1451 = vmatprep.mubr.bf16.mxu0 0
        %1452 = vmatmul.mubr.bf16.gmra.mrb[0].mxu0 %v1417
        %v1453 = vpop.f32.mrb[0].mxu0
        %v1454 = vadd.f32 0.0, %v1453
        %v1455 = vpop.f32.mrb[0].mxu0
        %v1456 = vpop.f32.mrb[0].mxu0
        %v1457 = vpop.f32.mrb[0].mxu0
        %1458 = vdwg.mxu0
        %v1460 = vrot.slane %v1454, 4
        %v1461 = vrot.slane %v1454, 5
        %1462 = vrot.lane.b32.xlu0 %v1460, 64
        %v1463 = vpop.permute.xlu0 %1462
        %1464 = vrot.lane.b32.xlu0 %v1461, 64
        %v1465 = vpop.permute.xlu0 %1464
        %v1468 = vadd.f32 %v885, %v1463
        %v1469 = vadd.f32 %v888, %v1465
        %v1470 = vtanh.pop %v1468
        %v1471 = vtanh.pop %v1469
        %vm1472 = vcmask 519171
        %1473 = vst.msk [vmem:[#allocation2] sm:$0x8] %vm1472, %v1402
        %1474 = vst.msk [vmem:[#allocation2 + $0x8] sm:$0x8] %vm1472, %v1403
        %1477 = vrot.lane.b32.xlu0 %v1470, 64
        %v1478 = vpop.permute.xlu0 %1477
        %1479 = vrot.lane.b32.xlu0 %v1471, 64
        %v1480 = vpop.permute.xlu0 %1479
        %vm1483 = vcmask 520196
        %1484 = vst.msk [vmem:[#allocation3] sm:$0x10] %vm1483, %v1478
        %1485 = vst.msk [vmem:[#allocation3 + $0x8] sm:$0x10] %vm1483, %v1480
        %v1486 = vpack.c.bf16 %v1402, %v1402
        %v1487 = vpack.c.bf16 %v1403, %v1403
        %v1490 = vunpack.c.l.b16 %v1486
        %v1491 = vunpack.c.l.b16 %v1487
        %v1492 = vrot.slane %v1490, 3
        %v1493 = vrot.slane %v1491, 2
        %v1494 = vsel %vm679, %v1493, %v1492
        %v1495 = vpack.c.b16 %v1494, %v1494
        %v1497 = vsel %vm846, %v1495, 0
        %1499 = vmatprep.subr.bf16.mxu0 0
        %1500 = vmatpush1.bf16.msra.mxu0 %v907
        %1501 = vmatprep.subr.bf16.mxu0 0
        %1502 = vmatpush1.bf16.msra.mxu0 %v908
        %1503 = vmatprep.subr.bf16.mxu0 0
        %1504 = vmatpush1.bf16.msra.mxu0 %v909
        %1505 = vmatprep.subr.bf16.mxu0 0
        %1506 = vmatpush1.bf16.msra.mxu0 %v910
        %1507 = vmatprep.subr.bf16.mxu0 0
        %1508 = vmatpush1.bf16.msra.mxu0 0
        %1509 = vmatprep.subr.bf16.mxu0 0
        %1510 = vmatpush1.bf16.msra.mxu0 0
        %1511 = vmatprep.subr.bf16.mxu0 0
        %1512 = vmatpush1.bf16.msra.mxu0 0
        %1513 = vmatprep.subr.bf16.mxu0 0
        %1514 = vmatpush1.bf16.msra.mxu0 0
        %1515 = vmatprep.subr.bf16.mxu0 0
        %1516 = vmatpush1.bf16.msra.mxu0 0
        %1517 = vmatprep.subr.bf16.mxu0 0
        %1518 = vmatpush1.bf16.msra.mxu0 0
        %1519 = vmatprep.subr.bf16.mxu0 0
        %1520 = vmatpush1.bf16.msra.mxu0 0
        %1521 = vmatprep.subr.bf16.mxu0 0
        %1522 = vmatpush1.bf16.msra.mxu0 0
        %1523 = vmatprep.subr.bf16.mxu0 0
        %1524 = vmatpush1.bf16.msra.mxu0 0
        %1525 = vmatprep.subr.bf16.mxu0 0
        %1526 = vmatpush1.bf16.msra.mxu0 0
        %1527 = vmatprep.subr.bf16.mxu0 0
        %1528 = vmatpush1.bf16.msra.mxu0 0
        %1529 = vmatprep.subr.bf16.mxu0 0
        %1530 = vmatpush1.bf16.msra.mxu0 0
        %1531 = vmatprep.mubr.bf16.mxu0 0
        %1532 = vmatmul.mubr.bf16.gmra.mrb[0].mxu0 %v1497
        %v1533 = vpop.f32.mrb[0].mxu0
        %v1534 = vadd.f32 0.0, %v1533
        %v1535 = vpop.f32.mrb[0].mxu0
        %v1536 = vpop.f32.mrb[0].mxu0
        %v1537 = vpop.f32.mrb[0].mxu0
        %1538 = vdwg.mxu0
        %v1540 = vrot.slane %v1534, 4
        %v1541 = vrot.slane %v1534, 5
        %v1544 = vadd.f32 %v885, %v1540
        %v1545 = vadd.f32 %v888, %v1541
        %v1546 = vtanh.pop %v1544
        %v1547 = vtanh.pop %v1545
        %v1548 = vpack.c.bf16 %v1470, %v1470
        %v1549 = vpack.c.bf16 %v1471, %v1471
        %v1552 = vunpack.c.l.b16 %v1548
        %v1553 = vunpack.c.l.b16 %v1549
        %v1554 = vrot.slane %v1552, 4
        %v1555 = vrot.slane %v1553, 3
        %v1556 = vsel %vm679, %v1555, %v1554
        %v1557 = vpack.c.b16 %v1556, %v1556
        %1558 = vrot.lane.b32.xlu0 %v1557, 64
        %v1559 = vpop.permute.xlu0 %1558
        %v1561 = vsel %vm846, %v1559, 0
        %1563 = vmatprep.subr.bf16.mxu0 0
        %1564 = vmatpush1.bf16.msra.mxu0 %v982
        %1565 = vmatprep.subr.bf16.mxu0 0
        %1566 = vmatpush1.bf16.msra.mxu0 %v983
        %1567 = vmatprep.subr.bf16.mxu0 0
        %1568 = vmatpush1.bf16.msra.mxu0 %v984
        %1569 = vmatprep.subr.bf16.mxu0 0
        %1570 = vmatpush1.bf16.msra.mxu0 %v985
        %1571 = vmatprep.subr.bf16.mxu0 0
        %1572 = vmatpush1.bf16.msra.mxu0 0
        %1573 = vmatprep.subr.bf16.mxu0 0
        %1574 = vmatpush1.bf16.msra.mxu0 0
        %1575 = vmatprep.subr.bf16.mxu0 0
        %1576 = vmatpush1.bf16.msra.mxu0 0
        %1577 = vmatprep.subr.bf16.mxu0 0
        %1578 = vmatpush1.bf16.msra.mxu0 0
        %1579 = vmatprep.subr.bf16.mxu0 0
        %1580 = vmatpush1.bf16.msra.mxu0 0
        %1581 = vmatprep.subr.bf16.mxu0 0
        %1582 = vmatpush1.bf16.msra.mxu0 0
        %1583 = vmatprep.subr.bf16.mxu0 0
        %1584 = vmatpush1.bf16.msra.mxu0 0
        %1585 = vmatprep.subr.bf16.mxu0 0
        %1586 = vmatpush1.bf16.msra.mxu0 0
        %1587 = vmatprep.subr.bf16.mxu0 0
        %1588 = vmatpush1.bf16.msra.mxu0 0
        %1589 = vmatprep.subr.bf16.mxu0 0
        %1590 = vmatpush1.bf16.msra.mxu0 0
        %1591 = vmatprep.subr.bf16.mxu0 0
        %1592 = vmatpush1.bf16.msra.mxu0 0
        %1593 = vmatprep.subr.bf16.mxu0 0
        %1594 = vmatpush1.bf16.msra.mxu0 0
        %1595 = vmatprep.mubr.bf16.mxu0 0
        %1596 = vmatmul.mubr.bf16.gmra.mrb[0].mxu0 %v1561
        %v1597 = vpop.f32.mrb[0].mxu0
        %v1598 = vadd.f32 0.0, %v1597
        %v1599 = vpop.f32.mrb[0].mxu0
        %v1600 = vpop.f32.mrb[0].mxu0
        %v1601 = vpop.f32.mrb[0].mxu0
        %1602 = vdwg.mxu0
        %v1604 = vrot.slane %v1598, 5
        %v1605 = vrot.slane %v1598, 6
        %1606 = vrot.lane.b32.xlu0 %v1604, 64
        %v1607 = vpop.permute.xlu0 %1606
        %1608 = vrot.lane.b32.xlu0 %v1605, 64
        %v1609 = vpop.permute.xlu0 %1608
        %v1612 = vadd.f32 %v885, %v1607
        %v1613 = vadd.f32 %v888, %v1609
        %v1614 = vtanh.pop %v1612
        %v1615 = vtanh.pop %v1613
        %1616 = vst.msk [vmem:[#allocation2] sm:$0x10] %vm1483, %v1546
        %1617 = vst.msk [vmem:[#allocation2 + $0x8] sm:$0x10] %vm1483, %v1547
        %1620 = vrot.lane.b32.xlu0 %v1614, 64
        %v1621 = vpop.permute.xlu0 %1620
        %1622 = vrot.lane.b32.xlu0 %v1615, 64
        %v1623 = vpop.permute.xlu0 %1622
        %1626 = vst.msk [vmem:[#allocation3] sm:$0x8] %vm1472, %v1621
        %1627 = vst.msk [vmem:[#allocation3 + $0x8] sm:$0x8] %vm1472, %v1623
        %v1628 = vpack.c.bf16 %v1546, %v1546
        %v1629 = vpack.c.bf16 %v1547, %v1547
        %v1632 = vunpack.c.l.b16 %v1628
        %v1633 = vunpack.c.l.b16 %v1629
        %v1634 = vrot.slane %v1632, 4
        %v1635 = vrot.slane %v1633, 3
        %v1636 = vsel %vm679, %v1635, %v1634
        %v1637 = vpack.c.b16 %v1636, %v1636
        %v1639 = vsel %vm846, %v1637, 0
        %1641 = vmatprep.subr.bf16.mxu0 0
        %1642 = vmatpush1.bf16.msra.mxu0 %v907
        %1643 = vmatprep.subr.bf16.mxu0 0
        %1644 = vmatpush1.bf16.msra.mxu0 %v908
        %1645 = vmatprep.subr.bf16.mxu0 0
        %1646 = vmatpush1.bf16.msra.mxu0 %v909
        %1647 = vmatprep.subr.bf16.mxu0 0
        %1648 = vmatpush1.bf16.msra.mxu0 %v910
        %1649 = vmatprep.subr.bf16.mxu0 0
        %1650 = vmatpush1.bf16.msra.mxu0 0
        %1651 = vmatprep.subr.bf16.mxu0 0
        %1652 = vmatpush1.bf16.msra.mxu0 0
        %1653 = vmatprep.subr.bf16.mxu0 0
        %1654 = vmatpush1.bf16.msra.mxu0 0
        %1655 = vmatprep.subr.bf16.mxu0 0
        %1656 = vmatpush1.bf16.msra.mxu0 0
        %1657 = vmatprep.subr.bf16.mxu0 0
        %1658 = vmatpush1.bf16.msra.mxu0 0
        %1659 = vmatprep.subr.bf16.mxu0 0
        %1660 = vmatpush1.bf16.msra.mxu0 0
        %1661 = vmatprep.subr.bf16.mxu0 0
        %1662 = vmatpush1.bf16.msra.mxu0 0
        %1663 = vmatprep.subr.bf16.mxu0 0
        %1664 = vmatpush1.bf16.msra.mxu0 0
        %1665 = vmatprep.subr.bf16.mxu0 0
        %1666 = vmatpush1.bf16.msra.mxu0 0
        %1667 = vmatprep.subr.bf16.mxu0 0
        %1668 = vmatpush1.bf16.msra.mxu0 0
        %1669 = vmatprep.subr.bf16.mxu0 0
        %1670 = vmatpush1.bf16.msra.mxu0 0
        %1671 = vmatprep.subr.bf16.mxu0 0
        %1672 = vmatpush1.bf16.msra.mxu0 0
        %1673 = vmatprep.mubr.bf16.mxu0 0
        %1674 = vmatmul.mubr.bf16.gmra.mrb[0].mxu0 %v1639
        %v1675 = vpop.f32.mrb[0].mxu0
        %v1676 = vadd.f32 0.0, %v1675
        %v1677 = vpop.f32.mrb[0].mxu0
        %v1678 = vpop.f32.mrb[0].mxu0
        %v1679 = vpop.f32.mrb[0].mxu0
        %1680 = vdwg.mxu0
        %v1682 = vrot.slane %v1676, 3
        %v1683 = vrot.slane %v1676, 4
        %v1686 = vadd.f32 %v885, %v1682
        %v1687 = vadd.f32 %v888, %v1683
        %v1688 = vtanh.pop %v1686
        %v1689 = vtanh.pop %v1687
        %v1690 = vpack.c.bf16 %v1614, %v1614
        %v1691 = vpack.c.bf16 %v1615, %v1615
        %v1694 = vunpack.c.l.b16 %v1690
        %v1695 = vunpack.c.l.b16 %v1691
        %v1696 = vrot.slane %v1694, 3
        %v1697 = vrot.slane %v1695, 2
        %v1698 = vsel %vm679, %v1697, %v1696
        %v1699 = vpack.c.b16 %v1698, %v1698
        %1700 = vrot.lane.b32.xlu0 %v1699, 64
        %v1701 = vpop.permute.xlu0 %1700
        %v1703 = vsel %vm846, %v1701, 0
        %1705 = vmatprep.subr.bf16.mxu0 0
        %1706 = vmatpush1.bf16.msra.mxu0 %v982
        %1707 = vmatprep.subr.bf16.mxu0 0
        %1708 = vmatpush1.bf16.msra.mxu0 %v983
        %1709 = vmatprep.subr.bf16.mxu0 0
        %1710 = vmatpush1.bf16.msra.mxu0 %v984
        %1711 = vmatprep.subr.bf16.mxu0 0
        %1712 = vmatpush1.bf16.msra.mxu0 %v985
        %1713 = vmatprep.subr.bf16.mxu0 0
        %1714 = vmatpush1.bf16.msra.mxu0 0
        %1715 = vmatprep.subr.bf16.mxu0 0
        %1716 = vmatpush1.bf16.msra.mxu0 0
        %1717 = vmatprep.subr.bf16.mxu0 0
        %1718 = vmatpush1.bf16.msra.mxu0 0
        %1719 = vmatprep.subr.bf16.mxu0 0
        %1720 = vmatpush1.bf16.msra.mxu0 0
        %1721 = vmatprep.subr.bf16.mxu0 0
        %1722 = vmatpush1.bf16.msra.mxu0 0
        %1723 = vmatprep.subr.bf16.mxu0 0
        %1724 = vmatpush1.bf16.msra.mxu0 0
        %1725 = vmatprep.subr.bf16.mxu0 0
        %1726 = vmatpush1.bf16.msra.mxu0 0
        %1727 = vmatprep.subr.bf16.mxu0 0
        %1728 = vmatpush1.bf16.msra.mxu0 0
        %1729 = vmatprep.subr.bf16.mxu0 0
        %1730 = vmatpush1.bf16.msra.mxu0 0
        %1731 = vmatprep.subr.bf16.mxu0 0
        %1732 = vmatpush1.bf16.msra.mxu0 0
        %1733 = vmatprep.subr.bf16.mxu0 0
        %1734 = vmatpush1.bf16.msra.mxu0 0
        %1735 = vmatprep.subr.bf16.mxu0 0
        %1736 = vmatpush1.bf16.msra.mxu0 0
        %1737 = vmatprep.mubr.bf16.mxu0 0
        %1738 = vmatmul.mubr.bf16.gmra.mrb[0].mxu0 %v1703
        %v1739 = vpop.f32.mrb[0].mxu0
        %v1740 = vadd.f32 0.0, %v1739
        %v1741 = vpop.f32.mrb[0].mxu0
        %v1742 = vpop.f32.mrb[0].mxu0
        %v1743 = vpop.f32.mrb[0].mxu0
        %1744 = vdwg.mxu0
        %v1746 = vrot.slane %v1740, 6
        %v1747 = vrot.slane %v1740, 7
        %1748 = vrot.lane.b32.xlu0 %v1746, 64
        %v1749 = vpop.permute.xlu0 %1748
        %1750 = vrot.lane.b32.xlu0 %v1747, 64
        %v1751 = vpop.permute.xlu0 %1750
        %v1754 = vadd.f32 %v885, %v1749
        %v1755 = vadd.f32 %v888, %v1751
        %v1756 = vtanh.pop %v1754
        %v1757 = vtanh.pop %v1755
        %1758 = vst.msk [vmem:[#allocation2] sm:$0x20] %vm1339, %v1688
        %1759 = vst.msk [vmem:[#allocation2 + $0x8] sm:$0x20] %vm1339, %v1689
        %1762 = vrot.lane.b32.xlu0 %v1756, 64
        %v1763 = vpop.permute.xlu0 %1762
        %1764 = vrot.lane.b32.xlu0 %v1757, 64
        %v1765 = vpop.permute.xlu0 %1764
        %1768 = vst.msk [vmem:[#allocation3] sm:$0x4] %vm1328, %v1763
        %1769 = vst.msk [vmem:[#allocation3 + $0x8] sm:$0x4] %vm1328, %v1765
        %v1770 = vpack.c.bf16 %v1688, %v1688
        %v1771 = vpack.c.bf16 %v1689, %v1689
        %v1774 = vunpack.c.l.b16 %v1770
        %v1775 = vunpack.c.l.b16 %v1771
        %v1776 = vrot.slane %v1774, 5
        %v1777 = vrot.slane %v1775, 4
        %v1778 = vsel %vm679, %v1777, %v1776
        %v1779 = vpack.c.b16 %v1778, %v1778
        %v1781 = vsel %vm846, %v1779, 0
        %1783 = vmatprep.subr.bf16.mxu0 0
        %1784 = vmatpush1.bf16.msra.mxu0 %v907
        %1785 = vmatprep.subr.bf16.mxu0 0
        %1786 = vmatpush1.bf16.msra.mxu0 %v908
        %1787 = vmatprep.subr.bf16.mxu0 0
        %1788 = vmatpush1.bf16.msra.mxu0 %v909
        %1789 = vmatprep.subr.bf16.mxu0 0
        %1790 = vmatpush1.bf16.msra.mxu0 %v910
        %1791 = vmatprep.subr.bf16.mxu0 0
        %1792 = vmatpush1.bf16.msra.mxu0 0
        %1793 = vmatprep.subr.bf16.mxu0 0
        %1794 = vmatpush1.bf16.msra.mxu0 0
        %1795 = vmatprep.subr.bf16.mxu0 0
        %1796 = vmatpush1.bf16.msra.mxu0 0
        %1797 = vmatprep.subr.bf16.mxu0 0
        %1798 = vmatpush1.bf16.msra.mxu0 0
        %1799 = vmatprep.subr.bf16.mxu0 0
        %1800 = vmatpush1.bf16.msra.mxu0 0
        %1801 = vmatprep.subr.bf16.mxu0 0
        %1802 = vmatpush1.bf16.msra.mxu0 0
        %1803 = vmatprep.subr.bf16.mxu0 0
        %1804 = vmatpush1.bf16.msra.mxu0 0
        %1805 = vmatprep.subr.bf16.mxu0 0
        %1806 = vmatpush1.bf16.msra.mxu0 0
        %1807 = vmatprep.subr.bf16.mxu0 0
        %1808 = vmatpush1.bf16.msra.mxu0 0
        %1809 = vmatprep.subr.bf16.mxu0 0
        %1810 = vmatpush1.bf16.msra.mxu0 0
        %1811 = vmatprep.subr.bf16.mxu0 0
        %1812 = vmatpush1.bf16.msra.mxu0 0
        %1813 = vmatprep.subr.bf16.mxu0 0
        %1814 = vmatpush1.bf16.msra.mxu0 0
        %1815 = vmatprep.mubr.bf16.mxu0 0
        %1816 = vmatmul.mubr.bf16.gmra.mrb[0].mxu0 %v1781
        %v1817 = vpop.f32.mrb[0].mxu0
        %v1818 = vadd.f32 0.0, %v1817
        %v1819 = vpop.f32.mrb[0].mxu0
        %v1820 = vpop.f32.mrb[0].mxu0
        %v1821 = vpop.f32.mrb[0].mxu0
        %1822 = vdwg.mxu0
        %v1824 = vrot.slane %v1818, 2
        %v1825 = vrot.slane %v1818, 3
        %v1828 = vadd.f32 %v885, %v1824
        %v1829 = vadd.f32 %v888, %v1825
        %v1830 = vtanh.pop %v1828
        %v1831 = vtanh.pop %v1829
        %v1832 = vpack.c.bf16 %v1756, %v1756
        %v1833 = vpack.c.bf16 %v1757, %v1757
        %v1836 = vunpack.c.l.b16 %v1832
        %v1837 = vunpack.c.l.b16 %v1833
        %v1838 = vrot.slane %v1836, 2
        %v1839 = vrot.slane %v1837, 1
        %v1840 = vsel %vm679, %v1839, %v1838
        %v1841 = vpack.c.b16 %v1840, %v1840
        %1842 = vrot.lane.b32.xlu0 %v1841, 64
        %v1843 = vpop.permute.xlu0 %1842
        %v1845 = vsel %vm846, %v1843, 0
        %1847 = vmatprep.subr.bf16.mxu0 0
        %1848 = vmatpush1.bf16.msra.mxu0 %v982
        %1849 = vmatprep.subr.bf16.mxu0 0
        %1850 = vmatpush1.bf16.msra.mxu0 %v983
        %1851 = vmatprep.subr.bf16.mxu0 0
        %1852 = vmatpush1.bf16.msra.mxu0 %v984
        %1853 = vmatprep.subr.bf16.mxu0 0
        %1854 = vmatpush1.bf16.msra.mxu0 %v985
        %1855 = vmatprep.subr.bf16.mxu0 0
        %1856 = vmatpush1.bf16.msra.mxu0 0
        %1857 = vmatprep.subr.bf16.mxu0 0
        %1858 = vmatpush1.bf16.msra.mxu0 0
        %1859 = vmatprep.subr.bf16.mxu0 0
        %1860 = vmatpush1.bf16.msra.mxu0 0
        %1861 = vmatprep.subr.bf16.mxu0 0
        %1862 = vmatpush1.bf16.msra.mxu0 0
        %1863 = vmatprep.subr.bf16.mxu0 0
        %1864 = vmatpush1.bf16.msra.mxu0 0
        %1865 = vmatprep.subr.bf16.mxu0 0
        %1866 = vmatpush1.bf16.msra.mxu0 0
        %1867 = vmatprep.subr.bf16.mxu0 0
        %1868 = vmatpush1.bf16.msra.mxu0 0
        %1869 = vmatprep.subr.bf16.mxu0 0
        %1870 = vmatpush1.bf16.msra.mxu0 0
        %1871 = vmatprep.subr.bf16.mxu0 0
        %1872 = vmatpush1.bf16.msra.mxu0 0
        %1873 = vmatprep.subr.bf16.mxu0 0
        %1874 = vmatpush1.bf16.msra.mxu0 0
        %1875 = vmatprep.subr.bf16.mxu0 0
        %1876 = vmatpush1.bf16.msra.mxu0 0
        %1877 = vmatprep.subr.bf16.mxu0 0
        %1878 = vmatpush1.bf16.msra.mxu0 0
        %1879 = vmatprep.mubr.bf16.mxu0 0
        %1880 = vmatmul.mubr.bf16.gmra.mrb[0].mxu0 %v1845
        %v1881 = vpop.f32.mrb[0].mxu0
        %v1882 = vadd.f32 0.0, %v1881
        %v1883 = vpop.f32.mrb[0].mxu0
        %v1884 = vpop.f32.mrb[0].mxu0
        %v1885 = vpop.f32.mrb[0].mxu0
        %1886 = vdwg.mxu0
        %v1888 = vrot.slane %v1882, 7
        %1889 = vrot.lane.b32.xlu0 %v1888, 64
        %v1890 = vpop.permute.xlu0 %1889
        %1891 = vrot.lane.b32.xlu0 %v1882, 64
        %v1892 = vpop.permute.xlu0 %1891
        %v1895 = vadd.f32 %v885, %v1890
        %v1896 = vadd.f32 %v888, %v1892
        %v1897 = vtanh.pop %v1895
        %v1898 = vtanh.pop %v1896
        %1899 = vst.msk [vmem:[#allocation2] sm:$0x40] %vm1196, %v1830
        %1900 = vst.msk [vmem:[#allocation2 + $0x8] sm:$0x40] %vm1196, %v1831
        %1903 = vrot.lane.b32.xlu0 %v1897, 64
        %v1904 = vpop.permute.xlu0 %1903
        %1905 = vrot.lane.b32.xlu0 %v1898, 64
        %v1906 = vpop.permute.xlu0 %1905
        %1909 = vst.msk [vmem:[#allocation3] sm:$0x2] %vm1185, %v1904
        %1910 = vst.msk [vmem:[#allocation3 + $0x8] sm:$0x2] %vm1185, %v1906
        %v1911 = vpack.c.bf16 %v1830, %v1830
        %v1912 = vpack.c.bf16 %v1831, %v1831
        %v1915 = vunpack.c.l.b16 %v1911
        %v1916 = vunpack.c.l.b16 %v1912
        %v1917 = vrot.slane %v1915, 6
        %v1918 = vrot.slane %v1916, 5
        %v1919 = vsel %vm679, %v1918, %v1917
        %v1920 = vpack.c.b16 %v1919, %v1919
        %v1922 = vsel %vm846, %v1920, 0
        %1924 = vmatprep.subr.bf16.mxu0 0
        %1925 = vmatpush1.bf16.msra.mxu0 %v907
        %1926 = vmatprep.subr.bf16.mxu0 0
        %1927 = vmatpush1.bf16.msra.mxu0 %v908
        %1928 = vmatprep.subr.bf16.mxu0 0
        %1929 = vmatpush1.bf16.msra.mxu0 %v909
        %1930 = vmatprep.subr.bf16.mxu0 0
        %1931 = vmatpush1.bf16.msra.mxu0 %v910
        %1932 = vmatprep.subr.bf16.mxu0 0
        %1933 = vmatpush1.bf16.msra.mxu0 0
        %1934 = vmatprep.subr.bf16.mxu0 0
        %1935 = vmatpush1.bf16.msra.mxu0 0
        %1936 = vmatprep.subr.bf16.mxu0 0
        %1937 = vmatpush1.bf16.msra.mxu0 0
        %1938 = vmatprep.subr.bf16.mxu0 0
        %1939 = vmatpush1.bf16.msra.mxu0 0
        %1940 = vmatprep.subr.bf16.mxu0 0
        %1941 = vmatpush1.bf16.msra.mxu0 0
        %1942 = vmatprep.subr.bf16.mxu0 0
        %1943 = vmatpush1.bf16.msra.mxu0 0
        %1944 = vmatprep.subr.bf16.mxu0 0
        %1945 = vmatpush1.bf16.msra.mxu0 0
        %1946 = vmatprep.subr.bf16.mxu0 0
        %1947 = vmatpush1.bf16.msra.mxu0 0
        %1948 = vmatprep.subr.bf16.mxu0 0
        %1949 = vmatpush1.bf16.msra.mxu0 0
        %1950 = vmatprep.subr.bf16.mxu0 0
        %1951 = vmatpush1.bf16.msra.mxu0 0
        %1952 = vmatprep.subr.bf16.mxu0 0
        %1953 = vmatpush1.bf16.msra.mxu0 0
        %1954 = vmatprep.subr.bf16.mxu0 0
        %1955 = vmatpush1.bf16.msra.mxu0 0
        %1956 = vmatprep.mubr.bf16.mxu0 0
        %1957 = vmatmul.mubr.bf16.gmra.mrb[0].mxu0 %v1922
        %v1958 = vpop.f32.mrb[0].mxu0
        %v1959 = vadd.f32 0.0, %v1958
        %v1960 = vpop.f32.mrb[0].mxu0
        %v1961 = vpop.f32.mrb[0].mxu0
        %v1962 = vpop.f32.mrb[0].mxu0
        %1963 = vdwg.mxu0
        %v1965 = vrot.slane %v1959, 1
        %v1966 = vrot.slane %v1959, 2
        %v1969 = vadd.f32 %v885, %v1965
        %v1970 = vadd.f32 %v888, %v1966
        %v1971 = vtanh.pop %v1969
        %v1972 = vtanh.pop %v1970
        %v1973 = vpack.c.bf16 %v1897, %v1897
        %v1974 = vpack.c.bf16 %v1898, %v1898
        %v1977 = vunpack.c.l.b16 %v1973
        %v1978 = vunpack.c.l.b16 %v1974
        %v1979 = vrot.slane %v1977, 1
        %v1980 = vsel %vm679, %v1978, %v1979
        %v1981 = vpack.c.b16 %v1980, %v1980
        %1982 = vrot.lane.b32.xlu0 %v1981, 64
        %v1983 = vpop.permute.xlu0 %1982
        %v1985 = vsel %vm846, %v1983, 0
        %1987 = vmatprep.subr.bf16.mxu0 0
        %1988 = vmatpush1.bf16.msra.mxu0 %v982
        %1989 = vmatprep.subr.bf16.mxu0 0
        %1990 = vmatpush1.bf16.msra.mxu0 %v983
        %1991 = vmatprep.subr.bf16.mxu0 0
        %1992 = vmatpush1.bf16.msra.mxu0 %v984
        %1993 = vmatprep.subr.bf16.mxu0 0
        %1994 = vmatpush1.bf16.msra.mxu0 %v985
        %1995 = vmatprep.subr.bf16.mxu0 0
        %1996 = vmatpush1.bf16.msra.mxu0 0
        %1997 = vmatprep.subr.bf16.mxu0 0
        %1998 = vmatpush1.bf16.msra.mxu0 0
        %1999 = vmatprep.subr.bf16.mxu0 0
        %2000 = vmatpush1.bf16.msra.mxu0 0
        %2001 = vmatprep.subr.bf16.mxu0 0
        %2002 = vmatpush1.bf16.msra.mxu0 0
        %2003 = vmatprep.subr.bf16.mxu0 0
        %2004 = vmatpush1.bf16.msra.mxu0 0
        %2005 = vmatprep.subr.bf16.mxu0 0
        %2006 = vmatpush1.bf16.msra.mxu0 0
        %2007 = vmatprep.subr.bf16.mxu0 0
        %2008 = vmatpush1.bf16.msra.mxu0 0
        %2009 = vmatprep.subr.bf16.mxu0 0
        %2010 = vmatpush1.bf16.msra.mxu0 0
        %2011 = vmatprep.subr.bf16.mxu0 0
        %2012 = vmatpush1.bf16.msra.mxu0 0
        %2013 = vmatprep.subr.bf16.mxu0 0
        %2014 = vmatpush1.bf16.msra.mxu0 0
        %2015 = vmatprep.subr.bf16.mxu0 0
        %2016 = vmatpush1.bf16.msra.mxu0 0
        %2017 = vmatprep.subr.bf16.mxu0 0
        %2018 = vmatpush1.bf16.msra.mxu0 0
        %2019 = vmatprep.mubr.bf16.mxu0 0
        %2020 = vmatmul.mubr.bf16.gmra.mrb[0].mxu0 %v1985
        %v2021 = vpop.f32.mrb[0].mxu0
        %v2022 = vadd.f32 0.0, %v2021
        %v2023 = vpop.f32.mrb[0].mxu0
        %v2024 = vpop.f32.mrb[0].mxu0
        %v2025 = vpop.f32.mrb[0].mxu0
        %2026 = vdwg.mxu0
        %v2028 = vrot.slane %v2022, 1
        %2029 = vrot.lane.b32.xlu0 %v2022, 64
        %v2030 = vpop.permute.xlu0 %2029
        %2031 = vrot.lane.b32.xlu0 %v2028, 64
        %v2032 = vpop.permute.xlu0 %2031
        %v2035 = vadd.f32 %v885, %v2030
        %v2036 = vadd.f32 %v888, %v2032
        %v2037 = vtanh.pop %v2035
        %v2038 = vtanh.pop %v2036
        %2039 = vst.msk [vmem:[#allocation2] sm:$0x80] %vm1054, %v1971
        %2040 = vst.msk [vmem:[#allocation2 + $0x8] sm:$0x80] %vm1054, %v1972
        %2043 = vrot.lane.b32.xlu0 %v2037, 64
        %v2044 = vpop.permute.xlu0 %2043
        %2045 = vrot.lane.b32.xlu0 %v2038, 64
        %v2046 = vpop.permute.xlu0 %2045
        %2049 = vst.msk [vmem:[#allocation3] sm:$0x1] %vm1043, %v2044
        %2050 = vst.msk [vmem:[#allocation3 + $0x8] sm:$0x1] %vm1043, %v2046
        %v2051 = vld [vmem:[#allocation2] sm:$0xff]
        %v2052 = vld [vmem:[#allocation2 + $0x8] sm:$0xff]
        %v2053 = vld [vmem:[#allocation3] sm:$0xff]
        %v2054 = vld [vmem:[#allocation3 + $0x8] sm:$0xff]
        %2057 = vrot.lane.b32.xlu0 %v2053, 64
        %v2058 = vpop.permute.xlu0 %2057
        %2059 = vrot.lane.b32.xlu0 %v2054, 64
        %v2060 = vpop.permute.xlu0 %2059
        %v2063 = vsel %vm846, %v2051, %v2058
        %v2064 = vsel %vm846, %v2052, %v2060
        %v2065 = vld [vmem:[%s10] sm:$0xf]
        %v2066 = vld [vmem:[%s10 + $0x4] sm:$0xf]
        %v2067 = vld [vmem:[%s10 + $0x8] sm:$0xf]
        %v2068 = vld [vmem:[%s10 + $0xc] sm:$0xf]
        %v2069 = vld [vmem:[%s10 + $0x10] sm:$0xf]
        %v2070 = vld [vmem:[%s10 + $0x14] sm:$0xf]
        %v2071 = vld [vmem:[%s10 + $0x18] sm:$0xf]
        %v2072 = vld [vmem:[%s10 + $0x1c] sm:$0xf]
        %v2073 = vld [vmem:[%s11] sm:$0x1]
        %v2074 = vld [vmem:[%s12] sm:$0xf]
        %v2075 = vld [vmem:[%s12 + $0x4] sm:$0xf]
        %v2076 = vld [vmem:[%s12 + $0x8] sm:$0xf]
        %v2077 = vld [vmem:[%s12 + $0xc] sm:$0xf]
        %v2078 = vld [vmem:[%s12 + $0x10] sm:$0xf]
        %v2079 = vld [vmem:[%s12 + $0x14] sm:$0xf]
        %v2080 = vld [vmem:[%s12 + $0x18] sm:$0xf]
        %v2081 = vld [vmem:[%s12 + $0x1c] sm:$0xf]
        %v2082 = vld [vmem:[%s13] sm:$0xf]
        %v2083 = vld [vmem:[%s13 + $0x4] sm:$0xf]
        %v2084 = vld [vmem:[%s13 + $0x8] sm:$0xf]
        %v2085 = vld [vmem:[%s13 + $0xc] sm:$0xf]
        %v2086 = vld [vmem:[%s13 + $0x10] sm:$0xf]
        %v2087 = vld [vmem:[%s13 + $0x14] sm:$0xf]
        %v2088 = vld [vmem:[%s13 + $0x18] sm:$0xf]
        %v2089 = vld [vmem:[%s13 + $0x1c] sm:$0xf]
        %v2091 = vlaneseq
        %v2092 = vshrl.u32 %v2091, 7
        %v2093 = vsub.s32 0, %v2092
        %v2094 = vrot.slane %v2073, %v2093
        %v2098 = vunpack.c.l.b16 %v621
        %v2099 = vunpack.c.l.b16 %v622
        %v2100 = vpack.c.b16 %v2099, %v2098
        %v2109 = vunpack.c.l.b16 %v2065
        %v2110 = vunpack.c.l.b16 %v2066
        %v2111 = vunpack.c.l.b16 %v2067
        %v2112 = vunpack.c.l.b16 %v2068
        %v2113 = vunpack.c.l.b16 %v2069
        %v2114 = vunpack.c.l.b16 %v2070
        %v2115 = vunpack.c.l.b16 %v2071
        %v2116 = vunpack.c.l.b16 %v2072
        %v2117 = vpack.c.b16 %v2110, %v2109
        %v2118 = vpack.c.b16 %v2112, %v2111
        %v2119 = vpack.c.b16 %v2114, %v2113
        %v2120 = vpack.c.b16 %v2116, %v2115
        %v2126 = vsel %vm846, %v2100, 0
        %2128 = vmatprep.subr.bf16.mxu0 0
        %2129 = vmatpush1.bf16.msra.mxu0 %v2117
        %2130 = vmatprep.subr.bf16.mxu0 0
        %2131 = vmatpush1.bf16.msra.mxu0 %v2118
        %2132 = vmatprep.subr.bf16.mxu0 0
        %2133 = vmatpush1.bf16.msra.mxu0 %v2119
        %2134 = vmatprep.subr.bf16.mxu0 0
        %2135 = vmatpush1.bf16.msra.mxu0 %v2120
        %2136 = vmatprep.subr.bf16.mxu0 0
        %2137 = vmatpush1.bf16.msra.mxu0 0
        %2138 = vmatprep.subr.bf16.mxu0 0
        %2139 = vmatpush1.bf16.msra.mxu0 0
        %2140 = vmatprep.subr.bf16.mxu0 0
        %2141 = vmatpush1.bf16.msra.mxu0 0
        %2142 = vmatprep.subr.bf16.mxu0 0
        %2143 = vmatpush1.bf16.msra.mxu0 0
        %2144 = vmatprep.subr.bf16.mxu0 0
        %2145 = vmatpush1.bf16.msra.mxu0 0
        %2146 = vmatprep.subr.bf16.mxu0 0
        %2147 = vmatpush1.bf16.msra.mxu0 0
        %2148 = vmatprep.subr.bf16.mxu0 0
        %2149 = vmatpush1.bf16.msra.mxu0 0
        %2150 = vmatprep.subr.bf16.mxu0 0
        %2151 = vmatpush1.bf16.msra.mxu0 0
        %2152 = vmatprep.subr.bf16.mxu0 0
        %2153 = vmatpush1.bf16.msra.mxu0 0
        %2154 = vmatprep.subr.bf16.mxu0 0
        %2155 = vmatpush1.bf16.msra.mxu0 0
        %2156 = vmatprep.subr.bf16.mxu0 0
        %2157 = vmatpush1.bf16.msra.mxu0 0
        %2158 = vmatprep.subr.bf16.mxu0 0
        %2159 = vmatpush1.bf16.msra.mxu0 0
        %2160 = vmatprep.mubr.bf16.mxu0 0
        %2161 = vmatmul.mubr.bf16.gmra.mrb[0].mxu0 %v2126
        %v2162 = vpop.f32.mrb[0].mxu0
        %v2163 = vadd.f32 %v2094, %v2162
        %v2164 = vpop.f32.mrb[0].mxu0
        %v2165 = vpop.f32.mrb[0].mxu0
        %v2166 = vadd.f32 %v2094, %v2165
        %v2167 = vpop.f32.mrb[0].mxu0
        %2168 = vdwg.mxu0
        %v2177 = vunpack.c.l.b16 %v2074
        %v2178 = vunpack.c.l.b16 %v2075
        %v2179 = vunpack.c.l.b16 %v2076
        %v2180 = vunpack.c.l.b16 %v2077
        %v2181 = vunpack.c.l.b16 %v2078
        %v2182 = vunpack.c.l.b16 %v2079
        %v2183 = vunpack.c.l.b16 %v2080
        %v2184 = vunpack.c.l.b16 %v2081
        %v2185 = vpack.c.b16 %v2178, %v2177
        %v2186 = vpack.c.b16 %v2180, %v2179
        %v2187 = vpack.c.b16 %v2182, %v2181
        %v2188 = vpack.c.b16 %v2184, %v2183
        %2193 = vmatprep.subr.bf16.mxu0 0
        %2194 = vmatpush1.bf16.msra.mxu0 %v2185
        %2195 = vmatprep.subr.bf16.mxu0 0
        %2196 = vmatpush1.bf16.msra.mxu0 %v2186
        %2197 = vmatprep.subr.bf16.mxu0 0
        %2198 = vmatpush1.bf16.msra.mxu0 %v2187
        %2199 = vmatprep.subr.bf16.mxu0 0
        %2200 = vmatpush1.bf16.msra.mxu0 %v2188
        %2201 = vmatprep.subr.bf16.mxu0 0
        %2202 = vmatpush1.bf16.msra.mxu0 0
        %2203 = vmatprep.subr.bf16.mxu0 0
        %2204 = vmatpush1.bf16.msra.mxu0 0
        %2205 = vmatprep.subr.bf16.mxu0 0
        %2206 = vmatpush1.bf16.msra.mxu0 0
        %2207 = vmatprep.subr.bf16.mxu0 0
        %2208 = vmatpush1.bf16.msra.mxu0 0
        %2209 = vmatprep.subr.bf16.mxu0 0
        %2210 = vmatpush1.bf16.msra.mxu0 0
        %2211 = vmatprep.subr.bf16.mxu0 0
        %2212 = vmatpush1.bf16.msra.mxu0 0
        %2213 = vmatprep.subr.bf16.mxu0 0
        %2214 = vmatpush1.bf16.msra.mxu0 0
        %2215 = vmatprep.subr.bf16.mxu0 0
        %2216 = vmatpush1.bf16.msra.mxu0 0
        %2217 = vmatprep.subr.bf16.mxu0 0
        %2218 = vmatpush1.bf16.msra.mxu0 0
        %2219 = vmatprep.subr.bf16.mxu0 0
        %2220 = vmatpush1.bf16.msra.mxu0 0
        %2221 = vmatprep.subr.bf16.mxu0 0
        %2222 = vmatpush1.bf16.msra.mxu0 0
        %2223 = vmatprep.subr.bf16.mxu0 0
        %2224 = vmatpush1.bf16.msra.mxu0 0
        %2225 = vmatprep.mubr.bf16.mxu0 0
        %2226 = vmatmul.mubr.bf16.gmra.mrb[0].mxu0 %v916
        %v2227 = vpop.f32.mrb[0].mxu0
        %v2228 = vadd.f32 0.0, %v2227
        %v2229 = vpop.f32.mrb[0].mxu0
        %v2230 = vpop.f32.mrb[0].mxu0
        %v2231 = vpop.f32.mrb[0].mxu0
        %2232 = vdwg.mxu0
        %v2234 = vrot.slane %v2228, 1
        %v2237 = vadd.f32 %v2163, %v2228
        %v2238 = vadd.f32 %v2166, %v2234
        %v2239 = vtanh.pop %v2237
        %v2240 = vtanh.pop %v2238
        %v2249 = vunpack.c.l.b16 %v2082
        %v2250 = vunpack.c.l.b16 %v2083
        %v2251 = vunpack.c.l.b16 %v2084
        %v2252 = vunpack.c.l.b16 %v2085
        %v2253 = vunpack.c.l.b16 %v2086
        %v2254 = vunpack.c.l.b16 %v2087
        %v2255 = vunpack.c.l.b16 %v2088
        %v2256 = vunpack.c.l.b16 %v2089
        %v2257 = vpack.c.b16 %v2250, %v2249
        %v2258 = vpack.c.b16 %v2252, %v2251
        %v2259 = vpack.c.b16 %v2254, %v2253
        %v2260 = vpack.c.b16 %v2256, %v2255
        %2265 = vmatprep.subr.bf16.mxu0 0
        %2266 = vmatpush1.bf16.msra.mxu0 %v2257
        %2267 = vmatprep.subr.bf16.mxu0 0
        %2268 = vmatpush1.bf16.msra.mxu0 %v2258
        %2269 = vmatprep.subr.bf16.mxu0 0
        %2270 = vmatpush1.bf16.msra.mxu0 %v2259
        %2271 = vmatprep.subr.bf16.mxu0 0
        %2272 = vmatpush1.bf16.msra.mxu0 %v2260
        %2273 = vmatprep.subr.bf16.mxu0 0
        %2274 = vmatpush1.bf16.msra.mxu0 0
        %2275 = vmatprep.subr.bf16.mxu0 0
        %2276 = vmatpush1.bf16.msra.mxu0 0
        %2277 = vmatprep.subr.bf16.mxu0 0
        %2278 = vmatpush1.bf16.msra.mxu0 0
        %2279 = vmatprep.subr.bf16.mxu0 0
        %2280 = vmatpush1.bf16.msra.mxu0 0
        %2281 = vmatprep.subr.bf16.mxu0 0
        %2282 = vmatpush1.bf16.msra.mxu0 0
        %2283 = vmatprep.subr.bf16.mxu0 0
        %2284 = vmatpush1.bf16.msra.mxu0 0
        %2285 = vmatprep.subr.bf16.mxu0 0
        %2286 = vmatpush1.bf16.msra.mxu0 0
        %2287 = vmatprep.subr.bf16.mxu0 0
        %2288 = vmatpush1.bf16.msra.mxu0 0
        %2289 = vmatprep.subr.bf16.mxu0 0
        %2290 = vmatpush1.bf16.msra.mxu0 0
        %2291 = vmatprep.subr.bf16.mxu0 0
        %2292 = vmatpush1.bf16.msra.mxu0 0
        %2293 = vmatprep.subr.bf16.mxu0 0
        %2294 = vmatpush1.bf16.msra.mxu0 0
        %2295 = vmatprep.subr.bf16.mxu0 0
        %2296 = vmatpush1.bf16.msra.mxu0 0
        %2297 = vmatprep.mubr.bf16.mxu0 0
        %2298 = vmatmul.mubr.bf16.gmra.mrb[0].mxu0 %v916
        %v2299 = vpop.f32.mrb[0].mxu0
        %v2300 = vadd.f32 0.0, %v2299
        %v2301 = vpop.f32.mrb[0].mxu0
        %v2302 = vpop.f32.mrb[0].mxu0
        %v2303 = vpop.f32.mrb[0].mxu0
        %2304 = vdwg.mxu0
        %v2306 = vrot.slane %v2300, 1
        %v2307 = vrot.slane %v2300, 2
        %2308 = vrot.lane.b32.xlu0 %v2306, 64
        %v2309 = vpop.permute.xlu0 %2308
        %2310 = vrot.lane.b32.xlu0 %v2307, 64
        %v2311 = vpop.permute.xlu0 %2310
        %v2314 = vadd.f32 %v2163, %v2309
        %v2315 = vadd.f32 %v2166, %v2311
        %v2316 = vtanh.pop %v2314
        %v2317 = vtanh.pop %v2315
        %2318 = vst.msk [vmem:[#allocation4] sm:$0x1] %vm1043, %v2239
        %2319 = vst.msk [vmem:[#allocation4 + $0x8] sm:$0x1] %vm1043, %v2240
        %2322 = vrot.lane.b32.xlu0 %v2316, 64
        %v2323 = vpop.permute.xlu0 %2322
        %2324 = vrot.lane.b32.xlu0 %v2317, 64
        %v2325 = vpop.permute.xlu0 %2324
        %2328 = vst.msk [vmem:[#allocation5] sm:$0x80] %vm1054, %v2323
        %2329 = vst.msk [vmem:[#allocation5 + $0x8] sm:$0x80] %vm1054, %v2325
        %v2330 = vpack.c.bf16 %v2239, %v2239
        %v2331 = vpack.c.bf16 %v2240, %v2240
        %v2334 = vunpack.c.l.b16 %v2330
        %v2335 = vunpack.c.l.b16 %v2331
        %v2336 = vrot.slane %v2335, 7
        %v2337 = vsel %vm679, %v2336, %v2334
        %v2338 = vpack.c.b16 %v2337, %v2337
        %v2340 = vsel %vm846, %v2338, 0
        %2342 = vmatprep.subr.bf16.mxu0 0
        %2343 = vmatpush1.bf16.msra.mxu0 %v2185
        %2344 = vmatprep.subr.bf16.mxu0 0
        %2345 = vmatpush1.bf16.msra.mxu0 %v2186
        %2346 = vmatprep.subr.bf16.mxu0 0
        %2347 = vmatpush1.bf16.msra.mxu0 %v2187
        %2348 = vmatprep.subr.bf16.mxu0 0
        %2349 = vmatpush1.bf16.msra.mxu0 %v2188
        %2350 = vmatprep.subr.bf16.mxu0 0
        %2351 = vmatpush1.bf16.msra.mxu0 0
        %2352 = vmatprep.subr.bf16.mxu0 0
        %2353 = vmatpush1.bf16.msra.mxu0 0
        %2354 = vmatprep.subr.bf16.mxu0 0
        %2355 = vmatpush1.bf16.msra.mxu0 0
        %2356 = vmatprep.subr.bf16.mxu0 0
        %2357 = vmatpush1.bf16.msra.mxu0 0
        %2358 = vmatprep.subr.bf16.mxu0 0
        %2359 = vmatpush1.bf16.msra.mxu0 0
        %2360 = vmatprep.subr.bf16.mxu0 0
        %2361 = vmatpush1.bf16.msra.mxu0 0
        %2362 = vmatprep.subr.bf16.mxu0 0
        %2363 = vmatpush1.bf16.msra.mxu0 0
        %2364 = vmatprep.subr.bf16.mxu0 0
        %2365 = vmatpush1.bf16.msra.mxu0 0
        %2366 = vmatprep.subr.bf16.mxu0 0
        %2367 = vmatpush1.bf16.msra.mxu0 0
        %2368 = vmatprep.subr.bf16.mxu0 0
        %2369 = vmatpush1.bf16.msra.mxu0 0
        %2370 = vmatprep.subr.bf16.mxu0 0
        %2371 = vmatpush1.bf16.msra.mxu0 0
        %2372 = vmatprep.subr.bf16.mxu0 0
        %2373 = vmatpush1.bf16.msra.mxu0 0
        %2374 = vmatprep.mubr.bf16.mxu0 0
        %2375 = vmatmul.mubr.bf16.gmra.mrb[0].mxu0 %v2340
        %v2376 = vpop.f32.mrb[0].mxu0
        %v2377 = vadd.f32 0.0, %v2376
        %v2378 = vpop.f32.mrb[0].mxu0
        %v2379 = vpop.f32.mrb[0].mxu0
        %v2380 = vpop.f32.mrb[0].mxu0
        %2381 = vdwg.mxu0
        %v2383 = vrot.slane %v2377, 7
        %v2386 = vadd.f32 %v2163, %v2383
        %v2387 = vadd.f32 %v2166, %v2377
        %v2388 = vtanh.pop %v2386
        %v2389 = vtanh.pop %v2387
        %v2390 = vpack.c.bf16 %v2316, %v2316
        %v2391 = vpack.c.bf16 %v2317, %v2317
        %v2394 = vunpack.c.l.b16 %v2390
        %v2395 = vunpack.c.l.b16 %v2391
        %v2396 = vrot.slane %v2394, 7
        %v2397 = vrot.slane %v2395, 6
        %v2398 = vsel %vm679, %v2397, %v2396
        %v2399 = vpack.c.b16 %v2398, %v2398
        %2400 = vrot.lane.b32.xlu0 %v2399, 64
        %v2401 = vpop.permute.xlu0 %2400
        %v2403 = vsel %vm846, %v2401, 0
        %2405 = vmatprep.subr.bf16.mxu0 0
        %2406 = vmatpush1.bf16.msra.mxu0 %v2257
        %2407 = vmatprep.subr.bf16.mxu0 0
        %2408 = vmatpush1.bf16.msra.mxu0 %v2258
        %2409 = vmatprep.subr.bf16.mxu0 0
        %2410 = vmatpush1.bf16.msra.mxu0 %v2259
        %2411 = vmatprep.subr.bf16.mxu0 0
        %2412 = vmatpush1.bf16.msra.mxu0 %v2260
        %2413 = vmatprep.subr.bf16.mxu0 0
        %2414 = vmatpush1.bf16.msra.mxu0 0
        %2415 = vmatprep.subr.bf16.mxu0 0
        %2416 = vmatpush1.bf16.msra.mxu0 0
        %2417 = vmatprep.subr.bf16.mxu0 0
        %2418 = vmatpush1.bf16.msra.mxu0 0
        %2419 = vmatprep.subr.bf16.mxu0 0
        %2420 = vmatpush1.bf16.msra.mxu0 0
        %2421 = vmatprep.subr.bf16.mxu0 0
        %2422 = vmatpush1.bf16.msra.mxu0 0
        %2423 = vmatprep.subr.bf16.mxu0 0
        %2424 = vmatpush1.bf16.msra.mxu0 0
        %2425 = vmatprep.subr.bf16.mxu0 0
        %2426 = vmatpush1.bf16.msra.mxu0 0
        %2427 = vmatprep.subr.bf16.mxu0 0
        %2428 = vmatpush1.bf16.msra.mxu0 0
        %2429 = vmatprep.subr.bf16.mxu0 0
        %2430 = vmatpush1.bf16.msra.mxu0 0
        %2431 = vmatprep.subr.bf16.mxu0 0
        %2432 = vmatpush1.bf16.msra.mxu0 0
        %2433 = vmatprep.subr.bf16.mxu0 0
        %2434 = vmatpush1.bf16.msra.mxu0 0
        %2435 = vmatprep.subr.bf16.mxu0 0
        %2436 = vmatpush1.bf16.msra.mxu0 0
        %2437 = vmatprep.mubr.bf16.mxu0 0
        %2438 = vmatmul.mubr.bf16.gmra.mrb[0].mxu0 %v2403
        %v2439 = vpop.f32.mrb[0].mxu0
        %v2440 = vadd.f32 0.0, %v2439
        %v2441 = vpop.f32.mrb[0].mxu0
        %v2442 = vpop.f32.mrb[0].mxu0
        %v2443 = vpop.f32.mrb[0].mxu0
        %2444 = vdwg.mxu0
        %v2446 = vrot.slane %v2440, 2
        %v2447 = vrot.slane %v2440, 3
        %2448 = vrot.lane.b32.xlu0 %v2446, 64
        %v2449 = vpop.permute.xlu0 %2448
        %2450 = vrot.lane.b32.xlu0 %v2447, 64
        %v2451 = vpop.permute.xlu0 %2450
        %v2454 = vadd.f32 %v2163, %v2449
        %v2455 = vadd.f32 %v2166, %v2451
        %v2456 = vtanh.pop %v2454
        %v2457 = vtanh.pop %v2455
        %2458 = vst.msk [vmem:[#allocation4] sm:$0x2] %vm1185, %v2388
        %2459 = vst.msk [vmem:[#allocation4 + $0x8] sm:$0x2] %vm1185, %v2389
        %2462 = vrot.lane.b32.xlu0 %v2456, 64
        %v2463 = vpop.permute.xlu0 %2462
        %2464 = vrot.lane.b32.xlu0 %v2457, 64
        %v2465 = vpop.permute.xlu0 %2464
        %2468 = vst.msk [vmem:[#allocation5] sm:$0x40] %vm1196, %v2463
        %2469 = vst.msk [vmem:[#allocation5 + $0x8] sm:$0x40] %vm1196, %v2465
        %v2470 = vpack.c.bf16 %v2388, %v2388
        %v2471 = vpack.c.bf16 %v2389, %v2389
        %v2474 = vunpack.c.l.b16 %v2470
        %v2475 = vunpack.c.l.b16 %v2471
        %v2476 = vrot.slane %v2474, 1
        %v2477 = vsel %vm679, %v2475, %v2476
        %v2478 = vpack.c.b16 %v2477, %v2477
        %v2480 = vsel %vm846, %v2478, 0
        %2482 = vmatprep.subr.bf16.mxu0 0
        %2483 = vmatpush1.bf16.msra.mxu0 %v2185
        %2484 = vmatprep.subr.bf16.mxu0 0
        %2485 = vmatpush1.bf16.msra.mxu0 %v2186
        %2486 = vmatprep.subr.bf16.mxu0 0
        %2487 = vmatpush1.bf16.msra.mxu0 %v2187
        %2488 = vmatprep.subr.bf16.mxu0 0
        %2489 = vmatpush1.bf16.msra.mxu0 %v2188
        %2490 = vmatprep.subr.bf16.mxu0 0
        %2491 = vmatpush1.bf16.msra.mxu0 0
        %2492 = vmatprep.subr.bf16.mxu0 0
        %2493 = vmatpush1.bf16.msra.mxu0 0
        %2494 = vmatprep.subr.bf16.mxu0 0
        %2495 = vmatpush1.bf16.msra.mxu0 0
        %2496 = vmatprep.subr.bf16.mxu0 0
        %2497 = vmatpush1.bf16.msra.mxu0 0
        %2498 = vmatprep.subr.bf16.mxu0 0
        %2499 = vmatpush1.bf16.msra.mxu0 0
        %2500 = vmatprep.subr.bf16.mxu0 0
        %2501 = vmatpush1.bf16.msra.mxu0 0
        %2502 = vmatprep.subr.bf16.mxu0 0
        %2503 = vmatpush1.bf16.msra.mxu0 0
        %2504 = vmatprep.subr.bf16.mxu0 0
        %2505 = vmatpush1.bf16.msra.mxu0 0
        %2506 = vmatprep.subr.bf16.mxu0 0
        %2507 = vmatpush1.bf16.msra.mxu0 0
        %2508 = vmatprep.subr.bf16.mxu0 0
        %2509 = vmatpush1.bf16.msra.mxu0 0
        %2510 = vmatprep.subr.bf16.mxu0 0
        %2511 = vmatpush1.bf16.msra.mxu0 0
        %2512 = vmatprep.subr.bf16.mxu0 0
        %2513 = vmatpush1.bf16.msra.mxu0 0
        %2514 = vmatprep.mubr.bf16.mxu0 0
        %2515 = vmatmul.mubr.bf16.gmra.mrb[0].mxu0 %v2480
        %v2516 = vpop.f32.mrb[0].mxu0
        %v2517 = vadd.f32 0.0, %v2516
        %v2518 = vpop.f32.mrb[0].mxu0
        %v2519 = vpop.f32.mrb[0].mxu0
        %v2520 = vpop.f32.mrb[0].mxu0
        %2521 = vdwg.mxu0
        %v2523 = vrot.slane %v2517, 6
        %v2524 = vrot.slane %v2517, 7
        %v2527 = vadd.f32 %v2163, %v2523
        %v2528 = vadd.f32 %v2166, %v2524
        %v2529 = vtanh.pop %v2527
        %v2530 = vtanh.pop %v2528
        %v2531 = vpack.c.bf16 %v2456, %v2456
        %v2532 = vpack.c.bf16 %v2457, %v2457
        %v2535 = vunpack.c.l.b16 %v2531
        %v2536 = vunpack.c.l.b16 %v2532
        %v2537 = vrot.slane %v2535, 6
        %v2538 = vrot.slane %v2536, 5
        %v2539 = vsel %vm679, %v2538, %v2537
        %v2540 = vpack.c.b16 %v2539, %v2539
        %2541 = vrot.lane.b32.xlu0 %v2540, 64
        %v2542 = vpop.permute.xlu0 %2541
        %v2544 = vsel %vm846, %v2542, 0
        %2546 = vmatprep.subr.bf16.mxu0 0
        %2547 = vmatpush1.bf16.msra.mxu0 %v2257
        %2548 = vmatprep.subr.bf16.mxu0 0
        %2549 = vmatpush1.bf16.msra.mxu0 %v2258
        %2550 = vmatprep.subr.bf16.mxu0 0
        %2551 = vmatpush1.bf16.msra.mxu0 %v2259
        %2552 = vmatprep.subr.bf16.mxu0 0
        %2553 = vmatpush1.bf16.msra.mxu0 %v2260
        %2554 = vmatprep.subr.bf16.mxu0 0
        %2555 = vmatpush1.bf16.msra.mxu0 0
        %2556 = vmatprep.subr.bf16.mxu0 0
        %2557 = vmatpush1.bf16.msra.mxu0 0
        %2558 = vmatprep.subr.bf16.mxu0 0
        %2559 = vmatpush1.bf16.msra.mxu0 0
        %2560 = vmatprep.subr.bf16.mxu0 0
        %2561 = vmatpush1.bf16.msra.mxu0 0
        %2562 = vmatprep.subr.bf16.mxu0 0
        %2563 = vmatpush1.bf16.msra.mxu0 0
        %2564 = vmatprep.subr.bf16.mxu0 0
        %2565 = vmatpush1.bf16.msra.mxu0 0
        %2566 = vmatprep.subr.bf16.mxu0 0
        %2567 = vmatpush1.bf16.msra.mxu0 0
        %2568 = vmatprep.subr.bf16.mxu0 0
        %2569 = vmatpush1.bf16.msra.mxu0 0
        %2570 = vmatprep.subr.bf16.mxu0 0
        %2571 = vmatpush1.bf16.msra.mxu0 0
        %2572 = vmatprep.subr.bf16.mxu0 0
        %2573 = vmatpush1.bf16.msra.mxu0 0
        %2574 = vmatprep.subr.bf16.mxu0 0
        %2575 = vmatpush1.bf16.msra.mxu0 0
        %2576 = vmatprep.subr.bf16.mxu0 0
        %2577 = vmatpush1.bf16.msra.mxu0 0
        %2578 = vmatprep.mubr.bf16.mxu0 0
        %2579 = vmatmul.mubr.bf16.gmra.mrb[0].mxu0 %v2544
        %v2580 = vpop.f32.mrb[0].mxu0
        %v2581 = vadd.f32 0.0, %v2580
        %v2582 = vpop.f32.mrb[0].mxu0
        %v2583 = vpop.f32.mrb[0].mxu0
        %v2584 = vpop.f32.mrb[0].mxu0
        %2585 = vdwg.mxu0
        %v2587 = vrot.slane %v2581, 3
        %v2588 = vrot.slane %v2581, 4
        %2589 = vrot.lane.b32.xlu0 %v2587, 64
        %v2590 = vpop.permute.xlu0 %2589
        %2591 = vrot.lane.b32.xlu0 %v2588, 64
        %v2592 = vpop.permute.xlu0 %2591
        %v2595 = vadd.f32 %v2163, %v2590
        %v2596 = vadd.f32 %v2166, %v2592
        %v2597 = vtanh.pop %v2595
        %v2598 = vtanh.pop %v2596
        %2599 = vst.msk [vmem:[#allocation4] sm:$0x4] %vm1328, %v2529
        %2600 = vst.msk [vmem:[#allocation4 + $0x8] sm:$0x4] %vm1328, %v2530
        %2603 = vrot.lane.b32.xlu0 %v2597, 64
        %v2604 = vpop.permute.xlu0 %2603
        %2605 = vrot.lane.b32.xlu0 %v2598, 64
        %v2606 = vpop.permute.xlu0 %2605
        %2609 = vst.msk [vmem:[#allocation5] sm:$0x20] %vm1339, %v2604
        %2610 = vst.msk [vmem:[#allocation5 + $0x8] sm:$0x20] %vm1339, %v2606
        %v2611 = vpack.c.bf16 %v2529, %v2529
        %v2612 = vpack.c.bf16 %v2530, %v2530
        %v2615 = vunpack.c.l.b16 %v2611
        %v2616 = vunpack.c.l.b16 %v2612
        %v2617 = vrot.slane %v2615, 2
        %v2618 = vrot.slane %v2616, 1
        %v2619 = vsel %vm679, %v2618, %v2617
        %v2620 = vpack.c.b16 %v2619, %v2619
        %v2622 = vsel %vm846, %v2620, 0
        %2624 = vmatprep.subr.bf16.mxu0 0
        %2625 = vmatpush1.bf16.msra.mxu0 %v2185
        %2626 = vmatprep.subr.bf16.mxu0 0
        %2627 = vmatpush1.bf16.msra.mxu0 %v2186
        %2628 = vmatprep.subr.bf16.mxu0 0
        %2629 = vmatpush1.bf16.msra.mxu0 %v2187
        %2630 = vmatprep.subr.bf16.mxu0 0
        %2631 = vmatpush1.bf16.msra.mxu0 %v2188
        %2632 = vmatprep.subr.bf16.mxu0 0
        %2633 = vmatpush1.bf16.msra.mxu0 0
        %2634 = vmatprep.subr.bf16.mxu0 0
        %2635 = vmatpush1.bf16.msra.mxu0 0
        %2636 = vmatprep.subr.bf16.mxu0 0
        %2637 = vmatpush1.bf16.msra.mxu0 0
        %2638 = vmatprep.subr.bf16.mxu0 0
        %2639 = vmatpush1.bf16.msra.mxu0 0
        %2640 = vmatprep.subr.bf16.mxu0 0
        %2641 = vmatpush1.bf16.msra.mxu0 0
        %2642 = vmatprep.subr.bf16.mxu0 0
        %2643 = vmatpush1.bf16.msra.mxu0 0
        %2644 = vmatprep.subr.bf16.mxu0 0
        %2645 = vmatpush1.bf16.msra.mxu0 0
        %2646 = vmatprep.subr.bf16.mxu0 0
        %2647 = vmatpush1.bf16.msra.mxu0 0
        %2648 = vmatprep.subr.bf16.mxu0 0
        %2649 = vmatpush1.bf16.msra.mxu0 0
        %2650 = vmatprep.subr.bf16.mxu0 0
        %2651 = vmatpush1.bf16.msra.mxu0 0
        %2652 = vmatprep.subr.bf16.mxu0 0
        %2653 = vmatpush1.bf16.msra.mxu0 0
        %2654 = vmatprep.subr.bf16.mxu0 0
        %2655 = vmatpush1.bf16.msra.mxu0 0
        %2656 = vmatprep.mubr.bf16.mxu0 0
        %2657 = vmatmul.mubr.bf16.gmra.mrb[0].mxu0 %v2622
        %v2658 = vpop.f32.mrb[0].mxu0
        %v2659 = vadd.f32 0.0, %v2658
        %v2660 = vpop.f32.mrb[0].mxu0
        %v2661 = vpop.f32.mrb[0].mxu0
        %v2662 = vpop.f32.mrb[0].mxu0
        %2663 = vdwg.mxu0
        %v2665 = vrot.slane %v2659, 5
        %v2666 = vrot.slane %v2659, 6
        %v2669 = vadd.f32 %v2163, %v2665
        %v2670 = vadd.f32 %v2166, %v2666
        %v2671 = vtanh.pop %v2669
        %v2672 = vtanh.pop %v2670
        %v2673 = vpack.c.bf16 %v2597, %v2597
        %v2674 = vpack.c.bf16 %v2598, %v2598
        %v2677 = vunpack.c.l.b16 %v2673
        %v2678 = vunpack.c.l.b16 %v2674
        %v2679 = vrot.slane %v2677, 5
        %v2680 = vrot.slane %v2678, 4
        %v2681 = vsel %vm679, %v2680, %v2679
        %v2682 = vpack.c.b16 %v2681, %v2681
        %2683 = vrot.lane.b32.xlu0 %v2682, 64
        %v2684 = vpop.permute.xlu0 %2683
        %v2686 = vsel %vm846, %v2684, 0
        %2688 = vmatprep.subr.bf16.mxu0 0
        %2689 = vmatpush1.bf16.msra.mxu0 %v2257
        %2690 = vmatprep.subr.bf16.mxu0 0
        %2691 = vmatpush1.bf16.msra.mxu0 %v2258
        %2692 = vmatprep.subr.bf16.mxu0 0
        %2693 = vmatpush1.bf16.msra.mxu0 %v2259
        %2694 = vmatprep.subr.bf16.mxu0 0
        %2695 = vmatpush1.bf16.msra.mxu0 %v2260
        %2696 = vmatprep.subr.bf16.mxu0 0
        %2697 = vmatpush1.bf16.msra.mxu0 0
        %2698 = vmatprep.subr.bf16.mxu0 0
        %2699 = vmatpush1.bf16.msra.mxu0 0
        %2700 = vmatprep.subr.bf16.mxu0 0
        %2701 = vmatpush1.bf16.msra.mxu0 0
        %2702 = vmatprep.subr.bf16.mxu0 0
        %2703 = vmatpush1.bf16.msra.mxu0 0
        %2704 = vmatprep.subr.bf16.mxu0 0
        %2705 = vmatpush1.bf16.msra.mxu0 0
        %2706 = vmatprep.subr.bf16.mxu0 0
        %2707 = vmatpush1.bf16.msra.mxu0 0
        %2708 = vmatprep.subr.bf16.mxu0 0
        %2709 = vmatpush1.bf16.msra.mxu0 0
        %2710 = vmatprep.subr.bf16.mxu0 0
        %2711 = vmatpush1.bf16.msra.mxu0 0
        %2712 = vmatprep.subr.bf16.mxu0 0
        %2713 = vmatpush1.bf16.msra.mxu0 0
        %2714 = vmatprep.subr.bf16.mxu0 0
        %2715 = vmatpush1.bf16.msra.mxu0 0
        %2716 = vmatprep.subr.bf16.mxu0 0
        %2717 = vmatpush1.bf16.msra.mxu0 0
        %2718 = vmatprep.subr.bf16.mxu0 0
        %2719 = vmatpush1.bf16.msra.mxu0 0
        %2720 = vmatprep.mubr.bf16.mxu0 0
        %2721 = vmatmul.mubr.bf16.gmra.mrb[0].mxu0 %v2686
        %v2722 = vpop.f32.mrb[0].mxu0
        %v2723 = vadd.f32 0.0, %v2722
        %v2724 = vpop.f32.mrb[0].mxu0
        %v2725 = vpop.f32.mrb[0].mxu0
        %v2726 = vpop.f32.mrb[0].mxu0
        %2727 = vdwg.mxu0
        %v2729 = vrot.slane %v2723, 4
        %v2730 = vrot.slane %v2723, 5
        %2731 = vrot.lane.b32.xlu0 %v2729, 64
        %v2732 = vpop.permute.xlu0 %2731
        %2733 = vrot.lane.b32.xlu0 %v2730, 64
        %v2734 = vpop.permute.xlu0 %2733
        %v2737 = vadd.f32 %v2163, %v2732
        %v2738 = vadd.f32 %v2166, %v2734
        %v2739 = vtanh.pop %v2737
        %v2740 = vtanh.pop %v2738
        %2741 = vst.msk [vmem:[#allocation4] sm:$0x8] %vm1472, %v2671
        %2742 = vst.msk [vmem:[#allocation4 + $0x8] sm:$0x8] %vm1472, %v2672
        %2745 = vrot.lane.b32.xlu0 %v2739, 64
        %v2746 = vpop.permute.xlu0 %2745
        %2747 = vrot.lane.b32.xlu0 %v2740, 64
        %v2748 = vpop.permute.xlu0 %2747
        %2751 = vst.msk [vmem:[#allocation5] sm:$0x10] %vm1483, %v2746
        %2752 = vst.msk [vmem:[#allocation5 + $0x8] sm:$0x10] %vm1483, %v2748
        %v2753 = vpack.c.bf16 %v2671, %v2671
        %v2754 = vpack.c.bf16 %v2672, %v2672
        %v2757 = vunpack.c.l.b16 %v2753
        %v2758 = vunpack.c.l.b16 %v2754
        %v2759 = vrot.slane %v2757, 3
        %v2760 = vrot.slane %v2758, 2
        %v2761 = vsel %vm679, %v2760, %v2759
        %v2762 = vpack.c.b16 %v2761, %v2761
        %v2764 = vsel %vm846, %v2762, 0
        %2766 = vmatprep.subr.bf16.mxu0 0
        %2767 = vmatpush1.bf16.msra.mxu0 %v2185
        %2768 = vmatprep.subr.bf16.mxu0 0
        %2769 = vmatpush1.bf16.msra.mxu0 %v2186
        %2770 = vmatprep.subr.bf16.mxu0 0
        %2771 = vmatpush1.bf16.msra.mxu0 %v2187
        %2772 = vmatprep.subr.bf16.mxu0 0
        %2773 = vmatpush1.bf16.msra.mxu0 %v2188
        %2774 = vmatprep.subr.bf16.mxu0 0
        %2775 = vmatpush1.bf16.msra.mxu0 0
        %2776 = vmatprep.subr.bf16.mxu0 0
        %2777 = vmatpush1.bf16.msra.mxu0 0
        %2778 = vmatprep.subr.bf16.mxu0 0
        %2779 = vmatpush1.bf16.msra.mxu0 0
        %2780 = vmatprep.subr.bf16.mxu0 0
        %2781 = vmatpush1.bf16.msra.mxu0 0
        %2782 = vmatprep.subr.bf16.mxu0 0
        %2783 = vmatpush1.bf16.msra.mxu0 0
        %2784 = vmatprep.subr.bf16.mxu0 0
        %2785 = vmatpush1.bf16.msra.mxu0 0
        %2786 = vmatprep.subr.bf16.mxu0 0
        %2787 = vmatpush1.bf16.msra.mxu0 0
        %2788 = vmatprep.subr.bf16.mxu0 0
        %2789 = vmatpush1.bf16.msra.mxu0 0
        %2790 = vmatprep.subr.bf16.mxu0 0
        %2791 = vmatpush1.bf16.msra.mxu0 0
        %2792 = vmatprep.subr.bf16.mxu0 0
        %2793 = vmatpush1.bf16.msra.mxu0 0
        %2794 = vmatprep.subr.bf16.mxu0 0
        %2795 = vmatpush1.bf16.msra.mxu0 0
        %2796 = vmatprep.subr.bf16.mxu0 0
        %2797 = vmatpush1.bf16.msra.mxu0 0
        %2798 = vmatprep.mubr.bf16.mxu0 0
        %2799 = vmatmul.mubr.bf16.gmra.mrb[0].mxu0 %v2764
        %v2800 = vpop.f32.mrb[0].mxu0
        %v2801 = vadd.f32 0.0, %v2800
        %v2802 = vpop.f32.mrb[0].mxu0
        %v2803 = vpop.f32.mrb[0].mxu0
        %v2804 = vpop.f32.mrb[0].mxu0
        %2805 = vdwg.mxu0
        %v2807 = vrot.slane %v2801, 4
        %v2808 = vrot.slane %v2801, 5
        %v2811 = vadd.f32 %v2163, %v2807
        %v2812 = vadd.f32 %v2166, %v2808
        %v2813 = vtanh.pop %v2811
        %v2814 = vtanh.pop %v2812
        %v2815 = vpack.c.bf16 %v2739, %v2739
        %v2816 = vpack.c.bf16 %v2740, %v2740
        %v2819 = vunpack.c.l.b16 %v2815
        %v2820 = vunpack.c.l.b16 %v2816
        %v2821 = vrot.slane %v2819, 4
        %v2822 = vrot.slane %v2820, 3
        %v2823 = vsel %vm679, %v2822, %v2821
        %v2824 = vpack.c.b16 %v2823, %v2823
        %2825 = vrot.lane.b32.xlu0 %v2824, 64
        %v2826 = vpop.permute.xlu0 %2825
        %v2828 = vsel %vm846, %v2826, 0
        %2830 = vmatprep.subr.bf16.mxu0 0
        %2831 = vmatpush1.bf16.msra.mxu0 %v2257
        %2832 = vmatprep.subr.bf16.mxu0 0
        %2833 = vmatpush1.bf16.msra.mxu0 %v2258
        %2834 = vmatprep.subr.bf16.mxu0 0
        %2835 = vmatpush1.bf16.msra.mxu0 %v2259
        %2836 = vmatprep.subr.bf16.mxu0 0
        %2837 = vmatpush1.bf16.msra.mxu0 %v2260
        %2838 = vmatprep.subr.bf16.mxu0 0
        %2839 = vmatpush1.bf16.msra.mxu0 0
        %2840 = vmatprep.subr.bf16.mxu0 0
        %2841 = vmatpush1.bf16.msra.mxu0 0
        %2842 = vmatprep.subr.bf16.mxu0 0
        %2843 = vmatpush1.bf16.msra.mxu0 0
        %2844 = vmatprep.subr.bf16.mxu0 0
        %2845 = vmatpush1.bf16.msra.mxu0 0
        %2846 = vmatprep.subr.bf16.mxu0 0
        %2847 = vmatpush1.bf16.msra.mxu0 0
        %2848 = vmatprep.subr.bf16.mxu0 0
        %2849 = vmatpush1.bf16.msra.mxu0 0
        %2850 = vmatprep.subr.bf16.mxu0 0
        %2851 = vmatpush1.bf16.msra.mxu0 0
        %2852 = vmatprep.subr.bf16.mxu0 0
        %2853 = vmatpush1.bf16.msra.mxu0 0
        %2854 = vmatprep.subr.bf16.mxu0 0
        %2855 = vmatpush1.bf16.msra.mxu0 0
        %2856 = vmatprep.subr.bf16.mxu0 0
        %2857 = vmatpush1.bf16.msra.mxu0 0
        %2858 = vmatprep.subr.bf16.mxu0 0
        %2859 = vmatpush1.bf16.msra.mxu0 0
        %2860 = vmatprep.subr.bf16.mxu0 0
        %2861 = vmatpush1.bf16.msra.mxu0 0
        %2862 = vmatprep.mubr.bf16.mxu0 0
        %2863 = vmatmul.mubr.bf16.gmra.mrb[0].mxu0 %v2828
        %v2864 = vpop.f32.mrb[0].mxu0
        %v2865 = vadd.f32 0.0, %v2864
        %v2866 = vpop.f32.mrb[0].mxu0
        %v2867 = vpop.f32.mrb[0].mxu0
        %v2868 = vpop.f32.mrb[0].mxu0
        %2869 = vdwg.mxu0
        %v2871 = vrot.slane %v2865, 5
        %v2872 = vrot.slane %v2865, 6
        %2873 = vrot.lane.b32.xlu0 %v2871, 64
        %v2874 = vpop.permute.xlu0 %2873
        %2875 = vrot.lane.b32.xlu0 %v2872, 64
        %v2876 = vpop.permute.xlu0 %2875
        %v2879 = vadd.f32 %v2163, %v2874
        %v2880 = vadd.f32 %v2166, %v2876
        %v2881 = vtanh.pop %v2879
        %v2882 = vtanh.pop %v2880
        %2883 = vst.msk [vmem:[#allocation4] sm:$0x10] %vm1483, %v2813
        %2884 = vst.msk [vmem:[#allocation4 + $0x8] sm:$0x10] %vm1483, %v2814
        %2887 = vrot.lane.b32.xlu0 %v2881, 64
        %v2888 = vpop.permute.xlu0 %2887
        %2889 = vrot.lane.b32.xlu0 %v2882, 64
        %v2890 = vpop.permute.xlu0 %2889
        %2893 = vst.msk [vmem:[#allocation5] sm:$0x8] %vm1472, %v2888
        %2894 = vst.msk [vmem:[#allocation5 + $0x8] sm:$0x8] %vm1472, %v2890
        %v2895 = vpack.c.bf16 %v2813, %v2813
        %v2896 = vpack.c.bf16 %v2814, %v2814
        %v2899 = vunpack.c.l.b16 %v2895
        %v2900 = vunpack.c.l.b16 %v2896
        %v2901 = vrot.slane %v2899, 4
        %v2902 = vrot.slane %v2900, 3
        %v2903 = vsel %vm679, %v2902, %v2901
        %v2904 = vpack.c.b16 %v2903, %v2903
        %v2906 = vsel %vm846, %v2904, 0
        %2908 = vmatprep.subr.bf16.mxu0 0
        %2909 = vmatpush1.bf16.msra.mxu0 %v2185
        %2910 = vmatprep.subr.bf16.mxu0 0
        %2911 = vmatpush1.bf16.msra.mxu0 %v2186
        %2912 = vmatprep.subr.bf16.mxu0 0
        %2913 = vmatpush1.bf16.msra.mxu0 %v2187
        %2914 = vmatprep.subr.bf16.mxu0 0
        %2915 = vmatpush1.bf16.msra.mxu0 %v2188
        %2916 = vmatprep.subr.bf16.mxu0 0
        %2917 = vmatpush1.bf16.msra.mxu0 0
        %2918 = vmatprep.subr.bf16.mxu0 0
        %2919 = vmatpush1.bf16.msra.mxu0 0
        %2920 = vmatprep.subr.bf16.mxu0 0
        %2921 = vmatpush1.bf16.msra.mxu0 0
        %2922 = vmatprep.subr.bf16.mxu0 0
        %2923 = vmatpush1.bf16.msra.mxu0 0
        %2924 = vmatprep.subr.bf16.mxu0 0
        %2925 = vmatpush1.bf16.msra.mxu0 0
        %2926 = vmatprep.subr.bf16.mxu0 0
        %2927 = vmatpush1.bf16.msra.mxu0 0
        %2928 = vmatprep.subr.bf16.mxu0 0
        %2929 = vmatpush1.bf16.msra.mxu0 0
        %2930 = vmatprep.subr.bf16.mxu0 0
        %2931 = vmatpush1.bf16.msra.mxu0 0
        %2932 = vmatprep.subr.bf16.mxu0 0
        %2933 = vmatpush1.bf16.msra.mxu0 0
        %2934 = vmatprep.subr.bf16.mxu0 0
        %2935 = vmatpush1.bf16.msra.mxu0 0
        %2936 = vmatprep.subr.bf16.mxu0 0
        %2937 = vmatpush1.bf16.msra.mxu0 0
        %2938 = vmatprep.subr.bf16.mxu0 0
        %2939 = vmatpush1.bf16.msra.mxu0 0
        %2940 = vmatprep.mubr.bf16.mxu0 0
        %2941 = vmatmul.mubr.bf16.gmra.mrb[0].mxu0 %v2906
        %v2942 = vpop.f32.mrb[0].mxu0
        %v2943 = vadd.f32 0.0, %v2942
        %v2944 = vpop.f32.mrb[0].mxu0
        %v2945 = vpop.f32.mrb[0].mxu0
        %v2946 = vpop.f32.mrb[0].mxu0
        %2947 = vdwg.mxu0
        %v2949 = vrot.slane %v2943, 3
        %v2950 = vrot.slane %v2943, 4
        %v2953 = vadd.f32 %v2163, %v2949
        %v2954 = vadd.f32 %v2166, %v2950
        %v2955 = vtanh.pop %v2953
        %v2956 = vtanh.pop %v2954
        %v2957 = vpack.c.bf16 %v2881, %v2881
        %v2958 = vpack.c.bf16 %v2882, %v2882
        %v2961 = vunpack.c.l.b16 %v2957
        %v2962 = vunpack.c.l.b16 %v2958
        %v2963 = vrot.slane %v2961, 3
        %v2964 = vrot.slane %v2962, 2
        %v2965 = vsel %vm679, %v2964, %v2963
        %v2966 = vpack.c.b16 %v2965, %v2965
        %2967 = vrot.lane.b32.xlu0 %v2966, 64
        %v2968 = vpop.permute.xlu0 %2967
        %v2970 = vsel %vm846, %v2968, 0
        %2972 = vmatprep.subr.bf16.mxu0 0
        %2973 = vmatpush1.bf16.msra.mxu0 %v2257
        %2974 = vmatprep.subr.bf16.mxu0 0
        %2975 = vmatpush1.bf16.msra.mxu0 %v2258
        %2976 = vmatprep.subr.bf16.mxu0 0
        %2977 = vmatpush1.bf16.msra.mxu0 %v2259
        %2978 = vmatprep.subr.bf16.mxu0 0
        %2979 = vmatpush1.bf16.msra.mxu0 %v2260
        %2980 = vmatprep.subr.bf16.mxu0 0
        %2981 = vmatpush1.bf16.msra.mxu0 0
        %2982 = vmatprep.subr.bf16.mxu0 0
        %2983 = vmatpush1.bf16.msra.mxu0 0
        %2984 = vmatprep.subr.bf16.mxu0 0
        %2985 = vmatpush1.bf16.msra.mxu0 0
        %2986 = vmatprep.subr.bf16.mxu0 0
        %2987 = vmatpush1.bf16.msra.mxu0 0
        %2988 = vmatprep.subr.bf16.mxu0 0
        %2989 = vmatpush1.bf16.msra.mxu0 0
        %2990 = vmatprep.subr.bf16.mxu0 0
        %2991 = vmatpush1.bf16.msra.mxu0 0
        %2992 = vmatprep.subr.bf16.mxu0 0
        %2993 = vmatpush1.bf16.msra.mxu0 0
        %2994 = vmatprep.subr.bf16.mxu0 0
        %2995 = vmatpush1.bf16.msra.mxu0 0
        %2996 = vmatprep.subr.bf16.mxu0 0
        %2997 = vmatpush1.bf16.msra.mxu0 0
        %2998 = vmatprep.subr.bf16.mxu0 0
        %2999 = vmatpush1.bf16.msra.mxu0 0
        %3000 = vmatprep.subr.bf16.mxu0 0
        %3001 = vmatpush1.bf16.msra.mxu0 0
        %3002 = vmatprep.subr.bf16.mxu0 0
        %3003 = vmatpush1.bf16.msra.mxu0 0
        %3004 = vmatprep.mubr.bf16.mxu0 0
        %3005 = vmatmul.mubr.bf16.gmra.mrb[0].mxu0 %v2970
        %v3006 = vpop.f32.mrb[0].mxu0
        %v3007 = vadd.f32 0.0, %v3006
        %v3008 = vpop.f32.mrb[0].mxu0
        %v3009 = vpop.f32.mrb[0].mxu0
        %v3010 = vpop.f32.mrb[0].mxu0
        %3011 = vdwg.mxu0
        %v3013 = vrot.slane %v3007, 6
        %v3014 = vrot.slane %v3007, 7
        %3015 = vrot.lane.b32.xlu0 %v3013, 64
        %v3016 = vpop.permute.xlu0 %3015
        %3017 = vrot.lane.b32.xlu0 %v3014, 64
        %v3018 = vpop.permute.xlu0 %3017
        %v3021 = vadd.f32 %v2163, %v3016
        %v3022 = vadd.f32 %v2166, %v3018
        %v3023 = vtanh.pop %v3021
        %v3024 = vtanh.pop %v3022
        %3025 = vst.msk [vmem:[#allocation4] sm:$0x20] %vm1339, %v2955
        %3026 = vst.msk [vmem:[#allocation4 + $0x8] sm:$0x20] %vm1339, %v2956
        %3029 = vrot.lane.b32.xlu0 %v3023, 64
        %v3030 = vpop.permute.xlu0 %3029
        %3031 = vrot.lane.b32.xlu0 %v3024, 64
        %v3032 = vpop.permute.xlu0 %3031
        %3035 = vst.msk [vmem:[#allocation5] sm:$0x4] %vm1328, %v3030
        %3036 = vst.msk [vmem:[#allocation5 + $0x8] sm:$0x4] %vm1328, %v3032
        %v3037 = vpack.c.bf16 %v2955, %v2955
        %v3038 = vpack.c.bf16 %v2956, %v2956
        %v3041 = vunpack.c.l.b16 %v3037
        %v3042 = vunpack.c.l.b16 %v3038
        %v3043 = vrot.slane %v3041, 5
        %v3044 = vrot.slane %v3042, 4
        %v3045 = vsel %vm679, %v3044, %v3043
        %v3046 = vpack.c.b16 %v3045, %v3045
        %v3048 = vsel %vm846, %v3046, 0
        %3050 = vmatprep.subr.bf16.mxu0 0
        %3051 = vmatpush1.bf16.msra.mxu0 %v2185
        %3052 = vmatprep.subr.bf16.mxu0 0
        %3053 = vmatpush1.bf16.msra.mxu0 %v2186
        %3054 = vmatprep.subr.bf16.mxu0 0
        %3055 = vmatpush1.bf16.msra.mxu0 %v2187
        %3056 = vmatprep.subr.bf16.mxu0 0
        %3057 = vmatpush1.bf16.msra.mxu0 %v2188
        %3058 = vmatprep.subr.bf16.mxu0 0
        %3059 = vmatpush1.bf16.msra.mxu0 0
        %3060 = vmatprep.subr.bf16.mxu0 0
        %3061 = vmatpush1.bf16.msra.mxu0 0
        %3062 = vmatprep.subr.bf16.mxu0 0
        %3063 = vmatpush1.bf16.msra.mxu0 0
        %3064 = vmatprep.subr.bf16.mxu0 0
        %3065 = vmatpush1.bf16.msra.mxu0 0
        %3066 = vmatprep.subr.bf16.mxu0 0
        %3067 = vmatpush1.bf16.msra.mxu0 0
        %3068 = vmatprep.subr.bf16.mxu0 0
        %3069 = vmatpush1.bf16.msra.mxu0 0
        %3070 = vmatprep.subr.bf16.mxu0 0
        %3071 = vmatpush1.bf16.msra.mxu0 0
        %3072 = vmatprep.subr.bf16.mxu0 0
        %3073 = vmatpush1.bf16.msra.mxu0 0
        %3074 = vmatprep.subr.bf16.mxu0 0
        %3075 = vmatpush1.bf16.msra.mxu0 0
        %3076 = vmatprep.subr.bf16.mxu0 0
        %3077 = vmatpush1.bf16.msra.mxu0 0
        %3078 = vmatprep.subr.bf16.mxu0 0
        %3079 = vmatpush1.bf16.msra.mxu0 0
        %3080 = vmatprep.subr.bf16.mxu0 0
        %3081 = vmatpush1.bf16.msra.mxu0 0
        %3082 = vmatprep.mubr.bf16.mxu0 0
        %3083 = vmatmul.mubr.bf16.gmra.mrb[0].mxu0 %v3048
        %v3084 = vpop.f32.mrb[0].mxu0
        %v3085 = vadd.f32 0.0, %v3084
        %v3086 = vpop.f32.mrb[0].mxu0
        %v3087 = vpop.f32.mrb[0].mxu0
        %v3088 = vpop.f32.mrb[0].mxu0
        %3089 = vdwg.mxu0
        %v3091 = vrot.slane %v3085, 2
        %v3092 = vrot.slane %v3085, 3
        %v3095 = vadd.f32 %v2163, %v3091
        %v3096 = vadd.f32 %v2166, %v3092
        %v3097 = vtanh.pop %v3095
        %v3098 = vtanh.pop %v3096
        %v3099 = vpack.c.bf16 %v3023, %v3023
        %v3100 = vpack.c.bf16 %v3024, %v3024
        %v3103 = vunpack.c.l.b16 %v3099
        %v3104 = vunpack.c.l.b16 %v3100
        %v3105 = vrot.slane %v3103, 2
        %v3106 = vrot.slane %v3104, 1
        %v3107 = vsel %vm679, %v3106, %v3105
        %v3108 = vpack.c.b16 %v3107, %v3107
        %3109 = vrot.lane.b32.xlu0 %v3108, 64
        %v3110 = vpop.permute.xlu0 %3109
        %v3112 = vsel %vm846, %v3110, 0
        %3114 = vmatprep.subr.bf16.mxu0 0
        %3115 = vmatpush1.bf16.msra.mxu0 %v2257
        %3116 = vmatprep.subr.bf16.mxu0 0
        %3117 = vmatpush1.bf16.msra.mxu0 %v2258
        %3118 = vmatprep.subr.bf16.mxu0 0
        %3119 = vmatpush1.bf16.msra.mxu0 %v2259
        %3120 = vmatprep.subr.bf16.mxu0 0
        %3121 = vmatpush1.bf16.msra.mxu0 %v2260
        %3122 = vmatprep.subr.bf16.mxu0 0
        %3123 = vmatpush1.bf16.msra.mxu0 0
        %3124 = vmatprep.subr.bf16.mxu0 0
        %3125 = vmatpush1.bf16.msra.mxu0 0
        %3126 = vmatprep.subr.bf16.mxu0 0
        %3127 = vmatpush1.bf16.msra.mxu0 0
        %3128 = vmatprep.subr.bf16.mxu0 0
        %3129 = vmatpush1.bf16.msra.mxu0 0
        %3130 = vmatprep.subr.bf16.mxu0 0
        %3131 = vmatpush1.bf16.msra.mxu0 0
        %3132 = vmatprep.subr.bf16.mxu0 0
        %3133 = vmatpush1.bf16.msra.mxu0 0
        %3134 = vmatprep.subr.bf16.mxu0 0
        %3135 = vmatpush1.bf16.msra.mxu0 0
        %3136 = vmatprep.subr.bf16.mxu0 0
        %3137 = vmatpush1.bf16.msra.mxu0 0
        %3138 = vmatprep.subr.bf16.mxu0 0
        %3139 = vmatpush1.bf16.msra.mxu0 0
        %3140 = vmatprep.subr.bf16.mxu0 0
        %3141 = vmatpush1.bf16.msra.mxu0 0
        %3142 = vmatprep.subr.bf16.mxu0 0
        %3143 = vmatpush1.bf16.msra.mxu0 0
        %3144 = vmatprep.subr.bf16.mxu0 0
        %3145 = vmatpush1.bf16.msra.mxu0 0
        %3146 = vmatprep.mubr.bf16.mxu0 0
        %3147 = vmatmul.mubr.bf16.gmra.mrb[0].mxu0 %v3112
        %v3148 = vpop.f32.mrb[0].mxu0
        %v3149 = vadd.f32 0.0, %v3148
        %v3150 = vpop.f32.mrb[0].mxu0
        %v3151 = vpop.f32.mrb[0].mxu0
        %v3152 = vpop.f32.mrb[0].mxu0
        %3153 = vdwg.mxu0
        %v3155 = vrot.slane %v3149, 7
        %3156 = vrot.lane.b32.xlu0 %v3155, 64
        %v3157 = vpop.permute.xlu0 %3156
        %3158 = vrot.lane.b32.xlu0 %v3149, 64
        %v3159 = vpop.permute.xlu0 %3158
        %v3162 = vadd.f32 %v2163, %v3157
        %v3163 = vadd.f32 %v2166, %v3159
        %v3164 = vtanh.pop %v3162
        %v3165 = vtanh.pop %v3163
        %3166 = vst.msk [vmem:[#allocation4] sm:$0x40] %vm1196, %v3097
        %3167 = vst.msk [vmem:[#allocation4 + $0x8] sm:$0x40] %vm1196, %v3098
        %3170 = vrot.lane.b32.xlu0 %v3164, 64
        %v3171 = vpop.permute.xlu0 %3170
        %3172 = vrot.lane.b32.xlu0 %v3165, 64
        %v3173 = vpop.permute.xlu0 %3172
        %3176 = vst.msk [vmem:[#allocation5] sm:$0x2] %vm1185, %v3171
        %3177 = vst.msk [vmem:[#allocation5 + $0x8] sm:$0x2] %vm1185, %v3173
        %v3178 = vpack.c.bf16 %v3097, %v3097
        %v3179 = vpack.c.bf16 %v3098, %v3098
        %v3182 = vunpack.c.l.b16 %v3178
        %v3183 = vunpack.c.l.b16 %v3179
        %v3184 = vrot.slane %v3182, 6
        %v3185 = vrot.slane %v3183, 5
        %v3186 = vsel %vm679, %v3185, %v3184
        %v3187 = vpack.c.b16 %v3186, %v3186
        %v3189 = vsel %vm846, %v3187, 0
        %3191 = vmatprep.subr.bf16.mxu0 0
        %3192 = vmatpush1.bf16.msra.mxu0 %v2185
        %3193 = vmatprep.subr.bf16.mxu0 0
        %3194 = vmatpush1.bf16.msra.mxu0 %v2186
        %3195 = vmatprep.subr.bf16.mxu0 0
        %3196 = vmatpush1.bf16.msra.mxu0 %v2187
        %3197 = vmatprep.subr.bf16.mxu0 0
        %3198 = vmatpush1.bf16.msra.mxu0 %v2188
        %3199 = vmatprep.subr.bf16.mxu0 0
        %3200 = vmatpush1.bf16.msra.mxu0 0
        %3201 = vmatprep.subr.bf16.mxu0 0
        %3202 = vmatpush1.bf16.msra.mxu0 0
        %3203 = vmatprep.subr.bf16.mxu0 0
        %3204 = vmatpush1.bf16.msra.mxu0 0
        %3205 = vmatprep.subr.bf16.mxu0 0
        %3206 = vmatpush1.bf16.msra.mxu0 0
        %3207 = vmatprep.subr.bf16.mxu0 0
        %3208 = vmatpush1.bf16.msra.mxu0 0
        %3209 = vmatprep.subr.bf16.mxu0 0
        %3210 = vmatpush1.bf16.msra.mxu0 0
        %3211 = vmatprep.subr.bf16.mxu0 0
        %3212 = vmatpush1.bf16.msra.mxu0 0
        %3213 = vmatprep.subr.bf16.mxu0 0
        %3214 = vmatpush1.bf16.msra.mxu0 0
        %3215 = vmatprep.subr.bf16.mxu0 0
        %3216 = vmatpush1.bf16.msra.mxu0 0
        %3217 = vmatprep.subr.bf16.mxu0 0
        %3218 = vmatpush1.bf16.msra.mxu0 0
        %3219 = vmatprep.subr.bf16.mxu0 0
        %3220 = vmatpush1.bf16.msra.mxu0 0
        %3221 = vmatprep.subr.bf16.mxu0 0
        %3222 = vmatpush1.bf16.msra.mxu0 0
        %3223 = vmatprep.mubr.bf16.mxu0 0
        %3224 = vmatmul.mubr.bf16.gmra.mrb[0].mxu0 %v3189
        %v3225 = vpop.f32.mrb[0].mxu0
        %v3226 = vadd.f32 0.0, %v3225
        %v3227 = vpop.f32.mrb[0].mxu0
        %v3228 = vpop.f32.mrb[0].mxu0
        %v3229 = vpop.f32.mrb[0].mxu0
        %3230 = vdwg.mxu0
        %v3232 = vrot.slane %v3226, 1
        %v3233 = vrot.slane %v3226, 2
        %v3236 = vadd.f32 %v2163, %v3232
        %v3237 = vadd.f32 %v2166, %v3233
        %v3238 = vtanh.pop %v3236
        %v3239 = vtanh.pop %v3237
        %v3240 = vpack.c.bf16 %v3164, %v3164
        %v3241 = vpack.c.bf16 %v3165, %v3165
        %v3244 = vunpack.c.l.b16 %v3240
        %v3245 = vunpack.c.l.b16 %v3241
        %v3246 = vrot.slane %v3244, 1
        %v3247 = vsel %vm679, %v3245, %v3246
        %v3248 = vpack.c.b16 %v3247, %v3247
        %3249 = vrot.lane.b32.xlu0 %v3248, 64
        %v3250 = vpop.permute.xlu0 %3249
        %v3252 = vsel %vm846, %v3250, 0
        %3254 = vmatprep.subr.bf16.mxu0 0
        %3255 = vmatpush1.bf16.msra.mxu0 %v2257
        %3256 = vmatprep.subr.bf16.mxu0 0
        %3257 = vmatpush1.bf16.msra.mxu0 %v2258
        %3258 = vmatprep.subr.bf16.mxu0 0
        %3259 = vmatpush1.bf16.msra.mxu0 %v2259
        %3260 = vmatprep.subr.bf16.mxu0 0
        %3261 = vmatpush1.bf16.msra.mxu0 %v2260
        %3262 = vmatprep.subr.bf16.mxu0 0
        %3263 = vmatpush1.bf16.msra.mxu0 0
        %3264 = vmatprep.subr.bf16.mxu0 0
        %3265 = vmatpush1.bf16.msra.mxu0 0
        %3266 = vmatprep.subr.bf16.mxu0 0
        %3267 = vmatpush1.bf16.msra.mxu0 0
        %3268 = vmatprep.subr.bf16.mxu0 0
        %3269 = vmatpush1.bf16.msra.mxu0 0
        %3270 = vmatprep.subr.bf16.mxu0 0
        %3271 = vmatpush1.bf16.msra.mxu0 0
        %3272 = vmatprep.subr.bf16.mxu0 0
        %3273 = vmatpush1.bf16.msra.mxu0 0
        %3274 = vmatprep.subr.bf16.mxu0 0
        %3275 = vmatpush1.bf16.msra.mxu0 0
        %3276 = vmatprep.subr.bf16.mxu0 0
        %3277 = vmatpush1.bf16.msra.mxu0 0
        %3278 = vmatprep.subr.bf16.mxu0 0
        %3279 = vmatpush1.bf16.msra.mxu0 0
        %3280 = vmatprep.subr.bf16.mxu0 0
        %3281 = vmatpush1.bf16.msra.mxu0 0
        %3282 = vmatprep.subr.bf16.mxu0 0
        %3283 = vmatpush1.bf16.msra.mxu0 0
        %3284 = vmatprep.subr.bf16.mxu0 0
        %3285 = vmatpush1.bf16.msra.mxu0 0
        %3286 = vmatprep.mubr.bf16.mxu0 0
        %3287 = vmatmul.mubr.bf16.gmra.mrb[0].mxu0 %v3252
        %v3288 = vpop.f32.mrb[0].mxu0
        %v3289 = vadd.f32 0.0, %v3288
        %v3290 = vpop.f32.mrb[0].mxu0
        %v3291 = vpop.f32.mrb[0].mxu0
        %v3292 = vpop.f32.mrb[0].mxu0
        %3293 = vdwg.mxu0
        %v3295 = vrot.slane %v3289, 1
        %3296 = vrot.lane.b32.xlu0 %v3289, 64
        %v3297 = vpop.permute.xlu0 %3296
        %3298 = vrot.lane.b32.xlu0 %v3295, 64
        %v3299 = vpop.permute.xlu0 %3298
        %v3302 = vadd.f32 %v2163, %v3297
        %v3303 = vadd.f32 %v2166, %v3299
        %v3304 = vtanh.pop %v3302
        %v3305 = vtanh.pop %v3303
        %3306 = vst.msk [vmem:[#allocation4] sm:$0x80] %vm1054, %v3238
        %3307 = vst.msk [vmem:[#allocation4 + $0x8] sm:$0x80] %vm1054, %v3239
        %3310 = vrot.lane.b32.xlu0 %v3304, 64
        %v3311 = vpop.permute.xlu0 %3310
        %3312 = vrot.lane.b32.xlu0 %v3305, 64
        %v3313 = vpop.permute.xlu0 %3312
        %3316 = vst.msk [vmem:[#allocation5] sm:$0x1] %vm1043, %v3311
        %3317 = vst.msk [vmem:[#allocation5 + $0x8] sm:$0x1] %vm1043, %v3313
        %v3318 = vld [vmem:[#allocation4] sm:$0xff]
        %v3319 = vld [vmem:[#allocation4 + $0x8] sm:$0xff]
        %v3320 = vld [vmem:[#allocation5] sm:$0xff]
        %v3321 = vld [vmem:[#allocation5 + $0x8] sm:$0xff]
        %3324 = vrot.lane.b32.xlu0 %v3320, 64
        %v3325 = vpop.permute.xlu0 %3324
        %3326 = vrot.lane.b32.xlu0 %v3321, 64
        %v3327 = vpop.permute.xlu0 %3326
        %v3330 = vsel %vm846, %v3318, %v3325
        %v3331 = vsel %vm846, %v3319, %v3327
        %v3332 = vpack.c.bf16 %v2063, %v2063
        %v3333 = vpack.c.bf16 %v2064, %v2064
        %v3334 = vpack.c.bf16 %v3330, %v3330
        %v3335 = vpack.c.bf16 %v3331, %v3331
        %v3336 = vld [vmem:[%s14] sm:$0xf]
        %v3337 = vld [vmem:[%s14 + $0x4] sm:$0xf]
        %v3338 = vld [vmem:[%s14 + $0x8] sm:$0xf]
        %v3339 = vld [vmem:[%s14 + $0xc] sm:$0xf]
        %v3340 = vld [vmem:[%s14 + $0x10] sm:$0xf]
        %v3341 = vld [vmem:[%s14 + $0x14] sm:$0xf]
        %v3342 = vld [vmem:[%s14 + $0x18] sm:$0xf]
        %v3343 = vld [vmem:[%s14 + $0x1c] sm:$0xf]
        %v3344 = vld [vmem:[%s14 + $0x20] sm:$0xf]
        %v3345 = vld [vmem:[%s14 + $0x24] sm:$0xf]
        %v3346 = vld [vmem:[%s14 + $0x28] sm:$0xf]
        %v3347 = vld [vmem:[%s14 + $0x2c] sm:$0xf]
        %v3348 = vld [vmem:[%s14 + $0x30] sm:$0xf]
        %v3349 = vld [vmem:[%s14 + $0x34] sm:$0xf]
        %v3350 = vld [vmem:[%s14 + $0x38] sm:$0xf]
        %v3351 = vld [vmem:[%s14 + $0x3c] sm:$0xf]
        %v3352 = vpack.c.bf16 %v2064, %v2063
        %v3369 = vunpack.c.l.b16 %v3336
        %v3370 = vunpack.c.l.b16 %v3337
        %v3371 = vunpack.c.l.b16 %v3338
        %v3372 = vunpack.c.l.b16 %v3339
        %v3373 = vunpack.c.l.b16 %v3340
        %v3374 = vunpack.c.l.b16 %v3341
        %v3375 = vunpack.c.l.b16 %v3342
        %v3376 = vunpack.c.l.b16 %v3343
        %v3377 = vunpack.c.l.b16 %v3344
        %v3378 = vunpack.c.l.b16 %v3345
        %v3379 = vunpack.c.l.b16 %v3346
        %v3380 = vunpack.c.l.b16 %v3347
        %v3381 = vunpack.c.l.b16 %v3348
        %v3382 = vunpack.c.l.b16 %v3349
        %v3383 = vunpack.c.l.b16 %v3350
        %v3384 = vunpack.c.l.b16 %v3351
        %v3385 = vpack.c.b16 %v3370, %v3369
        %v3386 = vpack.c.b16 %v3372, %v3371
        %v3387 = vpack.c.b16 %v3374, %v3373
        %v3388 = vpack.c.b16 %v3376, %v3375
        %v3389 = vpack.c.b16 %v3378, %v3377
        %v3390 = vpack.c.b16 %v3380, %v3379
        %v3391 = vpack.c.b16 %v3382, %v3381
        %v3392 = vpack.c.b16 %v3384, %v3383
        %3401 = vmatprep.subr.bf16.mxu0 0
        %3402 = vmatpush1.bf16.msra.mxu0 %v3385
        %3403 = vmatprep.subr.bf16.mxu0 0
        %3404 = vmatpush1.bf16.msra.mxu0 %v3386
        %3405 = vmatprep.subr.bf16.mxu0 0
        %3406 = vmatpush1.bf16.msra.mxu0 %v3387
        %3407 = vmatprep.subr.bf16.mxu0 0
        %3408 = vmatpush1.bf16.msra.mxu0 %v3388
        %3409 = vmatprep.subr.bf16.mxu0 0
        %3410 = vmatpush1.bf16.msra.mxu0 %v3389
        %3411 = vmatprep.subr.bf16.mxu0 0
        %3412 = vmatpush1.bf16.msra.mxu0 %v3390
        %3413 = vmatprep.subr.bf16.mxu0 0
        %3414 = vmatpush1.bf16.msra.mxu0 %v3391
        %3415 = vmatprep.subr.bf16.mxu0 0
        %3416 = vmatpush1.bf16.msra.mxu0 %v3392
        %3417 = vmatprep.subr.bf16.mxu0 0
        %3418 = vmatpush1.bf16.msra.mxu0 0
        %3419 = vmatprep.subr.bf16.mxu0 0
        %3420 = vmatpush1.bf16.msra.mxu0 0
        %3421 = vmatprep.subr.bf16.mxu0 0
        %3422 = vmatpush1.bf16.msra.mxu0 0
        %3423 = vmatprep.subr.bf16.mxu0 0
        %3424 = vmatpush1.bf16.msra.mxu0 0
        %3425 = vmatprep.subr.bf16.mxu0 0
        %3426 = vmatpush1.bf16.msra.mxu0 0
        %3427 = vmatprep.subr.bf16.mxu0 0
        %3428 = vmatpush1.bf16.msra.mxu0 0
        %3429 = vmatprep.subr.bf16.mxu0 0
        %3430 = vmatpush1.bf16.msra.mxu0 0
        %3431 = vmatprep.subr.bf16.mxu0 0
        %3432 = vmatpush1.bf16.msra.mxu0 0
        %3433 = vmatprep.mubr.bf16.mxu0 0
        %3434 = vmatmul.mubr.bf16.gmra.mrb[0].mxu0 %v3352
        %v3435 = vpop.f32.mrb[0].mxu0
        %v3436 = vadd.f32 0.0, %v3435
        %v3437 = vpop.f32.mrb[0].mxu0
        %v3438 = vpop.f32.mrb[0].mxu0
        %v3439 = vadd.f32 0.0, %v3438
        %v3440 = vpop.f32.mrb[0].mxu0
        %3441 = vdwg.mxu0
        %v3442 = vpack.c.bf16 %v3436, %v3436
        %v3443 = vpack.c.bf16 %v3439, %v3439
        %3444 = vmatprep.subr.bf16.mxu0 0
        %3445 = vmatpush1.bf16.xpose.msra.mxu0 %v3334
        %3446 = vmatprep.subr.bf16.mxu0 0
        %3447 = vmatpush1.bf16.xpose.msra.mxu0 0
        %3448 = vmatprep.subr.bf16.mxu0 0
        %3449 = vmatpush1.bf16.xpose.msra.mxu0 0
        %3450 = vmatprep.subr.bf16.mxu0 0
        %3451 = vmatpush1.bf16.xpose.msra.mxu0 0
        %3452 = vmatprep.subr.bf16.mxu0 0
        %3453 = vmatpush1.bf16.xpose.msra.mxu0 0
        %3454 = vmatprep.subr.bf16.mxu0 0
        %3455 = vmatpush1.bf16.xpose.msra.mxu0 0
        %3456 = vmatprep.subr.bf16.mxu0 0
        %3457 = vmatpush1.bf16.xpose.msra.mxu0 0
        %3458 = vmatprep.subr.bf16.mxu0 0
        %3459 = vmatpush1.bf16.xpose.msra.mxu0 0
        %3460 = vmatprep.subr.bf16.mxu0 0
        %3461 = vmatpush1.bf16.xpose.msra.mxu0 0
        %3462 = vmatprep.subr.bf16.mxu0 0
        %3463 = vmatpush1.bf16.xpose.msra.mxu0 0
        %3464 = vmatprep.subr.bf16.mxu0 0
        %3465 = vmatpush1.bf16.xpose.msra.mxu0 0
        %3466 = vmatprep.subr.bf16.mxu0 0
        %3467 = vmatpush1.bf16.xpose.msra.mxu0 0
        %3468 = vmatprep.subr.bf16.mxu0 0
        %3469 = vmatpush1.bf16.xpose.msra.mxu0 0
        %3470 = vmatprep.subr.bf16.mxu0 0
        %3471 = vmatpush1.bf16.xpose.msra.mxu0 0
        %3472 = vmatprep.subr.bf16.mxu0 0
        %3473 = vmatpush1.bf16.xpose.msra.mxu0 0
        %3474 = vmatprep.subr.bf16.mxu0 0
        %3475 = vmatpush1.bf16.xpose.msra.mxu0 0
        %3476 = vmatprep.mubr.bf16.mxu0 0
        %3477 = vmatmul.mubr.bf16.gmra.mrb[0].mxu0 %v3442
        %v3478 = vpop.f32.mrb[0].mxu0
        %v3479 = vadd.f32 0.0, %v3478
        %v3480 = vpop.f32.mrb[0].mxu0
        %v3481 = vpop.f32.mrb[0].mxu0
        %v3482 = vpop.f32.mrb[0].mxu0
        %3483 = vdwg.mxu0
        %3484 = vmatprep.subr.bf16.mxu0 0
        %3485 = vmatpush1.bf16.xpose.msra.mxu0 %v3335
        %3486 = vmatprep.subr.bf16.mxu0 0
        %3487 = vmatpush1.bf16.xpose.msra.mxu0 0
        %3488 = vmatprep.subr.bf16.mxu0 0
        %3489 = vmatpush1.bf16.xpose.msra.mxu0 0
        %3490 = vmatprep.subr.bf16.mxu0 0
        %3491 = vmatpush1.bf16.xpose.msra.mxu0 0
        %3492 = vmatprep.subr.bf16.mxu0 0
        %3493 = vmatpush1.bf16.xpose.msra.mxu0 0
        %3494 = vmatprep.subr.bf16.mxu0 0
        %3495 = vmatpush1.bf16.xpose.msra.mxu0 0
        %3496 = vmatprep.subr.bf16.mxu0 0
        %3497 = vmatpush1.bf16.xpose.msra.mxu0 0
        %3498 = vmatprep.subr.bf16.mxu0 0
        %3499 = vmatpush1.bf16.xpose.msra.mxu0 0
        %3500 = vmatprep.subr.bf16.mxu0 0
        %3501 = vmatpush1.bf16.xpose.msra.mxu0 0
        %3502 = vmatprep.subr.bf16.mxu0 0
        %3503 = vmatpush1.bf16.xpose.msra.mxu0 0
        %3504 = vmatprep.subr.bf16.mxu0 0
        %3505 = vmatpush1.bf16.xpose.msra.mxu0 0
        %3506 = vmatprep.subr.bf16.mxu0 0
        %3507 = vmatpush1.bf16.xpose.msra.mxu0 0
        %3508 = vmatprep.subr.bf16.mxu0 0
        %3509 = vmatpush1.bf16.xpose.msra.mxu0 0
        %3510 = vmatprep.subr.bf16.mxu0 0
        %3511 = vmatpush1.bf16.xpose.msra.mxu0 0
        %3512 = vmatprep.subr.bf16.mxu0 0
        %3513 = vmatpush1.bf16.xpose.msra.mxu0 0
        %3514 = vmatprep.subr.bf16.mxu0 0
        %3515 = vmatpush1.bf16.xpose.msra.mxu0 0
        %3516 = vmatprep.mubr.bf16.mxu0 0
        %3517 = vmatmul.mubr.bf16.gmra.mrb[0].mxu0 %v3443
        %v3518 = vpop.f32.mrb[0].mxu0
        %v3519 = vadd.f32 0.0, %v3518
        %v3520 = vpop.f32.mrb[0].mxu0
        %v3521 = vpop.f32.mrb[0].mxu0
        %v3522 = vpop.f32.mrb[0].mxu0
        %3523 = vdwg.mxu0
        %vm3524 = vcmask 64512
        %v3525 = vsel %vm3524, %v3479, -inf
        %3526 = vmax.xlane.f32.xlu0 %v3525
        %v3527 = vpop.xlane.xlu0 %3526
        %v3528 = vsel %vm3524, %v3519, -inf
        %3529 = vmax.xlane.f32.xlu0 %v3528
        %v3530 = vpop.xlane.xlu0 %3529
        %v3531 = vsub.f32 %v3479, %v3527
        %v3532 = vsub.f32 %v3519, %v3530
        %v3533 = vmul.f32 %v3531, 1.442695
        %v3534 = vpow.pop %v3533
        %v3535 = vmul.f32 %v3532, 1.442695
        %v3536 = vpow.pop %v3535
        %v3537 = vsel %vm3524, %v3534, 0.0
        %3538 = vadd.xlane.f32.xlu0 %v3537
        %v3539 = vpop.xlane.xlu0 %3538
        %v3540 = vsel %vm3524, %v3536, 0.0
        %3541 = vadd.xlane.f32.xlu0 %v3540
        %v3542 = vpop.xlane.xlu0 %3541
        %v3543 = vrcp.pop %v3539
        %v3544 = vrcp.pop %v3542
        %v3545 = vmul.f32 %v3534, %v3543
        %v3546 = vmul.f32 %v3536, %v3544
        %v3547 = vpack.c.bf16 %v3545, %v3545
        %v3548 = vpack.c.bf16 %v3546, %v3546
        %v3550 = vsel %vm3524, %v3547, 0
        %vm3552 = vcmask 1043456
        %v3554 = vsel %vm3552, %v3334, 0
        %3556 = vmatprep.subr.bf16.mxu0 0
        %3557 = vmatpush1.bf16.msra.mxu0 %v3554
        %3558 = vmatprep.subr.bf16.mxu0 0
        %3559 = vmatpush1.bf16.msra.mxu0 0
        %3560 = vmatprep.subr.bf16.mxu0 0
        %3561 = vmatpush1.bf16.msra.mxu0 0
        %3562 = vmatprep.subr.bf16.mxu0 0
        %3563 = vmatpush1.bf16.msra.mxu0 0
        %3564 = vmatprep.subr.bf16.mxu0 0
        %3565 = vmatpush1.bf16.msra.mxu0 0
        %3566 = vmatprep.subr.bf16.mxu0 0
        %3567 = vmatpush1.bf16.msra.mxu0 0
        %3568 = vmatprep.subr.bf16.mxu0 0
        %3569 = vmatpush1.bf16.msra.mxu0 0
        %3570 = vmatprep.subr.bf16.mxu0 0
        %3571 = vmatpush1.bf16.msra.mxu0 0
        %3572 = vmatprep.subr.bf16.mxu0 0
        %3573 = vmatpush1.bf16.msra.mxu0 0
        %3574 = vmatprep.subr.bf16.mxu0 0
        %3575 = vmatpush1.bf16.msra.mxu0 0
        %3576 = vmatprep.subr.bf16.mxu0 0
        %3577 = vmatpush1.bf16.msra.mxu0 0
        %3578 = vmatprep.subr.bf16.mxu0 0
        %3579 = vmatpush1.bf16.msra.mxu0 0
        %3580 = vmatprep.subr.bf16.mxu0 0
        %3581 = vmatpush1.bf16.msra.mxu0 0
        %3582 = vmatprep.subr.bf16.mxu0 0
        %3583 = vmatpush1.bf16.msra.mxu0 0
        %3584 = vmatprep.subr.bf16.mxu0 0
        %3585 = vmatpush1.bf16.msra.mxu0 0
        %3586 = vmatprep.subr.bf16.mxu0 0
        %3587 = vmatpush1.bf16.msra.mxu0 0
        %3588 = vmatprep.mubr.bf16.mxu0 0
        %3589 = vmatmul.mubr.bf16.gmra.mrb[0].mxu0 %v3550
        %v3590 = vpop.f32.mrb[0].mxu0
        %v3591 = vadd.f32 0.0, %v3590
        %v3592 = vpop.f32.mrb[0].mxu0
        %v3593 = vpop.f32.mrb[0].mxu0
        %v3594 = vpop.f32.mrb[0].mxu0
        %3595 = vdwg.mxu0
        %v3597 = vsel %vm3524, %v3548, 0
        %v3600 = vsel %vm3552, %v3335, 0
        %3602 = vmatprep.subr.bf16.mxu0 0
        %3603 = vmatpush1.bf16.msra.mxu0 %v3600
        %3604 = vmatprep.subr.bf16.mxu0 0
        %3605 = vmatpush1.bf16.msra.mxu0 0
        %3606 = vmatprep.subr.bf16.mxu0 0
        %3607 = vmatpush1.bf16.msra.mxu0 0
        %3608 = vmatprep.subr.bf16.mxu0 0
        %3609 = vmatpush1.bf16.msra.mxu0 0
        %3610 = vmatprep.subr.bf16.mxu0 0
        %3611 = vmatpush1.bf16.msra.mxu0 0
        %3612 = vmatprep.subr.bf16.mxu0 0
        %3613 = vmatpush1.bf16.msra.mxu0 0
        %3614 = vmatprep.subr.bf16.mxu0 0
        %3615 = vmatpush1.bf16.msra.mxu0 0
        %3616 = vmatprep.subr.bf16.mxu0 0
        %3617 = vmatpush1.bf16.msra.mxu0 0
        %3618 = vmatprep.subr.bf16.mxu0 0
        %3619 = vmatpush1.bf16.msra.mxu0 0
        %3620 = vmatprep.subr.bf16.mxu0 0
        %3621 = vmatpush1.bf16.msra.mxu0 0
        %3622 = vmatprep.subr.bf16.mxu0 0
        %3623 = vmatpush1.bf16.msra.mxu0 0
        %3624 = vmatprep.subr.bf16.mxu0 0
        %3625 = vmatpush1.bf16.msra.mxu0 0
        %3626 = vmatprep.subr.bf16.mxu0 0
        %3627 = vmatpush1.bf16.msra.mxu0 0
        %3628 = vmatprep.subr.bf16.mxu0 0
        %3629 = vmatpush1.bf16.msra.mxu0 0
        %3630 = vmatprep.subr.bf16.mxu0 0
        %3631 = vmatpush1.bf16.msra.mxu0 0
        %3632 = vmatprep.subr.bf16.mxu0 0
        %3633 = vmatpush1.bf16.msra.mxu0 0
        %3634 = vmatprep.mubr.bf16.mxu0 0
        %3635 = vmatmul.mubr.bf16.gmra.mrb[0].mxu0 %v3597
        %v3636 = vpop.f32.mrb[0].mxu0
        %v3637 = vadd.f32 0.0, %v3636
        %v3638 = vpop.f32.mrb[0].mxu0
        %v3639 = vpop.f32.mrb[0].mxu0
        %v3640 = vpop.f32.mrb[0].mxu0
        %3641 = vdwg.mxu0
        %v3642 = vrot.slane %v3525, 4
        %v3643 = vmax.f32 %v3525, %v3642
        %v3644 = vrot.slane %v3643, 2
        %v3645 = vmax.f32 %v3643, %v3644
        %v3646 = vrot.slane %v3645, 1
        %v3647 = vmax.f32 %v3645, %v3646
        %v3648 = vrot.slane %v3528, 4
        %v3649 = vmax.f32 %v3528, %v3648
        %v3650 = vrot.slane %v3649, 2
        %v3651 = vmax.f32 %v3649, %v3650
        %v3652 = vrot.slane %v3651, 1
        %v3653 = vmax.f32 %v3651, %v3652
        %v3654 = vsub.f32 %v3479, %v3647
        %v3655 = vsub.f32 %v3519, %v3653
        %v3656 = vmul.f32 %v3654, 1.442695
        %v3657 = vpow.pop %v3656
        %v3658 = vmul.f32 %v3655, 1.442695
        %v3659 = vpow.pop %v3658
        %v3660 = vsel %vm3524, %v3657, 0.0
        %v3661 = vrot.slane %v3660, 4
        %v3662 = vadd.f32 %v3660, %v3661
        %v3663 = vrot.slane %v3662, 2
        %v3664 = vadd.f32 %v3662, %v3663
        %v3665 = vrot.slane %v3664, 1
        %v3666 = vadd.f32 %v3664, %v3665
        %v3667 = vsel %vm3524, %v3659, 0.0
        %v3668 = vrot.slane %v3667, 4
        %v3669 = vadd.f32 %v3667, %v3668
        %v3670 = vrot.slane %v3669, 2
        %v3671 = vadd.f32 %v3669, %v3670
        %v3672 = vrot.slane %v3671, 1
        %v3673 = vadd.f32 %v3671, %v3672
        %v3674 = vrcp.pop %v3666
        %v3675 = vrcp.pop %v3673
        %v3676 = vmul.f32 %v3657, %v3674
        %v3677 = vmul.f32 %v3659, %v3675
        %v3678 = vpack.c.bf16 %v3676, %v3676
        %v3679 = vpack.c.bf16 %v3677, %v3677
        %3680 = vxpose.xlu0.c.b16.start [1/8] %v3678, 128
        %3681 = vxpose.xlu0.c.b16.cont [2/8] 0, 128
        %3682 = vxpose.xlu0.c.b16.cont [3/8] 0, 128
        %3683 = vxpose.xlu0.c.b16.cont [4/8] 0, 128
        %3684 = vxpose.xlu0.c.b16.cont [5/8] 0, 128
        %3685 = vxpose.xlu0.c.b16.cont [6/8] 0, 128
        %3686 = vxpose.xlu0.c.b16.cont [7/8] 0, 128
        %3687 = vxpose.xlu0.c.b16.end [8/8] 0, 128
        %v3688 = vpop.trf.xlu0
        %v3689 = vpop.trf.xlu0
        %v3690 = vpop.trf.xlu0
        %v3691 = vpop.trf.xlu0
        %v3692 = vpop.trf.xlu0
        %v3693 = vpop.trf.xlu0
        %v3694 = vpop.trf.xlu0
        %v3695 = vpop.trf.xlu0
        %v3697 = vsel %vm3524, %v3688, 0
        %v3700 = vsel %vm3552, %v3332, 0
        %3702 = vmatprep.subr.bf16.mxu0 0
        %3703 = vmatpush1.bf16.msra.mxu0 %v3700
        %3704 = vmatprep.subr.bf16.mxu0 0
        %3705 = vmatpush1.bf16.msra.mxu0 0
        %3706 = vmatprep.subr.bf16.mxu0 0
        %3707 = vmatpush1.bf16.msra.mxu0 0
        %3708 = vmatprep.subr.bf16.mxu0 0
        %3709 = vmatpush1.bf16.msra.mxu0 0
        %3710 = vmatprep.subr.bf16.mxu0 0
        %3711 = vmatpush1.bf16.msra.mxu0 0
        %3712 = vmatprep.subr.bf16.mxu0 0
        %3713 = vmatpush1.bf16.msra.mxu0 0
        %3714 = vmatprep.subr.bf16.mxu0 0
        %3715 = vmatpush1.bf16.msra.mxu0 0
        %3716 = vmatprep.subr.bf16.mxu0 0
        %3717 = vmatpush1.bf16.msra.mxu0 0
        %3718 = vmatprep.subr.bf16.mxu0 0
        %3719 = vmatpush1.bf16.msra.mxu0 0
        %3720 = vmatprep.subr.bf16.mxu0 0
        %3721 = vmatpush1.bf16.msra.mxu0 0
        %3722 = vmatprep.subr.bf16.mxu0 0
        %3723 = vmatpush1.bf16.msra.mxu0 0
        %3724 = vmatprep.subr.bf16.mxu0 0
        %3725 = vmatpush1.bf16.msra.mxu0 0
        %3726 = vmatprep.subr.bf16.mxu0 0
        %3727 = vmatpush1.bf16.msra.mxu0 0
        %3728 = vmatprep.subr.bf16.mxu0 0
        %3729 = vmatpush1.bf16.msra.mxu0 0
        %3730 = vmatprep.subr.bf16.mxu0 0
        %3731 = vmatpush1.bf16.msra.mxu0 0
        %3732 = vmatprep.subr.bf16.mxu0 0
        %3733 = vmatpush1.bf16.msra.mxu0 0
        %3734 = vmatprep.mubr.bf16.mxu0 0
        %3735 = vmatmul.mubr.bf16.gmra.mrb[0].mxu0 %v3697
        %v3736 = vpop.f32.mrb[0].mxu0
        %v3737 = vadd.f32 0.0, %v3736
        %v3738 = vpop.f32.mrb[0].mxu0
        %v3739 = vpop.f32.mrb[0].mxu0
        %v3740 = vpop.f32.mrb[0].mxu0
        %3741 = vdwg.mxu0
        %3742 = vxpose.xlu0.c.b16.start [1/8] %v3679, 128
        %3743 = vxpose.xlu0.c.b16.cont [2/8] 0, 128
        %3744 = vxpose.xlu0.c.b16.cont [3/8] 0, 128
        %3745 = vxpose.xlu0.c.b16.cont [4/8] 0, 128
        %3746 = vxpose.xlu0.c.b16.cont [5/8] 0, 128
        %3747 = vxpose.xlu0.c.b16.cont [6/8] 0, 128
        %3748 = vxpose.xlu0.c.b16.cont [7/8] 0, 128
        %3749 = vxpose.xlu0.c.b16.end [8/8] 0, 128
        %v3750 = vpop.trf.xlu0
        %v3751 = vpop.trf.xlu0
        %v3752 = vpop.trf.xlu0
        %v3753 = vpop.trf.xlu0
        %v3754 = vpop.trf.xlu0
        %v3755 = vpop.trf.xlu0
        %v3756 = vpop.trf.xlu0
        %v3757 = vpop.trf.xlu0
        %v3759 = vsel %vm3524, %v3750, 0
        %v3762 = vsel %vm3552, %v3333, 0
        %3764 = vmatprep.subr.bf16.mxu0 0
        %3765 = vmatpush1.bf16.msra.mxu0 %v3762
        %3766 = vmatprep.subr.bf16.mxu0 0
        %3767 = vmatpush1.bf16.msra.mxu0 0
        %3768 = vmatprep.subr.bf16.mxu0 0
        %3769 = vmatpush1.bf16.msra.mxu0 0
        %3770 = vmatprep.subr.bf16.mxu0 0
        %3771 = vmatpush1.bf16.msra.mxu0 0
        %3772 = vmatprep.subr.bf16.mxu0 0
        %3773 = vmatpush1.bf16.msra.mxu0 0
        %3774 = vmatprep.subr.bf16.mxu0 0
        %3775 = vmatpush1.bf16.msra.mxu0 0
        %3776 = vmatprep.subr.bf16.mxu0 0
        %3777 = vmatpush1.bf16.msra.mxu0 0
        %3778 = vmatprep.subr.bf16.mxu0 0
        %3779 = vmatpush1.bf16.msra.mxu0 0
        %3780 = vmatprep.subr.bf16.mxu0 0
        %3781 = vmatpush1.bf16.msra.mxu0 0
        %3782 = vmatprep.subr.bf16.mxu0 0
        %3783 = vmatpush1.bf16.msra.mxu0 0
        %3784 = vmatprep.subr.bf16.mxu0 0
        %3785 = vmatpush1.bf16.msra.mxu0 0
        %3786 = vmatprep.subr.bf16.mxu0 0
        %3787 = vmatpush1.bf16.msra.mxu0 0
        %3788 = vmatprep.subr.bf16.mxu0 0
        %3789 = vmatpush1.bf16.msra.mxu0 0
        %3790 = vmatprep.subr.bf16.mxu0 0
        %3791 = vmatpush1.bf16.msra.mxu0 0
        %3792 = vmatprep.subr.bf16.mxu0 0
        %3793 = vmatpush1.bf16.msra.mxu0 0
        %3794 = vmatprep.subr.bf16.mxu0 0
        %3795 = vmatpush1.bf16.msra.mxu0 0
        %3796 = vmatprep.mubr.bf16.mxu0 0
        %3797 = vmatmul.mubr.bf16.gmra.mrb[0].mxu0 %v3759
        %v3798 = vpop.f32.mrb[0].mxu0
        %v3799 = vadd.f32 0.0, %v3798
        %v3800 = vpop.f32.mrb[0].mxu0
        %v3801 = vpop.f32.mrb[0].mxu0
        %v3802 = vpop.f32.mrb[0].mxu0
        %3803 = vdwg.mxu0
        %v3804 = vmul.f32 %v3591, %v2063
        %v3805 = vmul.f32 %v3637, %v2064
        %v3806 = vld [vmem:[%s15] sm:$0xff]
        %v3807 = vld [vmem:[%s15 + $0x8] sm:$0xff]
        %v3808 = vld [vmem:[%s15 + $0x10] sm:$0xff]
        %v3809 = vld [vmem:[%s15 + $0x18] sm:$0xff]
        %v3810 = vld [vmem:[%s15 + $0x20] sm:$0xff]
        %v3811 = vld [vmem:[%s15 + $0x28] sm:$0xff]
        %v3812 = vld [vmem:[%s15 + $0x30] sm:$0xff]
        %v3813 = vld [vmem:[%s15 + $0x38] sm:$0xff]
        %v3814 = vld [vmem:[%s15 + $0x40] sm:$0xff]
        %v3815 = vld [vmem:[%s15 + $0x48] sm:$0xff]
        %v3816 = vld [vmem:[%s15 + $0x50] sm:$0xff]
        %v3817 = vld [vmem:[%s15 + $0x58] sm:$0xff]
        %v3818 = vld [vmem:[%s15 + $0x60] sm:$0xff]
        %v3819 = vld [vmem:[%s15 + $0x68] sm:$0xff]
        %v3820 = vld [vmem:[%s15 + $0x70] sm:$0xff]
        %v3821 = vld [vmem:[%s15 + $0x78] sm:$0xff]
        %v3822 = vld [vmem:[%s15 + $0x80] sm:$0xff]
        %v3823 = vld [vmem:[%s15 + $0x88] sm:$0xff]
        %v3824 = vld [vmem:[%s15 + $0x90] sm:$0xff]
        %v3825 = vld [vmem:[%s15 + $0x98] sm:$0xff]
        %v3826 = vld [vmem:[%s15 + $0xa0] sm:$0xff]
        %v3827 = vld [vmem:[%s15 + $0xa8] sm:$0xff]
        %v3828 = vld [vmem:[%s15 + $0xb0] sm:$0xff]
        %v3829 = vld [vmem:[%s15 + $0xb8] sm:$0xff]
        %v3830 = vld [vmem:[%s15 + $0xc0] sm:$0xff]
        %v3831 = vld [vmem:[%s15 + $0xc8] sm:$0xff]
        %v3832 = vld [vmem:[%s15 + $0xd0] sm:$0xff]
        %v3833 = vld [vmem:[%s15 + $0xd8] sm:$0xff]
        %v3834 = vld [vmem:[%s15 + $0xe0] sm:$0xff]
        %v3835 = vld [vmem:[%s15 + $0xe8] sm:$0xff]
        %v3836 = vld [vmem:[%s15 + $0xf0] sm:$0xff]
        %v3837 = vld [vmem:[%s15 + $0xf8] sm:$0xff]
        %v3838 = vld [vmem:[%s15 + $0x100] sm:$0xff]
        %v3839 = vld [vmem:[%s15 + $0x108] sm:$0xff]
        %v3840 = vld [vmem:[%s15 + $0x110] sm:$0xff]
        %v3841 = vld [vmem:[%s15 + $0x118] sm:$0xff]
        %v3842 = vld [vmem:[%s15 + $0x120] sm:$0xff]
        %v3843 = vld [vmem:[%s15 + $0x128] sm:$0xff]
        %v3844 = vld [vmem:[%s15 + $0x130] sm:$0xff]
        %v3845 = vld [vmem:[%s15 + $0x138] sm:$0xff]
        %v3846 = vld [vmem:[%s15 + $0x140] sm:$0xff]
        %v3847 = vld [vmem:[%s15 + $0x148] sm:$0xff]
        %v3848 = vld [vmem:[%s15 + $0x150] sm:$0xff]
        %v3849 = vld [vmem:[%s15 + $0x158] sm:$0xff]
        %v3850 = vld [vmem:[%s15 + $0x160] sm:$0xff]
        %v3851 = vld [vmem:[%s15 + $0x168] sm:$0xff]
        %v3852 = vld [vmem:[%s15 + $0x170] sm:$0xff]
        %v3853 = vld [vmem:[%s15 + $0x178] sm:$0xff]
        %v3854 = vpack.c.bf16 %v3637, %v3591
        %v3855 = vpack.c.bf16 %v3805, %v3804
        %v3904 = vunpack.c.l.b16 %v3806
        %v3905 = vunpack.c.h.b16 %v3806
        %v3906 = vunpack.c.l.b16 %v3807
        %v3907 = vunpack.c.h.b16 %v3807
        %v3908 = vunpack.c.l.b16 %v3808
        %v3909 = vunpack.c.h.b16 %v3808
        %v3910 = vunpack.c.l.b16 %v3809
        %v3911 = vunpack.c.h.b16 %v3809
        %v3912 = vunpack.c.l.b16 %v3810
        %v3913 = vunpack.c.h.b16 %v3810
        %v3914 = vunpack.c.l.b16 %v3811
        %v3915 = vunpack.c.h.b16 %v3811
        %v3916 = vunpack.c.l.b16 %v3812
        %v3917 = vunpack.c.h.b16 %v3812
        %v3918 = vunpack.c.l.b16 %v3813
        %v3919 = vunpack.c.h.b16 %v3813
        %v3920 = vunpack.c.l.b16 %v3814
        %v3921 = vunpack.c.h.b16 %v3814
        %v3922 = vunpack.c.l.b16 %v3815
        %v3923 = vunpack.c.h.b16 %v3815
        %v3924 = vunpack.c.l.b16 %v3816
        %v3925 = vunpack.c.h.b16 %v3816
        %v3926 = vunpack.c.l.b16 %v3817
        %v3927 = vunpack.c.h.b16 %v3817
        %v3928 = vunpack.c.l.b16 %v3818
        %v3929 = vunpack.c.h.b16 %v3818
        %v3930 = vunpack.c.l.b16 %v3819
        %v3931 = vunpack.c.h.b16 %v3819
        %v3932 = vunpack.c.l.b16 %v3820
        %v3933 = vunpack.c.h.b16 %v3820
        %v3934 = vunpack.c.l.b16 %v3821
        %v3935 = vunpack.c.h.b16 %v3821
        %v3936 = vunpack.c.l.b16 %v3822
        %v3937 = vunpack.c.h.b16 %v3822
        %v3938 = vunpack.c.l.b16 %v3823
        %v3939 = vunpack.c.h.b16 %v3823
        %v3940 = vunpack.c.l.b16 %v3824
        %v3941 = vunpack.c.h.b16 %v3824
        %v3942 = vunpack.c.l.b16 %v3825
        %v3943 = vunpack.c.h.b16 %v3825
        %v3944 = vunpack.c.l.b16 %v3826
        %v3945 = vunpack.c.h.b16 %v3826
        %v3946 = vunpack.c.l.b16 %v3827
        %v3947 = vunpack.c.h.b16 %v3827
        %v3948 = vunpack.c.l.b16 %v3828
        %v3949 = vunpack.c.h.b16 %v3828
        %v3950 = vunpack.c.l.b16 %v3829
        %v3951 = vunpack.c.h.b16 %v3829
        %v3952 = vunpack.c.l.b16 %v3830
        %v3953 = vunpack.c.h.b16 %v3830
        %v3954 = vunpack.c.l.b16 %v3831
        %v3955 = vunpack.c.h.b16 %v3831
        %v3956 = vunpack.c.l.b16 %v3832
        %v3957 = vunpack.c.h.b16 %v3832
        %v3958 = vunpack.c.l.b16 %v3833
        %v3959 = vunpack.c.h.b16 %v3833
        %v3960 = vunpack.c.l.b16 %v3834
        %v3961 = vunpack.c.h.b16 %v3834
        %v3962 = vunpack.c.l.b16 %v3835
        %v3963 = vunpack.c.h.b16 %v3835
        %v3964 = vunpack.c.l.b16 %v3836
        %v3965 = vunpack.c.h.b16 %v3836
        %v3966 = vunpack.c.l.b16 %v3837
        %v3967 = vunpack.c.h.b16 %v3837
        %v3968 = vunpack.c.l.b16 %v3838
        %v3969 = vunpack.c.h.b16 %v3838
        %v3970 = vunpack.c.l.b16 %v3839
        %v3971 = vunpack.c.h.b16 %v3839
        %v3972 = vunpack.c.l.b16 %v3840
        %v3973 = vunpack.c.h.b16 %v3840
        %v3974 = vunpack.c.l.b16 %v3841
        %v3975 = vunpack.c.h.b16 %v3841
        %v3976 = vunpack.c.l.b16 %v3842
        %v3977 = vunpack.c.h.b16 %v3842
        %v3978 = vunpack.c.l.b16 %v3843
        %v3979 = vunpack.c.h.b16 %v3843
        %v3980 = vunpack.c.l.b16 %v3844
        %v3981 = vunpack.c.h.b16 %v3844
        %v3982 = vunpack.c.l.b16 %v3845
        %v3983 = vunpack.c.h.b16 %v3845
        %v3984 = vunpack.c.l.b16 %v3846
        %v3985 = vunpack.c.h.b16 %v3846
        %v3986 = vunpack.c.l.b16 %v3847
        %v3987 = vunpack.c.h.b16 %v3847
        %v3988 = vunpack.c.l.b16 %v3848
        %v3989 = vunpack.c.h.b16 %v3848
        %v3990 = vunpack.c.l.b16 %v3849
        %v3991 = vunpack.c.h.b16 %v3849
        %v3992 = vunpack.c.l.b16 %v3850
        %v3993 = vunpack.c.h.b16 %v3850
        %v3994 = vunpack.c.l.b16 %v3851
        %v3995 = vunpack.c.h.b16 %v3851
        %v3996 = vunpack.c.l.b16 %v3852
        %v3997 = vunpack.c.h.b16 %v3852
        %v3998 = vunpack.c.l.b16 %v3853
        %v3999 = vunpack.c.h.b16 %v3853
        %v4000 = vpack.c.b16 %v3906, %v3904
        %v4001 = vpack.c.b16 %v3907, %v3905
        %v4002 = vpack.c.b16 %v3910, %v3908
        %v4003 = vpack.c.b16 %v3911, %v3909
        %v4004 = vpack.c.b16 %v3914, %v3912
        %v4005 = vpack.c.b16 %v3915, %v3913
        %v4006 = vpack.c.b16 %v3918, %v3916
        %v4007 = vpack.c.b16 %v3919, %v3917
        %v4008 = vpack.c.b16 %v3922, %v3920
        %v4009 = vpack.c.b16 %v3923, %v3921
        %v4010 = vpack.c.b16 %v3926, %v3924
        %v4011 = vpack.c.b16 %v3927, %v3925
        %v4012 = vpack.c.b16 %v3930, %v3928
        %v4013 = vpack.c.b16 %v3931, %v3929
        %v4014 = vpack.c.b16 %v3934, %v3932
        %v4015 = vpack.c.b16 %v3935, %v3933
        %v4016 = vpack.c.b16 %v3938, %v3936
        %v4017 = vpack.c.b16 %v3939, %v3937
        %v4018 = vpack.c.b16 %v3942, %v3940
        %v4019 = vpack.c.b16 %v3943, %v3941
        %v4020 = vpack.c.b16 %v3946, %v3944
        %v4021 = vpack.c.b16 %v3947, %v3945
        %v4022 = vpack.c.b16 %v3950, %v3948
        %v4023 = vpack.c.b16 %v3951, %v3949
        %v4024 = vpack.c.b16 %v3954, %v3952
        %v4025 = vpack.c.b16 %v3955, %v3953
        %v4026 = vpack.c.b16 %v3958, %v3956
        %v4027 = vpack.c.b16 %v3959, %v3957
        %v4028 = vpack.c.b16 %v3962, %v3960
        %v4029 = vpack.c.b16 %v3963, %v3961
        %v4030 = vpack.c.b16 %v3966, %v3964
        %v4031 = vpack.c.b16 %v3967, %v3965
        %v4032 = vpack.c.b16 %v3970, %v3968
        %v4033 = vpack.c.b16 %v3971, %v3969
        %v4034 = vpack.c.b16 %v3974, %v3972
        %v4035 = vpack.c.b16 %v3975, %v3973
        %v4036 = vpack.c.b16 %v3978, %v3976
        %v4037 = vpack.c.b16 %v3979, %v3977
        %v4038 = vpack.c.b16 %v3982, %v3980
        %v4039 = vpack.c.b16 %v3983, %v3981
        %v4040 = vpack.c.b16 %v3986, %v3984
        %v4041 = vpack.c.b16 %v3987, %v3985
        %v4042 = vpack.c.b16 %v3990, %v3988
        %v4043 = vpack.c.b16 %v3991, %v3989
        %v4044 = vpack.c.b16 %v3994, %v3992
        %v4045 = vpack.c.b16 %v3995, %v3993
        %v4046 = vpack.c.b16 %v3998, %v3996
        %v4047 = vpack.c.b16 %v3999, %v3997
        %4096 = vmatprep.subr.bf16.mxu0 %v4001
        %4097 = vmatpush1.bf16.msra.mxu0 %v4000
        %4098 = vmatprep.subr.bf16.mxu0 %v4003
        %4099 = vmatpush1.bf16.msra.mxu0 %v4002
        %4100 = vmatprep.subr.bf16.mxu0 %v4005
        %4101 = vmatpush1.bf16.msra.mxu0 %v4004
        %4102 = vmatprep.subr.bf16.mxu0 %v4007
        %4103 = vmatpush1.bf16.msra.mxu0 %v4006
        %4104 = vmatprep.subr.bf16.mxu0 %v4009
        %4105 = vmatpush1.bf16.msra.mxu0 %v4008
        %4106 = vmatprep.subr.bf16.mxu0 %v4011
        %4107 = vmatpush1.bf16.msra.mxu0 %v4010
        %4108 = vmatprep.subr.bf16.mxu0 %v4013
        %4109 = vmatpush1.bf16.msra.mxu0 %v4012
        %4110 = vmatprep.subr.bf16.mxu0 %v4015
        %4111 = vmatpush1.bf16.msra.mxu0 %v4014
        %4112 = vmatprep.subr.bf16.mxu0 %v4017
        %4113 = vmatpush1.bf16.msra.mxu0 %v4016
        %4114 = vmatprep.subr.bf16.mxu0 %v4019
        %4115 = vmatpush1.bf16.msra.mxu0 %v4018
        %4116 = vmatprep.subr.bf16.mxu0 %v4021
        %4117 = vmatpush1.bf16.msra.mxu0 %v4020
        %4118 = vmatprep.subr.bf16.mxu0 %v4023
        %4119 = vmatpush1.bf16.msra.mxu0 %v4022
        %4120 = vmatprep.subr.bf16.mxu0 %v4025
        %4121 = vmatpush1.bf16.msra.mxu0 %v4024
        %4122 = vmatprep.subr.bf16.mxu0 %v4027
        %4123 = vmatpush1.bf16.msra.mxu0 %v4026
        %4124 = vmatprep.subr.bf16.mxu0 %v4029
        %4125 = vmatpush1.bf16.msra.mxu0 %v4028
        %4126 = vmatprep.subr.bf16.mxu0 %v4031
        %4127 = vmatpush1.bf16.msra.mxu0 %v4030
        %4128 = vmatprep.mubr.bf16.mxu0 %v3352
        %4129 = vmatmul.mubr.bf16.gmra.mrb[0].mxu0 %v3854
        %v4130 = vpop.f32.mrb[0].mxu0
        %v4131 = vadd.f32 0.0, %v4130
        %v4132 = vpop.f32.mrb[0].mxu0
        %v4133 = vadd.f32 0.0, %v4132
        %v4134 = vpop.f32.mrb[0].mxu0
        %v4135 = vadd.f32 0.0, %v4134
        %v4136 = vpop.f32.mrb[0].mxu0
        %v4137 = vadd.f32 0.0, %v4136
        %4138 = vdwg.mxu0
        %4139 = vmatprep.subr.bf16.mxu0 %v4033
        %4140 = vmatpush1.bf16.msra.mxu0 %v4032
        %4141 = vmatprep.subr.bf16.mxu0 %v4035
        %4142 = vmatpush1.bf16.msra.mxu0 %v4034
        %4143 = vmatprep.subr.bf16.mxu0 %v4037
        %4144 = vmatpush1.bf16.msra.mxu0 %v4036
        %4145 = vmatprep.subr.bf16.mxu0 %v4039
        %4146 = vmatpush1.bf16.msra.mxu0 %v4038
        %4147 = vmatprep.subr.bf16.mxu0 %v4041
        %4148 = vmatpush1.bf16.msra.mxu0 %v4040
        %4149 = vmatprep.subr.bf16.mxu0 %v4043
        %4150 = vmatpush1.bf16.msra.mxu0 %v4042
        %4151 = vmatprep.subr.bf16.mxu0 %v4045
        %4152 = vmatpush1.bf16.msra.mxu0 %v4044
        %4153 = vmatprep.subr.bf16.mxu0 %v4047
        %4154 = vmatpush1.bf16.msra.mxu0 %v4046
        %4155 = vmatprep.subr.bf16.mxu0 0
        %4156 = vmatpush1.bf16.msra.mxu0 0
        %4157 = vmatprep.subr.bf16.mxu0 0
        %4158 = vmatpush1.bf16.msra.mxu0 0
        %4159 = vmatprep.subr.bf16.mxu0 0
        %4160 = vmatpush1.bf16.msra.mxu0 0
        %4161 = vmatprep.subr.bf16.mxu0 0
        %4162 = vmatpush1.bf16.msra.mxu0 0
        %4163 = vmatprep.subr.bf16.mxu0 0
        %4164 = vmatpush1.bf16.msra.mxu0 0
        %4165 = vmatprep.subr.bf16.mxu0 0
        %4166 = vmatpush1.bf16.msra.mxu0 0
        %4167 = vmatprep.subr.bf16.mxu0 0
        %4168 = vmatpush1.bf16.msra.mxu0 0
        %4169 = vmatprep.subr.bf16.mxu0 0
        %4170 = vmatpush1.bf16.msra.mxu0 0
        %4171 = vmatprep.mubr.bf16.mxu0 0
        %4172 = vmatmul.mubr.bf16.gmra.mrb[0].mxu0 %v3855
        %v4173 = vpop.f32.mrb[0].mxu0
        %v4174 = vadd.f32 %v4131, %v4173
        %v4175 = vpop.f32.mrb[0].mxu0
        %v4176 = vadd.f32 %v4133, %v4175
        %v4177 = vpop.f32.mrb[0].mxu0
        %v4178 = vadd.f32 %v4135, %v4177
        %v4179 = vpop.f32.mrb[0].mxu0
        %v4180 = vadd.f32 %v4137, %v4179
        %4181 = vdwg.mxu0
        %v4182 = vmax.f32 %v4174, 0.0
        %v4183 = vmax.f32 %v4176, 0.0
        %v4184 = vmax.f32 %v4178, 0.0
        %v4185 = vmax.f32 %v4180, 0.0
        %4188 = vrot.lane.b32.xlu0 %v3591, 64
        %v4189 = vpop.permute.xlu0 %4188
        %4190 = vrot.lane.b32.xlu0 %v3637, 64
        %v4191 = vpop.permute.xlu0 %4190
        %4196 = vrot.lane.b32.xlu0 %v2063, 64
        %v4197 = vpop.permute.xlu0 %4196
        %4198 = vrot.lane.b32.xlu0 %v2064, 64
        %v4199 = vpop.permute.xlu0 %4198
        %v4202 = vsel %vm846, %v4183, %v4189
        %v4203 = vsel %vm846, %v4185, %v4191
        %v4204 = vsel %vm846, %v4189, %v4197
        %v4205 = vsel %vm846, %v4191, %v4199
        %v4206 = vld [vmem:[%s16] sm:$0xf]
        %v4207 = vld [vmem:[%s16 + $0x4] sm:$0xf]
        %v4208 = vld [vmem:[%s16 + $0x8] sm:$0xf]
        %v4209 = vld [vmem:[%s16 + $0xc] sm:$0xf]
        %v4210 = vld [vmem:[%s16 + $0x10] sm:$0xf]
        %v4211 = vld [vmem:[%s16 + $0x14] sm:$0xf]
        %v4212 = vld [vmem:[%s16 + $0x18] sm:$0xf]
        %v4213 = vld [vmem:[%s16 + $0x1c] sm:$0xf]
        %v4214 = vld [vmem:[%s16 + $0x20] sm:$0xf]
        %v4215 = vld [vmem:[%s16 + $0x24] sm:$0xf]
        %v4216 = vld [vmem:[%s16 + $0x28] sm:$0xf]
        %v4217 = vld [vmem:[%s16 + $0x2c] sm:$0xf]
        %v4218 = vld [vmem:[%s16 + $0x30] sm:$0xf]
        %v4219 = vld [vmem:[%s16 + $0x34] sm:$0xf]
        %v4220 = vld [vmem:[%s16 + $0x38] sm:$0xf]
        %v4221 = vld [vmem:[%s16 + $0x3c] sm:$0xf]
        %v4222 = vld [vmem:[%s16 + $0x40] sm:$0xf]
        %v4223 = vld [vmem:[%s16 + $0x44] sm:$0xf]
        %v4224 = vld [vmem:[%s16 + $0x48] sm:$0xf]
        %v4225 = vld [vmem:[%s16 + $0x4c] sm:$0xf]
        %v4226 = vld [vmem:[%s16 + $0x50] sm:$0xf]
        %v4227 = vld [vmem:[%s16 + $0x54] sm:$0xf]
        %v4228 = vld [vmem:[%s16 + $0x58] sm:$0xf]
        %v4229 = vld [vmem:[%s16 + $0x5c] sm:$0xf]
        %v4230 = vld [vmem:[%s16 + $0x60] sm:$0xf]
        %v4231 = vld [vmem:[%s16 + $0x64] sm:$0xf]
        %v4232 = vld [vmem:[%s16 + $0x68] sm:$0xf]
        %v4233 = vld [vmem:[%s16 + $0x6c] sm:$0xf]
        %v4234 = vld [vmem:[%s16 + $0x70] sm:$0xf]
        %v4235 = vld [vmem:[%s16 + $0x74] sm:$0xf]
        %v4236 = vld [vmem:[%s16 + $0x78] sm:$0xf]
        %v4237 = vld [vmem:[%s16 + $0x7c] sm:$0xf]
        %v4238 = vld [vmem:[%s16 + $0x80] sm:$0xf]
        %v4239 = vld [vmem:[%s16 + $0x84] sm:$0xf]
        %v4240 = vld [vmem:[%s16 + $0x88] sm:$0xf]
        %v4241 = vld [vmem:[%s16 + $0x8c] sm:$0xf]
        %v4242 = vld [vmem:[%s16 + $0x90] sm:$0xf]
        %v4243 = vld [vmem:[%s16 + $0x94] sm:$0xf]
        %v4244 = vld [vmem:[%s16 + $0x98] sm:$0xf]
        %v4245 = vld [vmem:[%s16 + $0x9c] sm:$0xf]
        %v4246 = vld [vmem:[%s16 + $0xa0] sm:$0xf]
        %v4247 = vld [vmem:[%s16 + $0xa4] sm:$0xf]
        %v4248 = vld [vmem:[%s16 + $0xa8] sm:$0xf]
        %v4249 = vld [vmem:[%s16 + $0xac] sm:$0xf]
        %v4250 = vld [vmem:[%s16 + $0xb0] sm:$0xf]
        %v4251 = vld [vmem:[%s16 + $0xb4] sm:$0xf]
        %v4252 = vld [vmem:[%s16 + $0xb8] sm:$0xf]
        %v4253 = vld [vmem:[%s16 + $0xbc] sm:$0xf]
        %v4254 = vld [vmem:[%s16 + $0xc0] sm:$0xf]
        %v4255 = vld [vmem:[%s16 + $0xc4] sm:$0xf]
        %v4256 = vld [vmem:[%s16 + $0xc8] sm:$0xf]
        %v4257 = vld [vmem:[%s16 + $0xcc] sm:$0xf]
        %v4258 = vld [vmem:[%s16 + $0xd0] sm:$0xf]
        %v4259 = vld [vmem:[%s16 + $0xd4] sm:$0xf]
        %v4260 = vld [vmem:[%s16 + $0xd8] sm:$0xf]
        %v4261 = vld [vmem:[%s16 + $0xdc] sm:$0xf]
        %v4262 = vpack.c.bf16 %v4184, %v4182
        %v4263 = vpack.c.bf16 %v4203, %v4202
        %v4264 = vpack.c.bf16 %v4205, %v4204
        %v4265 = vpack.c.bf16 %v4199, %v4197
        %v4322 = vunpack.c.l.b16 %v4206
        %v4323 = vunpack.c.l.b16 %v4207
        %v4324 = vunpack.c.l.b16 %v4208
        %v4325 = vunpack.c.l.b16 %v4209
        %v4326 = vunpack.c.l.b16 %v4210
        %v4327 = vunpack.c.l.b16 %v4211
        %v4328 = vunpack.c.l.b16 %v4212
        %v4329 = vunpack.c.l.b16 %v4213
        %v4330 = vunpack.c.l.b16 %v4214
        %v4331 = vunpack.c.l.b16 %v4215
        %v4332 = vunpack.c.l.b16 %v4216
        %v4333 = vunpack.c.l.b16 %v4217
        %v4334 = vunpack.c.l.b16 %v4218
        %v4335 = vunpack.c.l.b16 %v4219
        %v4336 = vunpack.c.l.b16 %v4220
        %v4337 = vunpack.c.l.b16 %v4221
        %v4338 = vunpack.c.l.b16 %v4222
        %v4339 = vunpack.c.l.b16 %v4223
        %v4340 = vunpack.c.l.b16 %v4224
        %v4341 = vunpack.c.l.b16 %v4225
        %v4342 = vunpack.c.l.b16 %v4226
        %v4343 = vunpack.c.l.b16 %v4227
        %v4344 = vunpack.c.l.b16 %v4228
        %v4345 = vunpack.c.l.b16 %v4229
        %v4346 = vunpack.c.l.b16 %v4230
        %v4347 = vunpack.c.l.b16 %v4231
        %v4348 = vunpack.c.l.b16 %v4232
        %v4349 = vunpack.c.l.b16 %v4233
        %v4350 = vunpack.c.l.b16 %v4234
        %v4351 = vunpack.c.l.b16 %v4235
        %v4352 = vunpack.c.l.b16 %v4236
        %v4353 = vunpack.c.l.b16 %v4237
        %v4354 = vunpack.c.l.b16 %v4238
        %v4355 = vunpack.c.l.b16 %v4239
        %v4356 = vunpack.c.l.b16 %v4240
        %v4357 = vunpack.c.l.b16 %v4241
        %v4358 = vunpack.c.l.b16 %v4242
        %v4359 = vunpack.c.l.b16 %v4243
        %v4360 = vunpack.c.l.b16 %v4244
        %v4361 = vunpack.c.l.b16 %v4245
        %v4362 = vunpack.c.l.b16 %v4246
        %v4363 = vunpack.c.l.b16 %v4247
        %v4364 = vunpack.c.l.b16 %v4248
        %v4365 = vunpack.c.l.b16 %v4249
        %v4366 = vunpack.c.l.b16 %v4250
        %v4367 = vunpack.c.l.b16 %v4251
        %v4368 = vunpack.c.l.b16 %v4252
        %v4369 = vunpack.c.l.b16 %v4253
        %v4370 = vunpack.c.l.b16 %v4254
        %v4371 = vunpack.c.l.b16 %v4255
        %v4372 = vunpack.c.l.b16 %v4256
        %v4373 = vunpack.c.l.b16 %v4257
        %v4374 = vunpack.c.l.b16 %v4258
        %v4375 = vunpack.c.l.b16 %v4259
        %v4376 = vunpack.c.l.b16 %v4260
        %v4377 = vunpack.c.l.b16 %v4261
        %v4378 = vpack.c.b16 %v4323, %v4322
        %v4379 = vpack.c.b16 %v4325, %v4324
        %v4380 = vpack.c.b16 %v4327, %v4326
        %v4381 = vpack.c.b16 %v4329, %v4328
        %v4382 = vpack.c.b16 %v4331, %v4330
        %v4383 = vpack.c.b16 %v4333, %v4332
        %v4384 = vpack.c.b16 %v4335, %v4334
        %v4385 = vpack.c.b16 %v4337, %v4336
        %v4386 = vpack.c.b16 %v4339, %v4338
        %v4387 = vpack.c.b16 %v4341, %v4340
        %v4388 = vpack.c.b16 %v4343, %v4342
        %v4389 = vpack.c.b16 %v4345, %v4344
        %v4390 = vpack.c.b16 %v4347, %v4346
        %v4391 = vpack.c.b16 %v4349, %v4348
        %v4392 = vpack.c.b16 %v4351, %v4350
        %v4393 = vpack.c.b16 %v4353, %v4352
        %v4394 = vpack.c.b16 %v4355, %v4354
        %v4395 = vpack.c.b16 %v4357, %v4356
        %v4396 = vpack.c.b16 %v4359, %v4358
        %v4397 = vpack.c.b16 %v4361, %v4360
        %v4398 = vpack.c.b16 %v4363, %v4362
        %v4399 = vpack.c.b16 %v4365, %v4364
        %v4400 = vpack.c.b16 %v4367, %v4366
        %v4401 = vpack.c.b16 %v4369, %v4368
        %v4402 = vpack.c.b16 %v4371, %v4370
        %v4403 = vpack.c.b16 %v4373, %v4372
        %v4404 = vpack.c.b16 %v4375, %v4374
        %v4405 = vpack.c.b16 %v4377, %v4376
        %v4435 = vsel %vm846, %v4265, 0
        %4437 = vmatprep.subr.bf16.mxu0 0
        %4438 = vmatpush1.bf16.msra.mxu0 %v4378
        %4439 = vmatprep.subr.bf16.mxu0 0
        %4440 = vmatpush1.bf16.msra.mxu0 %v4379
        %4441 = vmatprep.subr.bf16.mxu0 0
        %4442 = vmatpush1.bf16.msra.mxu0 %v4380
        %4443 = vmatprep.subr.bf16.mxu0 0
        %4444 = vmatpush1.bf16.msra.mxu0 %v4381
        %4445 = vmatprep.subr.bf16.mxu0 0
        %4446 = vmatpush1.bf16.msra.mxu0 %v4382
        %4447 = vmatprep.subr.bf16.mxu0 0
        %4448 = vmatpush1.bf16.msra.mxu0 %v4383
        %4449 = vmatprep.subr.bf16.mxu0 0
        %4450 = vmatpush1.bf16.msra.mxu0 %v4384
        %4451 = vmatprep.subr.bf16.mxu0 0
        %4452 = vmatpush1.bf16.msra.mxu0 %v4385
        %4453 = vmatprep.subr.bf16.mxu0 0
        %4454 = vmatpush1.bf16.msra.mxu0 %v4386
        %4455 = vmatprep.subr.bf16.mxu0 0
        %4456 = vmatpush1.bf16.msra.mxu0 %v4387
        %4457 = vmatprep.subr.bf16.mxu0 0
        %4458 = vmatpush1.bf16.msra.mxu0 %v4388
        %4459 = vmatprep.subr.bf16.mxu0 0
        %4460 = vmatpush1.bf16.msra.mxu0 %v4389
        %4461 = vmatprep.subr.bf16.mxu0 0
        %4462 = vmatpush1.bf16.msra.mxu0 %v4390
        %4463 = vmatprep.subr.bf16.mxu0 0
        %4464 = vmatpush1.bf16.msra.mxu0 %v4391
        %4465 = vmatprep.subr.bf16.mxu0 0
        %4466 = vmatpush1.bf16.msra.mxu0 %v4392
        %4467 = vmatprep.subr.bf16.mxu0 0
        %4468 = vmatpush1.bf16.msra.mxu0 %v4393
        %4469 = vmatprep.mubr.bf16.mxu0 %v4263
        %4470 = vmatmul.mubr.bf16.gmra.mrb[0].mxu0 %v4262
        %v4471 = vpop.f32.mrb[0].mxu0
        %v4472 = vadd.f32 0.0, %v4471
        %v4473 = vpop.f32.mrb[0].mxu0
        %v4474 = vpop.f32.mrb[0].mxu0
        %v4475 = vadd.f32 0.0, %v4474
        %v4476 = vpop.f32.mrb[0].mxu0
        %4477 = vdwg.mxu0
        %4478 = vmatprep.subr.bf16.mxu0 0
        %4479 = vmatpush1.bf16.msra.mxu0 %v4394
        %4480 = vmatprep.subr.bf16.mxu0 0
        %4481 = vmatpush1.bf16.msra.mxu0 %v4395
        %4482 = vmatprep.subr.bf16.mxu0 0
        %4483 = vmatpush1.bf16.msra.mxu0 %v4396
        %4484 = vmatprep.subr.bf16.mxu0 0
        %4485 = vmatpush1.bf16.msra.mxu0 %v4397
        %4486 = vmatprep.subr.bf16.mxu0 0
        %4487 = vmatpush1.bf16.msra.mxu0 %v4398
        %4488 = vmatprep.subr.bf16.mxu0 0
        %4489 = vmatpush1.bf16.msra.mxu0 %v4399
        %4490 = vmatprep.subr.bf16.mxu0 0
        %4491 = vmatpush1.bf16.msra.mxu0 %v4400
        %4492 = vmatprep.subr.bf16.mxu0 0
        %4493 = vmatpush1.bf16.msra.mxu0 %v4401
        %4494 = vmatprep.subr.bf16.mxu0 0
        %4495 = vmatpush1.bf16.msra.mxu0 %v4402
        %4496 = vmatprep.subr.bf16.mxu0 0
        %4497 = vmatpush1.bf16.msra.mxu0 %v4403
        %4498 = vmatprep.subr.bf16.mxu0 0
        %4499 = vmatpush1.bf16.msra.mxu0 %v4404
        %4500 = vmatprep.subr.bf16.mxu0 0
        %4501 = vmatpush1.bf16.msra.mxu0 %v4405
        %4502 = vmatprep.subr.bf16.mxu0 0
        %4503 = vmatpush1.bf16.msra.mxu0 0
        %4504 = vmatprep.subr.bf16.mxu0 0
        %4505 = vmatpush1.bf16.msra.mxu0 0
        %4506 = vmatprep.subr.bf16.mxu0 0
        %4507 = vmatpush1.bf16.msra.mxu0 0
        %4508 = vmatprep.subr.bf16.mxu0 0
        %4509 = vmatpush1.bf16.msra.mxu0 0
        %4510 = vmatprep.mubr.bf16.mxu0 %v4435
        %4511 = vmatmul.mubr.bf16.gmra.mrb[0].mxu0 %v4264
        %v4512 = vpop.f32.mrb[0].mxu0
        %v4513 = vadd.f32 %v4472, %v4512
        %v4514 = vpop.f32.mrb[0].mxu0
        %v4515 = vpop.f32.mrb[0].mxu0
        %v4516 = vadd.f32 %v4475, %v4515
        %v4517 = vpop.f32.mrb[0].mxu0
        %4518 = vdwg.mxu0
        %v4519 = vld [vmem:[%s17] sm:$0xf]
        %v4520 = vld [vmem:[%s17 + $0x4] sm:$0xf]
        %v4521 = vld [vmem:[%s17 + $0x8] sm:$0xf]
        %v4522 = vld [vmem:[%s17 + $0xc] sm:$0xf]
        %v4523 = vld [vmem:[%s17 + $0x10] sm:$0xf]
        %v4524 = vld [vmem:[%s17 + $0x14] sm:$0xf]
        %v4525 = vld [vmem:[%s17 + $0x18] sm:$0xf]
        %v4526 = vld [vmem:[%s17 + $0x1c] sm:$0xf]
        %v4527 = vld [vmem:[%s17 + $0x20] sm:$0xf]
        %v4528 = vld [vmem:[%s17 + $0x24] sm:$0xf]
        %v4529 = vld [vmem:[%s17 + $0x28] sm:$0xf]
        %v4530 = vld [vmem:[%s17 + $0x2c] sm:$0xf]
        %v4531 = vld [vmem:[%s17 + $0x30] sm:$0xf]
        %v4532 = vld [vmem:[%s17 + $0x34] sm:$0xf]
        %v4533 = vld [vmem:[%s17 + $0x38] sm:$0xf]
        %v4534 = vld [vmem:[%s17 + $0x3c] sm:$0xf]
        %v4535 = vpack.c.bf16 %v3799, %v3737
        %v4552 = vunpack.c.l.b16 %v4519
        %v4553 = vunpack.c.l.b16 %v4520
        %v4554 = vunpack.c.l.b16 %v4521
        %v4555 = vunpack.c.l.b16 %v4522
        %v4556 = vunpack.c.l.b16 %v4523
        %v4557 = vunpack.c.l.b16 %v4524
        %v4558 = vunpack.c.l.b16 %v4525
        %v4559 = vunpack.c.l.b16 %v4526
        %v4560 = vunpack.c.l.b16 %v4527
        %v4561 = vunpack.c.l.b16 %v4528
        %v4562 = vunpack.c.l.b16 %v4529
        %v4563 = vunpack.c.l.b16 %v4530
        %v4564 = vunpack.c.l.b16 %v4531
        %v4565 = vunpack.c.l.b16 %v4532
        %v4566 = vunpack.c.l.b16 %v4533
        %v4567 = vunpack.c.l.b16 %v4534
        %v4568 = vpack.c.b16 %v4553, %v4552
        %v4569 = vpack.c.b16 %v4555, %v4554
        %v4570 = vpack.c.b16 %v4557, %v4556
        %v4571 = vpack.c.b16 %v4559, %v4558
        %v4572 = vpack.c.b16 %v4561, %v4560
        %v4573 = vpack.c.b16 %v4563, %v4562
        %v4574 = vpack.c.b16 %v4565, %v4564
        %v4575 = vpack.c.b16 %v4567, %v4566
        %4584 = vmatprep.subr.bf16.mxu0 0
        %4585 = vmatpush1.bf16.msra.mxu0 %v4568
        %4586 = vmatprep.subr.bf16.mxu0 0
        %4587 = vmatpush1.bf16.msra.mxu0 %v4569
        %4588 = vmatprep.subr.bf16.mxu0 0
        %4589 = vmatpush1.bf16.msra.mxu0 %v4570
        %4590 = vmatprep.subr.bf16.mxu0 0
        %4591 = vmatpush1.bf16.msra.mxu0 %v4571
        %4592 = vmatprep.subr.bf16.mxu0 0
        %4593 = vmatpush1.bf16.msra.mxu0 %v4572
        %4594 = vmatprep.subr.bf16.mxu0 0
        %4595 = vmatpush1.bf16.msra.mxu0 %v4573
        %4596 = vmatprep.subr.bf16.mxu0 0
        %4597 = vmatpush1.bf16.msra.mxu0 %v4574
        %4598 = vmatprep.subr.bf16.mxu0 0
        %4599 = vmatpush1.bf16.msra.mxu0 %v4575
        %4600 = vmatprep.subr.bf16.mxu0 0
        %4601 = vmatpush1.bf16.msra.mxu0 0
        %4602 = vmatprep.subr.bf16.mxu0 0
        %4603 = vmatpush1.bf16.msra.mxu0 0
        %4604 = vmatprep.subr.bf16.mxu0 0
        %4605 = vmatpush1.bf16.msra.mxu0 0
        %4606 = vmatprep.subr.bf16.mxu0 0
        %4607 = vmatpush1.bf16.msra.mxu0 0
        %4608 = vmatprep.subr.bf16.mxu0 0
        %4609 = vmatpush1.bf16.msra.mxu0 0
        %4610 = vmatprep.subr.bf16.mxu0 0
        %4611 = vmatpush1.bf16.msra.mxu0 0
        %4612 = vmatprep.subr.bf16.mxu0 0
        %4613 = vmatpush1.bf16.msra.mxu0 0
        %4614 = vmatprep.subr.bf16.mxu0 0
        %4615 = vmatpush1.bf16.msra.mxu0 0
        %4616 = vmatprep.mubr.bf16.mxu0 0
        %4617 = vmatmul.mubr.bf16.gmra.mrb[0].mxu0 %v4535
        %v4618 = vpop.f32.mrb[0].mxu0
        %v4619 = vadd.f32 0.0, %v4618
        %v4620 = vpop.f32.mrb[0].mxu0
        %v4621 = vpop.f32.mrb[0].mxu0
        %v4622 = vadd.f32 0.0, %v4621
        %v4623 = vpop.f32.mrb[0].mxu0
        %4624 = vdwg.mxu0
        %v4625 = vrot.slane %v4513, 4
        %v4626 = vmax.f32 %v4513, %v4625
        %v4627 = vrot.slane %v4626, 2
        %v4628 = vmax.f32 %v4626, %v4627
        %v4629 = vrot.slane %v4628, 1
        %v4630 = vmax.f32 %v4628, %v4629
        %v4631 = vrot.slane %v4516, 4
        %v4632 = vmax.f32 %v4516, %v4631
        %v4633 = vrot.slane %v4632, 2
        %v4634 = vmax.f32 %v4632, %v4633
        %v4635 = vrot.slane %v4634, 1
        %v4636 = vmax.f32 %v4634, %v4635
        %v4637 = vrot.slane %v4619, 4
        %v4638 = vmax.f32 %v4619, %v4637
        %v4639 = vrot.slane %v4638, 2
        %v4640 = vmax.f32 %v4638, %v4639
        %v4641 = vrot.slane %v4640, 1
        %v4642 = vmax.f32 %v4640, %v4641
        %v4643 = vrot.slane %v4622, 4
        %v4644 = vmax.f32 %v4622, %v4643
        %v4645 = vrot.slane %v4644, 2
        %v4646 = vmax.f32 %v4644, %v4645
        %v4647 = vrot.slane %v4646, 1
        %v4648 = vmax.f32 %v4646, %v4647
        %v4649 = vmul.f32 %v4630, %v4642
        %v4650 = vmul.f32 %v4636, %v4648
        %v4653 = vsel %vm679, %v4650, %v4649
        %v4655 = vsel %vm776, %v4653, 0.0
        %4656 = vadd.xlane.f32.xlu0 %v4655
        %v4657 = vpop.xlane.xlu0 %4656
        %v4658 = vmul.f32 %v4630, %v4630
        %v4659 = vmul.f32 %v4636, %v4636
        %v4662 = vsel %vm679, %v4659, %v4658
        %v4664 = vsel %vm776, %v4662, 0.0
        %4665 = vadd.xlane.f32.xlu0 %v4664
        %v4666 = vpop.xlane.xlu0 %4665
        %v4667 = vrsqrt.pop %v4666
        %v4668 = vmul.f32 %v4666, %v4667
        %vm4669 = vcmp.eq.f32.partialorder %v4666, inf
        %v4670 = vsel %vm4669, %v4666, %v4668
        %vm4671 = vcmp.eq.f32.partialorder %v4666, 0.0
        %v4672 = vand.u32 %v4666, 2147483648
        %v4673 = vsel %vm4671, %v4672, %v4670
        %v4674 = vmax.f32 %v4673, 1e-06
        %v4675 = vmul.f32 %v4642, %v4642
        %v4676 = vmul.f32 %v4648, %v4648
        %v4679 = vsel %vm679, %v4676, %v4675
        %v4681 = vsel %vm776, %v4679, 0.0
        %4682 = vadd.xlane.f32.xlu0 %v4681
        %v4683 = vpop.xlane.xlu0 %4682
        %v4684 = vrsqrt.pop %v4683
        %v4685 = vmul.f32 %v4683, %v4684
        %vm4686 = vcmp.eq.f32.partialorder %v4683, inf
        %v4687 = vsel %vm4686, %v4683, %v4685
        %vm4688 = vcmp.eq.f32.partialorder %v4683, 0.0
        %v4689 = vand.u32 %v4683, 2147483648
        %v4690 = vsel %vm4688, %v4689, %v4687
        %v4691 = vmax.f32 %v4690, 1e-06
        %v4692 = vmul.f32 %v4674, %v4691
        %v4693 = vrcp.pop %v4692
        %v4694 = vmul.f32 %v4657, %v4693
        %v4695 = vlaneseq
        %v4696 = vand.u32 %v4695, 127
        %vm4697 = vcmp.eq.s32.totalorder %v4696, 0
        %v4699 = vlaneseq
        %v4700 = vshrl.u32 %v4699, 7
        %v4701 = vsub.s32 0, %v4700
        %v4702 = vrot.slane %v4694, %v4701
        %v4703 = vlaneseq
        %v4704 = vshrl.u32 %v4703, 7
        %v4705 = vsub.s32 1, %v4704
        %v4706 = vrot.slane %v4694, %v4705
        %vm4709 = vcmp.eq.s32.totalorder %v4696, 1
        %v4711 = vlaneseq
        %v4712 = vshrl.u32 %v4711, 7
        %v4713 = vsub.s32 0, %v4712
        %v4714 = vrot.slane %v785, %v4713
        %v4715 = vlaneseq
        %v4716 = vshrl.u32 %v4715, 7
        %v4717 = vsub.s32 1, %v4716
        %v4718 = vrot.slane %v785, %v4717
        %v4721 = vsel %vm4709, %v4714, 0.0
        %v4722 = vsel %vm4709, %v4718, 0.0
        %v4723 = vsel %vm4697, %v4702, %v4721
        %v4724 = vsel %vm4697, %v4706, %v4722
        %4725 = vst [vmem:[%s599] sm:$0x1] %v4723
        %4726 = vst [vmem:[%s599 + $0x1] sm:$0x1] %v4724
        %s4727 = sand.u32 %s433, 1
        %s4728 = scalar_lea.sflag [#allocation7], %s4727
        %s4729 = sand.u32 %s433, 1
        %s4730 = smul.addr %s4729, 2
        %s4731 = scalar_lea.vmem [#allocation6], %s4730
        // Predicated region
        $region93: #{tpu_custom_call.1} parent=91 // pred_check
          %p4732 = pneg %p443
        $region94: #{tpu_custom_call.1} parent=91 // pred_check_branch
          %4734 = sbr.rel (%p4732) target = $region96
        $region95: #{tpu_custom_call.1} parent=91 // pred_region
          %s4735 = smul.u32 2, %s32
          %s4737 = ssub.s32 32, 32
          %4738 = vsyncadd %s4728, %s4737
          %s4739 = smul.addr %s4735, 16
          %s4740 = scalar_lea.hbm %s18, %s4739
          %s4741 = sshll.u32 %s4731, 4
          %s4742 = int_to_ptr.vmem [resolvable:$true] %s4741
          %4747 = dma.vmem_to_hbm [thread:$0]  %s4742, 32, %s4740, %s4728, 16, 16, 1
        $region96: #{tpu_custom_call.1} parent=91 // pred_fallthru
          _
      $region92: #{tpu_custom_call.1} parent=5 // pred_fallthru
        _
      %p4748 = scmp.le.s32.totalorder 2, %s27
      // Predicated region
      $region97: #{tpu_custom_call.1} parent=5 // pred_check
        %p4749 = pneg %p4748
      $region98: #{tpu_custom_call.1} parent=5 // pred_check_branch
        %4751 = sbr.rel (%p4749) target = $region100
      $region99: #{tpu_custom_call.1} parent=5 // pred_region
        %s4752 = ssub.s32 %s27, 2
        // Predicated region
        $region101: #{tpu_custom_call.1} parent=99 // pred_check
          %p4753 = pneg %p449
        $region102: #{tpu_custom_call.1} parent=99 // pred_check_branch
          %4755 = sbr.rel (%p4753) target = $region104
        $region103: #{tpu_custom_call.1} parent=99 // pred_region
          %s4756 = sand.u32 %s434, 1
          %s4757 = scalar_lea.sflag [#allocation7], %s4756
          %s4758 = sand.u32 %s434, 1
          %s4759 = smul.addr %s4758, 2
          %s4760 = scalar_lea.vmem [#allocation6], %s4759
          %4761 = dma.done %s4757, 32
        $region104: #{tpu_custom_call.1} parent=99 // pred_fallthru
          _
      $region100: #{tpu_custom_call.1} parent=5 // pred_fallthru
        _
    $region6: #{tpu_custom_call.1} parent=1 // loop_footer
      %s31 = sadd.s32 1, %s27
    $region7: #{tpu_custom_call.1} parent=1 // loop_footer_branch
      %26 = sbr.rel target = $region3
    $region8: #{tpu_custom_call.1} parent=1 // loop_exit
      _
    %4762 = vsyncpa [#allocation7], 1
    %s4763 = scalar_lea.sflag [#allocation7], 1
    %4764 = vsyncpa %s4763, 1

</llo_original>
